<compile_context>
chip_gen: v5e
topology: v5e:2x2
jax: 0.10.0
libtpu: 0.0.40
codegen_flags: <defaults>
</compile_context>

<pallas_src>
import functools

import jax
import jax.numpy as jnp
from jax.experimental import pallas as pl
from jax.experimental.pallas import tpu as pltpu

IN_DIM = 784      # 28*28 MNIST
HID = 400
K = 16            # args.category
MULV_PAD = 128    # lane-dense mu|logvar slab (2K = 32 -> 128)
OUT_PAD = 896     # lane-dense recon slab (784 -> 7*128)
TB_MAX = 256


def _round_up(x, m):
    return (x + m - 1) // m * m


def vae_kernel(nsub, x_ref, eps_ref, w1_ref, w2_ref, w3_ref, w4_ref, b_ref,
               recon_ref, mulv_ref):
    # Packed biases (rows: b1, b2(=b21|b22, zero-padded), b3, b4(zero-padded)).
    b1 = b_ref[0:1, :HID]
    b2 = b_ref[1:2, :MULV_PAD]      # zeros beyond lane 2K keep padded mulv = 0
    b3 = b_ref[2:3, :HID]
    b4 = b_ref[3:4, :]              # (1, OUT_PAD), zeros beyond lane 784

    w1 = w1_ref[...]
    w2 = w2_ref[...]
    w3 = w3_ref[...]
    w4 = w4_ref[...]

    tb = x_ref.shape[0]
    sub = tb // nsub

    # Static unroll over independent half-tiles: MXU work of one half overlaps
    # the VPU/EUP (reparam / softmax / sigmoid) phase of the other.
    for s in range(nsub):
        rows = pl.ds(s * sub, sub)
        x = x_ref[rows, :]                          # (sub, 784) bf16
        eps = eps_ref[rows, :]                      # (sub, K)   f32

        # ---- encode: fc1 + ReLU, fused (and lane-padded) fc21/fc22 head ----
        h1 = jnp.maximum(
            jnp.dot(x, w1, preferred_element_type=jnp.float32) + b1, 0.0)
        mulv = jnp.dot(h1.astype(jnp.bfloat16), w2,
                       preferred_element_type=jnp.float32) + b2   # (sub, 128)
        mu = mulv[:, :K]
        logvar = mulv[:, K:2 * K]

        # ---- reparameterize: z = mu + eps * exp(0.5 * logvar) ----
        std = jnp.exp(0.5 * logvar)
        z = mu + eps * std

        # ---- decode: softmax(z, dim=1) -> fc3 ReLU -> fc4 sigmoid ----
        z_max = jnp.max(z, axis=1, keepdims=True)
        ez = jnp.exp(z - z_max)
        denom = jnp.sum(ez, axis=1, keepdims=True)
        sm = ez * pl.reciprocal(denom, approx=True)

        h3 = jnp.maximum(
            jnp.dot(sm.astype(jnp.bfloat16), w3,
                    preferred_element_type=jnp.float32) + b3, 0.0)
        logits = jnp.dot(h3.astype(jnp.bfloat16), w4,
                         preferred_element_type=jnp.float32) + b4  # (sub, 896)

        # recon emitted in bf16 (halves the dominant HBM writeback stream).
        recon_ref[rows, :] = jax.nn.sigmoid(logits).astype(recon_ref.dtype)
        mulv_ref[rows, :] = mulv


def init_linear(key, fan_in, fan_out):
    """PyTorch nn.Linear default init: U(-1/sqrt(fan_in), 1/sqrt(fan_in)).
    Weight stored as (fan_in, fan_out) (transposed vs. torch)."""
    kw, kb = jax.random.split(key)
    bound = 1.0 / jnp.sqrt(fan_in)
    w = jax.random.uniform(kw, (fan_in, fan_out), jnp.float32, -bound, bound)
    b = jax.random.uniform(kb, (1, fan_out), jnp.float32, -bound, bound)
    return w, b


def make_params(seed=0):
    keys = jax.random.split(jax.random.PRNGKey(seed), 5)
    w1, b1 = init_linear(keys[0], IN_DIM, HID)
    w21, b21 = init_linear(keys[1], HID, K)
    w22, b22 = init_linear(keys[2], HID, K)
    w3, b3 = init_linear(keys[3], K, HID)
    w4, b4 = init_linear(keys[4], HID, IN_DIM)

    # Fuse mu / logvar heads and lane-pad to 128 output columns.
    w2 = jnp.concatenate([w21, w22], axis=1)                       # (HID, 2K)
    w2 = jnp.pad(w2, ((0, 0), (0, MULV_PAD - 2 * K)))              # (HID, 128)
    b2 = jnp.concatenate([b21, b22], axis=1)                       # (1, 2K)

    # Lane-pad fc4 output 784 -> 896 (zero columns / zero bias tail).
    w4 = jnp.pad(w4, ((0, 0), (0, OUT_PAD - IN_DIM)))              # (HID, 896)

    # Pack all biases into one f32 buffer (rows: b1, b2, b3, b4).
    bias = jnp.zeros((4, OUT_PAD), jnp.float32)
    bias = bias.at[0, :HID].set(b1[0])
    bias = bias.at[1, :2 * K].set(b2[0])
    bias = bias.at[2, :HID].set(b3[0])
    bias = bias.at[3, :IN_DIM].set(b4[0])

    return dict(
        w1=w1.astype(jnp.bfloat16),
        w2=w2.astype(jnp.bfloat16),
        w3=w3.astype(jnp.bfloat16),
        w4=w4.astype(jnp.bfloat16),
        bias=bias,
    )


def prior(k, alpha):
    """Dirichlet Laplace-approx prior (module buffers; not used in forward)."""
    a = jnp.full((1, k), alpha, jnp.float32)
    mean = jnp.log(a) - jnp.mean(jnp.log(a), axis=1)
    var = (1.0 - 2.0 / k) * (1.0 / a) + (1.0 / k ** 2) * jnp.sum(1.0 / a, axis=1)
    return mean, var


def _pick_tile(B):
    """Batch tile: >= 16 rows (bf16 sublane packing); ~B/2 for moderate B so the
    'parallel' grid axis has >= 2 steps (v7x megacore); capped at TB_MAX."""
    if B <= 16:
        return _round_up(max(B, 1), 16)
    if B <= 2 * TB_MAX:
        return _round_up(pl.cdiv(B, 2), 32)
    return TB_MAX


def vae_forward(x, eps, p):
    """x: (B, 1, 28, 28) (any shape with 784 trailing elems), eps: (B, K).
    Returns (recon[B, 784] bf16, mu[B, K] f32, logvar[B, K] f32)."""
    xf = x.reshape(-1, IN_DIM).astype(jnp.float32)
    B = xf.shape[0]

    TB = _pick_tile(B)
    Bp = _round_up(B, TB)
    if Bp != B:
        xf = jnp.pad(xf, ((0, Bp - B), (0, 0)))
        eps = jnp.pad(eps, ((0, Bp - B), (0, 0)))
    xb = xf.astype(jnp.bfloat16)   # MXU operand only; element math stays f32

    # 2-way intra-step unroll only when the tile is big enough to split.
    nsub = 2 if (TB >= 128 and TB % 32 == 0) else 1

    n_weight_elems = (IN_DIM * HID + HID * MULV_PAD + K * HID + HID * OUT_PAD)
    flops = 2 * Bp * n_weight_elems
    bytes_accessed = (2 * n_weight_elems             # bf16 weights
                      + 4 * 4 * OUT_PAD              # packed biases (f32)
                      + 2 * Bp * IN_DIM              # x (bf16)
                      + 4 * Bp * K                   # eps (f32)
                      + 2 * Bp * OUT_PAD             # recon (bf16)
                      + 4 * Bp * MULV_PAD)           # mulv (f32)
    # exp (reparam) + exp (softmax) + softmax recip + sigmoid (exp + recip)
    transcendentals = Bp * (2 * K + 1 + 2 * OUT_PAD)

    recon, mulv = pl.pallas_call(
        functools.partial(vae_kernel, nsub),
        out_shape=(
            jax.ShapeDtypeStruct((Bp, OUT_PAD), jnp.bfloat16),
            jax.ShapeDtypeStruct((Bp, MULV_PAD), jnp.float32),
        ),
        grid=(Bp // TB,),
        in_specs=[
            pl.BlockSpec((TB, IN_DIM), lambda i: (i, 0)),       # x
            pl.BlockSpec((TB, K), lambda i: (i, 0)),            # eps
            pl.BlockSpec((IN_DIM, HID), lambda i: (0, 0)),      # w1 (VMEM-resident)
            pl.BlockSpec((HID, MULV_PAD), lambda i: (0, 0)),    # w2 (fused 21/22, padded)
            pl.BlockSpec((K, HID), lambda i: (0, 0)),           # w3
            pl.BlockSpec((HID, OUT_PAD), lambda i: (0, 0)),     # w4 (lane-padded)
            pl.BlockSpec((4, OUT_PAD), lambda i: (0, 0)),       # packed biases
        ],
        out_specs=(
            pl.BlockSpec((TB, OUT_PAD), lambda i: (i, 0)),
            pl.BlockSpec((TB, MULV_PAD), lambda i: (i, 0)),
        ),
        compiler_params=pltpu.CompilerParams(
            dimension_semantics=("parallel",)),
        cost_estimate=pl.CostEstimate(
            flops=flops,
            transcendentals=transcendentals,
            bytes_accessed=bytes_accessed),
    )(xb, eps, p["w1"], p["w2"], p["w3"], p["w4"], p["bias"])

    recon = recon[:B, :IN_DIM]          # bf16; cast downstream if f32 needed
    mu = mulv[:B, :K]
    logvar = mulv[:B, K:2 * K]
    return recon, mu, logvar


def vae_reference(x, eps, p):
    """Pure-JAX reference with the same bf16 operand / f32 accumulate recipe."""
    xf = x.reshape(-1, IN_DIM).astype(jnp.float32)
    b1 = p["bias"][0:1, :HID]
    b2 = p["bias"][1:2, :2 * K]
    b3 = p["bias"][2:3, :HID]
    b4 = p["bias"][3:4, :IN_DIM]
    h1 = jax.nn.relu(jnp.dot(xf.astype(jnp.bfloat16), p["w1"],
                             preferred_element_type=jnp.float32) + b1)
    mulv = jnp.dot(h1.astype(jnp.bfloat16), p["w2"][:, :2 * K],
                   preferred_element_type=jnp.float32) + b2
    mu, logvar = mulv[:, :K], mulv[:, K:]
    z = mu + eps * jnp.exp(0.5 * logvar)
    sm = jax.nn.softmax(z, axis=1)
    h3 = jax.nn.relu(jnp.dot(sm.astype(jnp.bfloat16), p["w3"],
                             preferred_element_type=jnp.float32) + b3)
    recon = jax.nn.sigmoid(jnp.dot(h3.astype(jnp.bfloat16), p["w4"][:, :IN_DIM],
                                   preferred_element_type=jnp.float32) + b4)
    return recon, mu, logvar


def _check(B, seed):
    params = make_params(seed=0)
    key = jax.random.PRNGKey(seed)
    kx, ke = jax.random.split(key)
    x = jax.random.uniform(kx, (B, 1, 28, 28), jnp.float32)    # MNIST-like NCHW
    eps = jax.random.normal(ke, (B, K), jnp.float32)           # reparam noise
                                                               # (replaces torch.randn_like)
    recon, mu, logvar = vae_forward(x, eps, params)
    jax.block_until_ready((recon, mu, logvar))

    assert recon.shape == (B, IN_DIM)
    assert mu.shape == (B, K) and logvar.shape == (B, K)
    assert bool(jnp.all(jnp.isfinite(recon.astype(jnp.float32))))

    r_ref, mu_ref, lv_ref = vae_reference(x, eps, params)
    assert jnp.allclose(recon.astype(jnp.float32), r_ref, rtol=2e-2, atol=2e-2)
    assert jnp.allclose(mu, mu_ref, rtol=2e-2, atol=2e-2)
    assert jnp.allclose(logvar, lv_ref, rtol=2e-2, atol=2e-2)


if __name__ == "__main__":
    # prior buffers created in __init__ (unused by forward, kept for parity)
    prior_mean, prior_var = prior(K, 0.3)
    prior_logvar = jnp.log(prior_var)

    # Small serving-style batch (single grid step, TB=16 path).
    _check(B=8, seed=0)
    # Moderate batch: exercises grid length 2 (v7x megacore) and the 2-way
    # intra-step unroll (TB=128, nsub=2).
    _check(B=256, seed=1)

    print("KERNEL_OK")
</pallas_src>

<mosaic_0001>
module attributes {stable_mosaic.version = 11 : i64} {
  func.func @vae_kernel(%arg0: i32, %arg1: memref<16x784xbf16, #tpu.memory_space<vmem>>, %arg2: memref<16x16xf32, #tpu.memory_space<vmem>>, %arg3: memref<784x400xbf16, #tpu.memory_space<vmem>>, %arg4: memref<400x128xbf16, #tpu.memory_space<vmem>>, %arg5: memref<16x400xbf16, #tpu.memory_space<vmem>>, %arg6: memref<400x896xbf16, #tpu.memory_space<vmem>>, %arg7: memref<4x896xf32, #tpu.memory_space<vmem>>, %arg8: memref<16x896xbf16, #tpu.memory_space<vmem>>, %arg9: memref<16x128xf32, #tpu.memory_space<vmem>>) attributes {dimension_semantics = [#tpu.dimension_semantics<parallel>], iteration_bounds = array<i64: 1>, scalar_prefetch = 0 : i64, scratch_operands = 0 : i64, tpu.core_type = #tpu.core_type<tc>, window_params = [{transform_indices = @transform_0, window_bounds = array<i64: 16, 784>}, {transform_indices = @transform_1, window_bounds = array<i64: 16, 16>}, {pipeline_mode = #tpu.pipeline_mode<synchronous>, transform_indices = @transform_2, window_bounds = array<i64: 784, 400>}, {pipeline_mode = #tpu.pipeline_mode<synchronous>, transform_indices = @transform_3, window_bounds = array<i64: 400, 128>}, {pipeline_mode = #tpu.pipeline_mode<synchronous>, transform_indices = @transform_4, window_bounds = array<i64: 16, 400>}, {pipeline_mode = #tpu.pipeline_mode<synchronous>, transform_indices = @transform_5, window_bounds = array<i64: 400, 896>}, {pipeline_mode = #tpu.pipeline_mode<synchronous>, transform_indices = @transform_6, window_bounds = array<i64: 4, 896>}, {transform_indices = @transform_7, window_bounds = array<i64: 16, 896>}, {transform_indices = @transform_8, window_bounds = array<i64: 16, 128>}]} {
    %c0 = arith.constant 0 : index
    %c0_0 = arith.constant 0 : index
    %0 = vector.load %arg7[%c0, %c0_0] : memref<4x896xf32, #tpu.memory_space<vmem>>, vector<1x400xf32>
    %c1 = arith.constant 1 : index
    %c0_1 = arith.constant 0 : index
    %1 = vector.load %arg7[%c1, %c0_1] : memref<4x896xf32, #tpu.memory_space<vmem>>, vector<1x128xf32>
    %c2 = arith.constant 2 : index
    %c0_2 = arith.constant 0 : index
    %2 = vector.load %arg7[%c2, %c0_2] : memref<4x896xf32, #tpu.memory_space<vmem>>, vector<1x400xf32>
    %c3 = arith.constant 3 : index
    %c0_3 = arith.constant 0 : index
    %3 = vector.load %arg7[%c3, %c0_3] : memref<4x896xf32, #tpu.memory_space<vmem>>, vector<1x896xf32>
    %c0_4 = arith.constant 0 : index
    %c0_5 = arith.constant 0 : index
    %4 = vector.load %arg3[%c0_4, %c0_5] : memref<784x400xbf16, #tpu.memory_space<vmem>>, vector<784x400xbf16>
    %c0_6 = arith.constant 0 : index
    %c0_7 = arith.constant 0 : index
    %5 = vector.load %arg4[%c0_6, %c0_7] : memref<400x128xbf16, #tpu.memory_space<vmem>>, vector<400x128xbf16>
    %c0_8 = arith.constant 0 : index
    %c0_9 = arith.constant 0 : index
    %6 = vector.load %arg5[%c0_8, %c0_9] : memref<16x400xbf16, #tpu.memory_space<vmem>>, vector<16x400xbf16>
    %c0_10 = arith.constant 0 : index
    %c0_11 = arith.constant 0 : index
    %7 = vector.load %arg6[%c0_10, %c0_11] : memref<400x896xbf16, #tpu.memory_space<vmem>>, vector<400x896xbf16>
    %c0_12 = arith.constant 0 : index
    %c0_13 = arith.constant 0 : index
    %8 = vector.load %arg1[%c0_12, %c0_13] : memref<16x784xbf16, #tpu.memory_space<vmem>>, vector<16x784xbf16>
    %c0_14 = arith.constant 0 : index
    %c0_15 = arith.constant 0 : index
    %9 = vector.load %arg2[%c0_14, %c0_15] : memref<16x16xf32, #tpu.memory_space<vmem>>, vector<16x16xf32>
    %cst = arith.constant dense<0.000000e+00> : vector<16x400xf32>
    %10 = tpu.matmul %8, %4, %cst {dimension_numbers = #tpu.dot_dimension_numbers<[1], [0], [0], [1], [0, 0, 1, 1], [], []>} : vector<16x784xbf16>, vector<784x400xbf16>, vector<16x400xf32> -> vector<16x400xf32>
    %11 = vector.broadcast %0 : vector<1x400xf32> to vector<16x400xf32>
    %12 = arith.addf %10, %11 : vector<16x400xf32>
    %cst_16 = arith.constant 0.000000e+00 : f32
    %13 = vector.broadcast %cst_16 : f32 to vector<16x400xf32>
    %14 = arith.maximumf %12, %13 : vector<16x400xf32>
    %15 = arith.truncf %14 : vector<16x400xf32> to vector<16x400xbf16>
    %cst_17 = arith.constant dense<0.000000e+00> : vector<16x128xf32>
    %16 = tpu.matmul %15, %5, %cst_17 {dimension_numbers = #tpu.dot_dimension_numbers<[1], [0], [0], [1], [0, 0, 1, 1], [], []>} : vector<16x400xbf16>, vector<400x128xbf16>, vector<16x128xf32> -> vector<16x128xf32>
    %17 = vector.broadcast %1 : vector<1x128xf32> to vector<16x128xf32>
    %18 = arith.addf %16, %17 : vector<16x128xf32>
    %19 = vector.extract_strided_slice %18 {offsets = [0, 0], sizes = [16, 16], strides = [1, 1]} : vector<16x128xf32> to vector<16x16xf32>
    %20 = vector.extract_strided_slice %18 {offsets = [0, 16], sizes = [16, 16], strides = [1, 1]} : vector<16x128xf32> to vector<16x16xf32>
    %cst_18 = arith.constant 5.000000e-01 : f32
    %21 = vector.broadcast %cst_18 : f32 to vector<16x16xf32>
    %22 = arith.mulf %21, %20 : vector<16x16xf32>
    %23 = math.exp %22 : vector<16x16xf32>
    %24 = arith.mulf %9, %23 : vector<16x16xf32>
    %25 = arith.addf %19, %24 : vector<16x16xf32>
    %cst_19 = arith.constant dense<0xFF800000> : vector<16xf32>
    %26 = vector.multi_reduction <maximumf>, %25, %cst_19 [1] : vector<16x16xf32> to vector<16xf32>
    %27 = vector.shape_cast %26 : vector<16xf32> to vector<16x1xf32>
    %28 = vector.broadcast %27 : vector<16x1xf32> to vector<16x16xf32>
    %29 = arith.subf %25, %28 : vector<16x16xf32>
    %30 = math.exp %29 : vector<16x16xf32>
    %cst_20 = arith.constant dense<0.000000e+00> : vector<16xf32>
    %31 = vector.multi_reduction <add>, %30, %cst_20 [1] : vector<16x16xf32> to vector<16xf32>
    %32 = vector.shape_cast %31 : vector<16xf32> to vector<16x1xf32>
    %33 = tpu.reciprocal %32 {approx = true} : vector<16x1xf32> -> vector<16x1xf32>
    %34 = vector.broadcast %33 : vector<16x1xf32> to vector<16x16xf32>
    %35 = arith.mulf %30, %34 : vector<16x16xf32>
    %36 = arith.truncf %35 : vector<16x16xf32> to vector<16x16xbf16>
    %cst_21 = arith.constant dense<0.000000e+00> : vector<16x400xf32>
    %37 = tpu.matmul %36, %6, %cst_21 {dimension_numbers = #tpu.dot_dimension_numbers<[1], [0], [0], [1], [0, 0, 1, 1], [], []>} : vector<16x16xbf16>, vector<16x400xbf16>, vector<16x400xf32> -> vector<16x400xf32>
    %38 = vector.broadcast %2 : vector<1x400xf32> to vector<16x400xf32>
    %39 = arith.addf %37, %38 : vector<16x400xf32>
    %cst_22 = arith.constant 0.000000e+00 : f32
    %40 = vector.broadcast %cst_22 : f32 to vector<16x400xf32>
    %41 = arith.maximumf %39, %40 : vector<16x400xf32>
    %42 = arith.truncf %41 : vector<16x400xf32> to vector<16x400xbf16>
    %cst_23 = arith.constant dense<0.000000e+00> : vector<16x896xf32>
    %43 = tpu.matmul %42, %7, %cst_23 {dimension_numbers = #tpu.dot_dimension_numbers<[1], [0], [0], [1], [0, 0, 1, 1], [], []>} : vector<16x400xbf16>, vector<400x896xbf16>, vector<16x896xf32> -> vector<16x896xf32>
    %44 = vector.broadcast %3 : vector<1x896xf32> to vector<16x896xf32>
    %45 = arith.addf %43, %44 : vector<16x896xf32>
    %46 = arith.negf %45 : vector<16x896xf32>
    %47 = math.exp %46 : vector<16x896xf32>
    %cst_24 = arith.constant 1.000000e+00 : f32
    %48 = vector.broadcast %cst_24 : f32 to vector<16x896xf32>
    %49 = arith.addf %48, %47 : vector<16x896xf32>
    %50 = arith.divf %48, %49 : vector<16x896xf32>
    %51 = arith.truncf %50 : vector<16x896xf32> to vector<16x896xbf16>
    %c0_25 = arith.constant 0 : index
    %c0_26 = arith.constant 0 : index
    %52 = vector.load %arg8[%c0_25, %c0_26] : memref<16x896xbf16, #tpu.memory_space<vmem>>, vector<16x896xbf16>
    tpu.vector_store %arg8[%c0_25, %c0_26], %51 {strides = array<i32>} : memref<16x896xbf16, #tpu.memory_space<vmem>>, vector<16x896xbf16>,
    %c0_27 = arith.constant 0 : index
    %c0_28 = arith.constant 0 : index
    %53 = vector.load %arg9[%c0_27, %c0_28] : memref<16x128xf32, #tpu.memory_space<vmem>>, vector<16x128xf32>
    tpu.vector_store %arg9[%c0_27, %c0_28], %18 {strides = array<i32>} : memref<16x128xf32, #tpu.memory_space<vmem>>, vector<16x128xf32>,
    return
  }
  func.func @transform_0(%arg0: i32) -> (i32, i32) {
    %c0_i32 = arith.constant 0 : i32
    %c0_i32_0 = arith.constant 0 : i32
    return %arg0, %c0_i32 : i32, i32
  }
  func.func @transform_1(%arg0: i32) -> (i32, i32) {
    %c0_i32 = arith.constant 0 : i32
    %c0_i32_0 = arith.constant 0 : i32
    return %arg0, %c0_i32 : i32, i32
  }
  func.func @transform_2(%arg0: i32) -> (i32, i32) {
    %c0_i32 = arith.constant 0 : i32
    %c0_i32_0 = arith.constant 0 : i32
    %c0_i32_1 = arith.constant 0 : i32
    return %c0_i32, %c0_i32_0 : i32, i32
  }
  func.func @transform_3(%arg0: i32) -> (i32, i32) {
    %c0_i32 = arith.constant 0 : i32
    %c0_i32_0 = arith.constant 0 : i32
    %c0_i32_1 = arith.constant 0 : i32
    return %c0_i32, %c0_i32_0 : i32, i32
  }
  func.func @transform_4(%arg0: i32) -> (i32, i32) {
    %c0_i32 = arith.constant 0 : i32
    %c0_i32_0 = arith.constant 0 : i32
    %c0_i32_1 = arith.constant 0 : i32
    return %c0_i32, %c0_i32_0 : i32, i32
  }
  func.func @transform_5(%arg0: i32) -> (i32, i32) {
    %c0_i32 = arith.constant 0 : i32
    %c0_i32_0 = arith.constant 0 : i32
    %c0_i32_1 = arith.constant 0 : i32
    return %c0_i32, %c0_i32_0 : i32, i32
  }
  func.func @transform_6(%arg0: i32) -> (i32, i32) {
    %c0_i32 = arith.constant 0 : i32
    %c0_i32_0 = arith.constant 0 : i32
    %c0_i32_1 = arith.constant 0 : i32
    return %c0_i32, %c0_i32_0 : i32, i32
  }
  func.func @transform_7(%arg0: i32) -> (i32, i32) {
    %c0_i32 = arith.constant 0 : i32
    %c0_i32_0 = arith.constant 0 : i32
    return %arg0, %c0_i32 : i32, i32
  }
  func.func @transform_8(%arg0: i32) -> (i32, i32) {
    %c0_i32 = arith.constant 0 : i32
    %c0_i32_0 = arith.constant 0 : i32
    return %arg0, %c0_i32 : i32, i32
  }
}

</mosaic_0001>

<llo_original>
// kernel: tpu_custom_call.1
$region0: #{tpu_custom_call.1}
  #allocation0 [shape = 'u32[]', space=smem, size = 0x4, offset = 0x4, fixed_abs, tag = 'smem constant byte address 0x4 - core index']
  #allocation1 [shape = 'u32[72,128]{1,0:T(1,128)}', space=vmem, size = 0x9000, scoped, tag = 'internal scratch']
  %s0 = inlined_call_operand.vmem [shape: bf16[16,784], index: 0, kind: input, shape index: {}]
  %s1 = inlined_call_operand.vmem [shape: f32[16,16], index: 1, kind: input, shape index: {}]
  %s2 = inlined_call_operand.vmem [shape: bf16[784,400], index: 2, kind: input, shape index: {}]
  %s3 = inlined_call_operand.vmem [shape: bf16[400,128], index: 3, kind: input, shape index: {}]
  %s4 = inlined_call_operand.vmem [shape: bf16[16,400], index: 4, kind: input, shape index: {}]
  %s5 = inlined_call_operand.vmem [shape: bf16[400,896], index: 5, kind: input, shape index: {}]
  %s6 = inlined_call_operand.vmem [shape: f32[4,896], index: 6, kind: input, shape index: {}]
  %s7 = inlined_call_operand.hbm [shape: bf16[16,896], index: 7, kind: output, shape index: {0}]
  %s8 = inlined_call_operand.hbm [shape: f32[16,128], index: 8, kind: output, shape index: {1}]
  %9 = xla_tuple %s7, %s8
  %s10 = sld [smem:[#allocation0]]
  $region46: #{tpu_custom_call.1} parent=0
    _
  %s12 = ssub.s32 1, %s10
  %s13 = scalar_select 0, %s12, %s10
  $region1: #{tpu_custom_call.1} parent=0
    #allocation2 [shape = 'u8[28672]{0}', space=vmem, size = 0x7000, scoped, tag = 'output window, operand 0, single buffered']
    #allocation3 [shape = 's32[1]{0}', space=sflag, size = 0x4, scoped, tag = 'scoped memory for tpu_custom_call.1']
    #allocation4 [shape = 'u8[8192]{0}', space=vmem, size = 0x2000, scoped, tag = 'output window, operand 1, single buffered']
    #allocation5 [shape = 's32[1]{0}', space=sflag, size = 0x4, scoped, tag = 'scoped memory for tpu_custom_call.1']
    %14 = vsyncpa [#allocation3], 0
    %15 = vsyncpa [#allocation5], 0
    // Predicated region
    $region2: #{tpu_custom_call.1} parent=1 // pred_check
      _
    $region3: #{tpu_custom_call.1} parent=1 // pred_check_branch
      %17 = sbr.rel (0) target = $region5
    $region4: #{tpu_custom_call.1} parent=1 // pred_region
      _
    $region5: #{tpu_custom_call.1} parent=1 // pred_fallthru
      _
    // Predicated region
    $region6: #{tpu_custom_call.1} parent=1 // pred_check
      _
    $region7: #{tpu_custom_call.1} parent=1 // pred_check_branch
      %19 = sbr.rel (0) target = $region9
    $region8: #{tpu_custom_call.1} parent=1 // pred_region
      _
    $region9: #{tpu_custom_call.1} parent=1 // pred_fallthru
      _
    // Predicated region
    $region10: #{tpu_custom_call.1} parent=1 // pred_check
      _
    $region11: #{tpu_custom_call.1} parent=1 // pred_check_branch
      %21 = sbr.rel (0) target = $region13
    $region12: #{tpu_custom_call.1} parent=1 // pred_region
      _
    $region13: #{tpu_custom_call.1} parent=1 // pred_fallthru
      _
    // Predicated region
    $region14: #{tpu_custom_call.1} parent=1 // pred_check
      _
    $region15: #{tpu_custom_call.1} parent=1 // pred_check_branch
      %23 = sbr.rel (0) target = $region17
    $region16: #{tpu_custom_call.1} parent=1 // pred_region
      _
    $region17: #{tpu_custom_call.1} parent=1 // pred_fallthru
      _
    // Predicated region
    $region18: #{tpu_custom_call.1} parent=1 // pred_check
      _
    $region19: #{tpu_custom_call.1} parent=1 // pred_check_branch
      %25 = sbr.rel (0) target = $region21
    $region20: #{tpu_custom_call.1} parent=1 // pred_region
      _
    $region21: #{tpu_custom_call.1} parent=1 // pred_fallthru
      _
    // Predicated region
    $region22: #{tpu_custom_call.1} parent=1 // pred_check
      _
    $region23: #{tpu_custom_call.1} parent=1 // pred_check_branch
      %27 = sbr.rel (0) target = $region25
    $region24: #{tpu_custom_call.1} parent=1 // pred_region
      _
    $region25: #{tpu_custom_call.1} parent=1 // pred_fallthru
      _
    // Predicated region
    $region26: #{tpu_custom_call.1} parent=1 // pred_check
      _
    $region27: #{tpu_custom_call.1} parent=1 // pred_check_branch
      %29 = sbr.rel (0) target = $region29
    $region28: #{tpu_custom_call.1} parent=1 // pred_region
      _
    $region29: #{tpu_custom_call.1} parent=1 // pred_fallthru
      _
    %v31 = vld [vmem:[%s6] ss:$4 sm:$0xf]
    %v32 = vld [vmem:[%s6 + $0x1] sm:$0x1]
    %s33 = scalar_lea.vmem %s6, 2
    %v34 = vld [vmem:[%s33] ss:$4 sm:$0xf]
    %s35 = scalar_lea.vmem %s6, 3
    %v36 = vld [vmem:[%s35] ss:$4 sm:$0xff]
    %v37 = vld [vmem:[%s2] sm:$0xff]
    %v38 = vld [vmem:[%s2 + $0x8] sm:$0xff]
    %v39 = vld [vmem:[%s2 + $0x10] sm:$0xff]
    %v40 = vld [vmem:[%s2 + $0x18] sm:$0xff]
    %v41 = vld [vmem:[%s2 + $0x20] sm:$0xff]
    %v42 = vld [vmem:[%s2 + $0x28] sm:$0xff]
    %v43 = vld [vmem:[%s2 + $0x30] sm:$0xff]
    %v44 = vld [vmem:[%s2 + $0x38] sm:$0xff]
    %v45 = vld [vmem:[%s2 + $0x40] sm:$0xff]
    %v46 = vld [vmem:[%s2 + $0x48] sm:$0xff]
    %v47 = vld [vmem:[%s2 + $0x50] sm:$0xff]
    %v48 = vld [vmem:[%s2 + $0x58] sm:$0xff]
    %v49 = vld [vmem:[%s2 + $0x60] sm:$0xff]
    %v50 = vld [vmem:[%s2 + $0x68] sm:$0xff]
    %v51 = vld [vmem:[%s2 + $0x70] sm:$0xff]
    %v52 = vld [vmem:[%s2 + $0x78] sm:$0xff]
    %v53 = vld [vmem:[%s2 + $0x80] sm:$0xff]
    %v54 = vld [vmem:[%s2 + $0x88] sm:$0xff]
    %v55 = vld [vmem:[%s2 + $0x90] sm:$0xff]
    %v56 = vld [vmem:[%s2 + $0x98] sm:$0xff]
    %v57 = vld [vmem:[%s2 + $0xa0] sm:$0xff]
    %v58 = vld [vmem:[%s2 + $0xa8] sm:$0xff]
    %v59 = vld [vmem:[%s2 + $0xb0] sm:$0xff]
    %v60 = vld [vmem:[%s2 + $0xb8] sm:$0xff]
    %v61 = vld [vmem:[%s2 + $0xc0] sm:$0xff]
    %v62 = vld [vmem:[%s2 + $0xc8] sm:$0xff]
    %v63 = vld [vmem:[%s2 + $0xd0] sm:$0xff]
    %v64 = vld [vmem:[%s2 + $0xd8] sm:$0xff]
    %v65 = vld [vmem:[%s2 + $0xe0] sm:$0xff]
    %v66 = vld [vmem:[%s2 + $0xe8] sm:$0xff]
    %v67 = vld [vmem:[%s2 + $0xf0] sm:$0xff]
    %v68 = vld [vmem:[%s2 + $0xf8] sm:$0xff]
    %v69 = vld [vmem:[%s2 + $0x100] sm:$0xff]
    %v70 = vld [vmem:[%s2 + $0x108] sm:$0xff]
    %v71 = vld [vmem:[%s2 + $0x110] sm:$0xff]
    %v72 = vld [vmem:[%s2 + $0x118] sm:$0xff]
    %v73 = vld [vmem:[%s2 + $0x120] sm:$0xff]
    %v74 = vld [vmem:[%s2 + $0x128] sm:$0xff]
    %v75 = vld [vmem:[%s2 + $0x130] sm:$0xff]
    %v76 = vld [vmem:[%s2 + $0x138] sm:$0xff]
    %v77 = vld [vmem:[%s2 + $0x140] sm:$0xff]
    %v78 = vld [vmem:[%s2 + $0x148] sm:$0xff]
    %v79 = vld [vmem:[%s2 + $0x150] sm:$0xff]
    %v80 = vld [vmem:[%s2 + $0x158] sm:$0xff]
    %v81 = vld [vmem:[%s2 + $0x160] sm:$0xff]
    %v82 = vld [vmem:[%s2 + $0x168] sm:$0xff]
    %v83 = vld [vmem:[%s2 + $0x170] sm:$0xff]
    %v84 = vld [vmem:[%s2 + $0x178] sm:$0xff]
    %v85 = vld [vmem:[%s2 + $0x180] sm:$0xff]
    %v86 = vld [vmem:[%s2 + $0x188] sm:$0xff]
    %v87 = vld [vmem:[%s2 + $0x190] sm:$0xff]
    %v88 = vld [vmem:[%s2 + $0x198] sm:$0xff]
    %v89 = vld [vmem:[%s2 + $0x1a0] sm:$0xff]
    %v90 = vld [vmem:[%s2 + $0x1a8] sm:$0xff]
    %v91 = vld [vmem:[%s2 + $0x1b0] sm:$0xff]
    %v92 = vld [vmem:[%s2 + $0x1b8] sm:$0xff]
    %v93 = vld [vmem:[%s2 + $0x1c0] sm:$0xff]
    %v94 = vld [vmem:[%s2 + $0x1c8] sm:$0xff]
    %v95 = vld [vmem:[%s2 + $0x1d0] sm:$0xff]
    %v96 = vld [vmem:[%s2 + $0x1d8] sm:$0xff]
    %v97 = vld [vmem:[%s2 + $0x1e0] sm:$0xff]
    %v98 = vld [vmem:[%s2 + $0x1e8] sm:$0xff]
    %v99 = vld [vmem:[%s2 + $0x1f0] sm:$0xff]
    %v100 = vld [vmem:[%s2 + $0x1f8] sm:$0xff]
    %v101 = vld [vmem:[%s2 + $0x200] sm:$0xff]
    %v102 = vld [vmem:[%s2 + $0x208] sm:$0xff]
    %v103 = vld [vmem:[%s2 + $0x210] sm:$0xff]
    %v104 = vld [vmem:[%s2 + $0x218] sm:$0xff]
    %v105 = vld [vmem:[%s2 + $0x220] sm:$0xff]
    %v106 = vld [vmem:[%s2 + $0x228] sm:$0xff]
    %v107 = vld [vmem:[%s2 + $0x230] sm:$0xff]
    %v108 = vld [vmem:[%s2 + $0x238] sm:$0xff]
    %v109 = vld [vmem:[%s2 + $0x240] sm:$0xff]
    %v110 = vld [vmem:[%s2 + $0x248] sm:$0xff]
    %v111 = vld [vmem:[%s2 + $0x250] sm:$0xff]
    %v112 = vld [vmem:[%s2 + $0x258] sm:$0xff]
    %v113 = vld [vmem:[%s2 + $0x260] sm:$0xff]
    %v114 = vld [vmem:[%s2 + $0x268] sm:$0xff]
    %v115 = vld [vmem:[%s2 + $0x270] sm:$0xff]
    %v116 = vld [vmem:[%s2 + $0x278] sm:$0xff]
    %v117 = vld [vmem:[%s2 + $0x280] sm:$0xff]
    %v118 = vld [vmem:[%s2 + $0x288] sm:$0xff]
    %v119 = vld [vmem:[%s2 + $0x290] sm:$0xff]
    %v120 = vld [vmem:[%s2 + $0x298] sm:$0xff]
    %v121 = vld [vmem:[%s2 + $0x2a0] sm:$0xff]
    %v122 = vld [vmem:[%s2 + $0x2a8] sm:$0xff]
    %v123 = vld [vmem:[%s2 + $0x2b0] sm:$0xff]
    %v124 = vld [vmem:[%s2 + $0x2b8] sm:$0xff]
    %v125 = vld [vmem:[%s2 + $0x2c0] sm:$0xff]
    %v126 = vld [vmem:[%s2 + $0x2c8] sm:$0xff]
    %v127 = vld [vmem:[%s2 + $0x2d0] sm:$0xff]
    %v128 = vld [vmem:[%s2 + $0x2d8] sm:$0xff]
    %v129 = vld [vmem:[%s2 + $0x2e0] sm:$0xff]
    %v130 = vld [vmem:[%s2 + $0x2e8] sm:$0xff]
    %v131 = vld [vmem:[%s2 + $0x2f0] sm:$0xff]
    %v132 = vld [vmem:[%s2 + $0x2f8] sm:$0xff]
    %v133 = vld [vmem:[%s2 + $0x300] sm:$0xff]
    %v134 = vld [vmem:[%s2 + $0x308] sm:$0xff]
    %v135 = vld [vmem:[%s2 + $0x310] sm:$0xff]
    %v136 = vld [vmem:[%s2 + $0x318] sm:$0xff]
    %v137 = vld [vmem:[%s2 + $0x320] sm:$0xff]
    %v138 = vld [vmem:[%s2 + $0x328] sm:$0xff]
    %v139 = vld [vmem:[%s2 + $0x330] sm:$0xff]
    %v140 = vld [vmem:[%s2 + $0x338] sm:$0xff]
    %v141 = vld [vmem:[%s2 + $0x340] sm:$0xff]
    %v142 = vld [vmem:[%s2 + $0x348] sm:$0xff]
    %v143 = vld [vmem:[%s2 + $0x350] sm:$0xff]
    %v144 = vld [vmem:[%s2 + $0x358] sm:$0xff]
    %v145 = vld [vmem:[%s2 + $0x360] sm:$0xff]
    %v146 = vld [vmem:[%s2 + $0x368] sm:$0xff]
    %v147 = vld [vmem:[%s2 + $0x370] sm:$0xff]
    %v148 = vld [vmem:[%s2 + $0x378] sm:$0xff]
    %v149 = vld [vmem:[%s2 + $0x380] sm:$0xff]
    %v150 = vld [vmem:[%s2 + $0x388] sm:$0xff]
    %v151 = vld [vmem:[%s2 + $0x390] sm:$0xff]
    %v152 = vld [vmem:[%s2 + $0x398] sm:$0xff]
    %v153 = vld [vmem:[%s2 + $0x3a0] sm:$0xff]
    %v154 = vld [vmem:[%s2 + $0x3a8] sm:$0xff]
    %v155 = vld [vmem:[%s2 + $0x3b0] sm:$0xff]
    %v156 = vld [vmem:[%s2 + $0x3b8] sm:$0xff]
    %v157 = vld [vmem:[%s2 + $0x3c0] sm:$0xff]
    %v158 = vld [vmem:[%s2 + $0x3c8] sm:$0xff]
    %v159 = vld [vmem:[%s2 + $0x3d0] sm:$0xff]
    %v160 = vld [vmem:[%s2 + $0x3d8] sm:$0xff]
    %v161 = vld [vmem:[%s2 + $0x3e0] sm:$0xff]
    %v162 = vld [vmem:[%s2 + $0x3e8] sm:$0xff]
    %v163 = vld [vmem:[%s2 + $0x3f0] sm:$0xff]
    %v164 = vld [vmem:[%s2 + $0x3f8] sm:$0xff]
    %v165 = vld [vmem:[%s2 + $0x400] sm:$0xff]
    %v166 = vld [vmem:[%s2 + $0x408] sm:$0xff]
    %v167 = vld [vmem:[%s2 + $0x410] sm:$0xff]
    %v168 = vld [vmem:[%s2 + $0x418] sm:$0xff]
    %v169 = vld [vmem:[%s2 + $0x420] sm:$0xff]
    %v170 = vld [vmem:[%s2 + $0x428] sm:$0xff]
    %v171 = vld [vmem:[%s2 + $0x430] sm:$0xff]
    %v172 = vld [vmem:[%s2 + $0x438] sm:$0xff]
    %v173 = vld [vmem:[%s2 + $0x440] sm:$0xff]
    %v174 = vld [vmem:[%s2 + $0x448] sm:$0xff]
    %v175 = vld [vmem:[%s2 + $0x450] sm:$0xff]
    %v176 = vld [vmem:[%s2 + $0x458] sm:$0xff]
    %v177 = vld [vmem:[%s2 + $0x460] sm:$0xff]
    %v178 = vld [vmem:[%s2 + $0x468] sm:$0xff]
    %v179 = vld [vmem:[%s2 + $0x470] sm:$0xff]
    %v180 = vld [vmem:[%s2 + $0x478] sm:$0xff]
    %v181 = vld [vmem:[%s2 + $0x480] sm:$0xff]
    %v182 = vld [vmem:[%s2 + $0x488] sm:$0xff]
    %v183 = vld [vmem:[%s2 + $0x490] sm:$0xff]
    %v184 = vld [vmem:[%s2 + $0x498] sm:$0xff]
    %v185 = vld [vmem:[%s2 + $0x4a0] sm:$0xff]
    %v186 = vld [vmem:[%s2 + $0x4a8] sm:$0xff]
    %v187 = vld [vmem:[%s2 + $0x4b0] sm:$0xff]
    %v188 = vld [vmem:[%s2 + $0x4b8] sm:$0xff]
    %v189 = vld [vmem:[%s2 + $0x4c0] sm:$0xff]
    %v190 = vld [vmem:[%s2 + $0x4c8] sm:$0xff]
    %v191 = vld [vmem:[%s2 + $0x4d0] sm:$0xff]
    %v192 = vld [vmem:[%s2 + $0x4d8] sm:$0xff]
    %v193 = vld [vmem:[%s2 + $0x4e0] sm:$0xff]
    %v194 = vld [vmem:[%s2 + $0x4e8] sm:$0xff]
    %v195 = vld [vmem:[%s2 + $0x4f0] sm:$0xff]
    %v196 = vld [vmem:[%s2 + $0x4f8] sm:$0xff]
    %v197 = vld [vmem:[%s2 + $0x500] sm:$0xff]
    %v198 = vld [vmem:[%s2 + $0x508] sm:$0xff]
    %v199 = vld [vmem:[%s2 + $0x510] sm:$0xff]
    %v200 = vld [vmem:[%s2 + $0x518] sm:$0xff]
    %v201 = vld [vmem:[%s2 + $0x520] sm:$0xff]
    %v202 = vld [vmem:[%s2 + $0x528] sm:$0xff]
    %v203 = vld [vmem:[%s2 + $0x530] sm:$0xff]
    %v204 = vld [vmem:[%s2 + $0x538] sm:$0xff]
    %v205 = vld [vmem:[%s2 + $0x540] sm:$0xff]
    %v206 = vld [vmem:[%s2 + $0x548] sm:$0xff]
    %v207 = vld [vmem:[%s2 + $0x550] sm:$0xff]
    %v208 = vld [vmem:[%s2 + $0x558] sm:$0xff]
    %v209 = vld [vmem:[%s2 + $0x560] sm:$0xff]
    %v210 = vld [vmem:[%s2 + $0x568] sm:$0xff]
    %v211 = vld [vmem:[%s2 + $0x570] sm:$0xff]
    %v212 = vld [vmem:[%s2 + $0x578] sm:$0xff]
    %v213 = vld [vmem:[%s2 + $0x580] sm:$0xff]
    %v214 = vld [vmem:[%s2 + $0x588] sm:$0xff]
    %v215 = vld [vmem:[%s2 + $0x590] sm:$0xff]
    %v216 = vld [vmem:[%s2 + $0x598] sm:$0xff]
    %v217 = vld [vmem:[%s2 + $0x5a0] sm:$0xff]
    %v218 = vld [vmem:[%s2 + $0x5a8] sm:$0xff]
    %v219 = vld [vmem:[%s2 + $0x5b0] sm:$0xff]
    %v220 = vld [vmem:[%s2 + $0x5b8] sm:$0xff]
    %v221 = vld [vmem:[%s2 + $0x5c0] sm:$0xff]
    %v222 = vld [vmem:[%s2 + $0x5c8] sm:$0xff]
    %v223 = vld [vmem:[%s2 + $0x5d0] sm:$0xff]
    %v224 = vld [vmem:[%s2 + $0x5d8] sm:$0xff]
    %v225 = vld [vmem:[%s2 + $0x5e0] sm:$0xff]
    %v226 = vld [vmem:[%s2 + $0x5e8] sm:$0xff]
    %v227 = vld [vmem:[%s2 + $0x5f0] sm:$0xff]
    %v228 = vld [vmem:[%s2 + $0x5f8] sm:$0xff]
    %v229 = vld [vmem:[%s2 + $0x600] sm:$0xff]
    %v230 = vld [vmem:[%s2 + $0x608] sm:$0xff]
    %v231 = vld [vmem:[%s2 + $0x610] sm:$0xff]
    %v232 = vld [vmem:[%s2 + $0x618] sm:$0xff]
    %v233 = vld [vmem:[%s3] sm:$0xf]
    %v234 = vld [vmem:[%s3 + $0x4] sm:$0xf]
    %v235 = vld [vmem:[%s3 + $0x8] sm:$0xf]
    %v236 = vld [vmem:[%s3 + $0xc] sm:$0xf]
    %v237 = vld [vmem:[%s3 + $0x10] sm:$0xf]
    %v238 = vld [vmem:[%s3 + $0x14] sm:$0xf]
    %v239 = vld [vmem:[%s3 + $0x18] sm:$0xf]
    %v240 = vld [vmem:[%s3 + $0x1c] sm:$0xf]
    %v241 = vld [vmem:[%s3 + $0x20] sm:$0xf]
    %v242 = vld [vmem:[%s3 + $0x24] sm:$0xf]
    %v243 = vld [vmem:[%s3 + $0x28] sm:$0xf]
    %v244 = vld [vmem:[%s3 + $0x2c] sm:$0xf]
    %v245 = vld [vmem:[%s3 + $0x30] sm:$0xf]
    %v246 = vld [vmem:[%s3 + $0x34] sm:$0xf]
    %v247 = vld [vmem:[%s3 + $0x38] sm:$0xf]
    %v248 = vld [vmem:[%s3 + $0x3c] sm:$0xf]
    %v249 = vld [vmem:[%s3 + $0x40] sm:$0xf]
    %v250 = vld [vmem:[%s3 + $0x44] sm:$0xf]
    %v251 = vld [vmem:[%s3 + $0x48] sm:$0xf]
    %v252 = vld [vmem:[%s3 + $0x4c] sm:$0xf]
    %v253 = vld [vmem:[%s3 + $0x50] sm:$0xf]
    %v254 = vld [vmem:[%s3 + $0x54] sm:$0xf]
    %v255 = vld [vmem:[%s3 + $0x58] sm:$0xf]
    %v256 = vld [vmem:[%s3 + $0x5c] sm:$0xf]
    %v257 = vld [vmem:[%s3 + $0x60] sm:$0xf]
    %v258 = vld [vmem:[%s3 + $0x64] sm:$0xf]
    %v259 = vld [vmem:[%s3 + $0x68] sm:$0xf]
    %v260 = vld [vmem:[%s3 + $0x6c] sm:$0xf]
    %v261 = vld [vmem:[%s3 + $0x70] sm:$0xf]
    %v262 = vld [vmem:[%s3 + $0x74] sm:$0xf]
    %v263 = vld [vmem:[%s3 + $0x78] sm:$0xf]
    %v264 = vld [vmem:[%s3 + $0x7c] sm:$0xf]
    %v265 = vld [vmem:[%s3 + $0x80] sm:$0xf]
    %v266 = vld [vmem:[%s3 + $0x84] sm:$0xf]
    %v267 = vld [vmem:[%s3 + $0x88] sm:$0xf]
    %v268 = vld [vmem:[%s3 + $0x8c] sm:$0xf]
    %v269 = vld [vmem:[%s3 + $0x90] sm:$0xf]
    %v270 = vld [vmem:[%s3 + $0x94] sm:$0xf]
    %v271 = vld [vmem:[%s3 + $0x98] sm:$0xf]
    %v272 = vld [vmem:[%s3 + $0x9c] sm:$0xf]
    %v273 = vld [vmem:[%s3 + $0xa0] sm:$0xf]
    %v274 = vld [vmem:[%s3 + $0xa4] sm:$0xf]
    %v275 = vld [vmem:[%s3 + $0xa8] sm:$0xf]
    %v276 = vld [vmem:[%s3 + $0xac] sm:$0xf]
    %v277 = vld [vmem:[%s3 + $0xb0] sm:$0xf]
    %v278 = vld [vmem:[%s3 + $0xb4] sm:$0xf]
    %v279 = vld [vmem:[%s3 + $0xb8] sm:$0xf]
    %v280 = vld [vmem:[%s3 + $0xbc] sm:$0xf]
    %v281 = vld [vmem:[%s3 + $0xc0] sm:$0xf]
    %v282 = vld [vmem:[%s3 + $0xc4] sm:$0xf]
    %v283 = vld [vmem:[%s4] sm:$0xff]
    %v284 = vld [vmem:[%s4 + $0x8] sm:$0xff]
    %v285 = vld [vmem:[%s4 + $0x10] sm:$0xff]
    %v286 = vld [vmem:[%s4 + $0x18] sm:$0xff]
    %v287 = vld [vmem:[%s5] sm:$0xff]
    %v288 = vld [vmem:[%s5 + $0x8] sm:$0xff]
    %v289 = vld [vmem:[%s5 + $0x10] sm:$0xff]
    %v290 = vld [vmem:[%s5 + $0x18] sm:$0xf]
    %v291 = vld [vmem:[%s5 + $0x1c] sm:$0xff]
    %v292 = vld [vmem:[%s5 + $0x24] sm:$0xff]
    %v293 = vld [vmem:[%s5 + $0x2c] sm:$0xff]
    %v294 = vld [vmem:[%s5 + $0x34] sm:$0xf]
    %v295 = vld [vmem:[%s5 + $0x38] sm:$0xff]
    %v296 = vld [vmem:[%s5 + $0x40] sm:$0xff]
    %v297 = vld [vmem:[%s5 + $0x48] sm:$0xff]
    %v298 = vld [vmem:[%s5 + $0x50] sm:$0xf]
    %v299 = vld [vmem:[%s5 + $0x54] sm:$0xff]
    %v300 = vld [vmem:[%s5 + $0x5c] sm:$0xff]
    %v301 = vld [vmem:[%s5 + $0x64] sm:$0xff]
    %v302 = vld [vmem:[%s5 + $0x6c] sm:$0xf]
    %v303 = vld [vmem:[%s5 + $0x70] sm:$0xff]
    %v304 = vld [vmem:[%s5 + $0x78] sm:$0xff]
    %v305 = vld [vmem:[%s5 + $0x80] sm:$0xff]
    %v306 = vld [vmem:[%s5 + $0x88] sm:$0xf]
    %v307 = vld [vmem:[%s5 + $0x8c] sm:$0xff]
    %v308 = vld [vmem:[%s5 + $0x94] sm:$0xff]
    %v309 = vld [vmem:[%s5 + $0x9c] sm:$0xff]
    %v310 = vld [vmem:[%s5 + $0xa4] sm:$0xf]
    %v311 = vld [vmem:[%s5 + $0xa8] sm:$0xff]
    %v312 = vld [vmem:[%s5 + $0xb0] sm:$0xff]
    %v313 = vld [vmem:[%s5 + $0xb8] sm:$0xff]
    %v314 = vld [vmem:[%s5 + $0xc0] sm:$0xf]
    %v315 = vld [vmem:[%s5 + $0xc4] sm:$0xff]
    %v316 = vld [vmem:[%s5 + $0xcc] sm:$0xff]
    %v317 = vld [vmem:[%s5 + $0xd4] sm:$0xff]
    %v318 = vld [vmem:[%s5 + $0xdc] sm:$0xf]
    %v319 = vld [vmem:[%s5 + $0xe0] sm:$0xff]
    %v320 = vld [vmem:[%s5 + $0xe8] sm:$0xff]
    %v321 = vld [vmem:[%s5 + $0xf0] sm:$0xff]
    %v322 = vld [vmem:[%s5 + $0xf8] sm:$0xf]
    %v323 = vld [vmem:[%s5 + $0xfc] sm:$0xff]
    %v324 = vld [vmem:[%s5 + $0x104] sm:$0xff]
    %v325 = vld [vmem:[%s5 + $0x10c] sm:$0xff]
    %v326 = vld [vmem:[%s5 + $0x114] sm:$0xf]
    %v327 = vld [vmem:[%s5 + $0x118] sm:$0xff]
    %v328 = vld [vmem:[%s5 + $0x120] sm:$0xff]
    %v329 = vld [vmem:[%s5 + $0x128] sm:$0xff]
    %v330 = vld [vmem:[%s5 + $0x130] sm:$0xf]
    %v331 = vld [vmem:[%s5 + $0x134] sm:$0xff]
    %v332 = vld [vmem:[%s5 + $0x13c] sm:$0xff]
    %v333 = vld [vmem:[%s5 + $0x144] sm:$0xff]
    %v334 = vld [vmem:[%s5 + $0x14c] sm:$0xf]
    %v335 = vld [vmem:[%s5 + $0x150] sm:$0xff]
    %v336 = vld [vmem:[%s5 + $0x158] sm:$0xff]
    %v337 = vld [vmem:[%s5 + $0x160] sm:$0xff]
    %v338 = vld [vmem:[%s5 + $0x168] sm:$0xf]
    %v339 = vld [vmem:[%s5 + $0x16c] sm:$0xff]
    %v340 = vld [vmem:[%s5 + $0x174] sm:$0xff]
    %v341 = vld [vmem:[%s5 + $0x17c] sm:$0xff]
    %v342 = vld [vmem:[%s5 + $0x184] sm:$0xf]
    %v343 = vld [vmem:[%s5 + $0x188] sm:$0xff]
    %v344 = vld [vmem:[%s5 + $0x190] sm:$0xff]
    %v345 = vld [vmem:[%s5 + $0x198] sm:$0xff]
    %v346 = vld [vmem:[%s5 + $0x1a0] sm:$0xf]
    %v347 = vld [vmem:[%s5 + $0x1a4] sm:$0xff]
    %v348 = vld [vmem:[%s5 + $0x1ac] sm:$0xff]
    %v349 = vld [vmem:[%s5 + $0x1b4] sm:$0xff]
    %v350 = vld [vmem:[%s5 + $0x1bc] sm:$0xf]
    %v351 = vld [vmem:[%s5 + $0x1c0] sm:$0xff]
    %v352 = vld [vmem:[%s5 + $0x1c8] sm:$0xff]
    %v353 = vld [vmem:[%s5 + $0x1d0] sm:$0xff]
    %v354 = vld [vmem:[%s5 + $0x1d8] sm:$0xf]
    %v355 = vld [vmem:[%s5 + $0x1dc] sm:$0xff]
    %v356 = vld [vmem:[%s5 + $0x1e4] sm:$0xff]
    %v357 = vld [vmem:[%s5 + $0x1ec] sm:$0xff]
    %v358 = vld [vmem:[%s5 + $0x1f4] sm:$0xf]
    %v359 = vld [vmem:[%s5 + $0x1f8] sm:$0xff]
    %v360 = vld [vmem:[%s5 + $0x200] sm:$0xff]
    %v361 = vld [vmem:[%s5 + $0x208] sm:$0xff]
    %v362 = vld [vmem:[%s5 + $0x210] sm:$0xf]
    %v363 = vld [vmem:[%s5 + $0x214] sm:$0xff]
    %v364 = vld [vmem:[%s5 + $0x21c] sm:$0xff]
    %v365 = vld [vmem:[%s5 + $0x224] sm:$0xff]
    %v366 = vld [vmem:[%s5 + $0x22c] sm:$0xf]
    %v367 = vld [vmem:[%s5 + $0x230] sm:$0xff]
    %v368 = vld [vmem:[%s5 + $0x238] sm:$0xff]
    %v369 = vld [vmem:[%s5 + $0x240] sm:$0xff]
    %v370 = vld [vmem:[%s5 + $0x248] sm:$0xf]
    %v371 = vld [vmem:[%s5 + $0x24c] sm:$0xff]
    %v372 = vld [vmem:[%s5 + $0x254] sm:$0xff]
    %v373 = vld [vmem:[%s5 + $0x25c] sm:$0xff]
    %v374 = vld [vmem:[%s5 + $0x264] sm:$0xf]
    %v375 = vld [vmem:[%s5 + $0x268] sm:$0xff]
    %v376 = vld [vmem:[%s5 + $0x270] sm:$0xff]
    %v377 = vld [vmem:[%s5 + $0x278] sm:$0xff]
    %v378 = vld [vmem:[%s5 + $0x280] sm:$0xf]
    %v379 = vld [vmem:[%s5 + $0x284] sm:$0xff]
    %v380 = vld [vmem:[%s5 + $0x28c] sm:$0xff]
    %v381 = vld [vmem:[%s5 + $0x294] sm:$0xff]
    %v382 = vld [vmem:[%s5 + $0x29c] sm:$0xf]
    %v383 = vld [vmem:[%s5 + $0x2a0] sm:$0xff]
    %v384 = vld [vmem:[%s5 + $0x2a8] sm:$0xff]
    %v385 = vld [vmem:[%s5 + $0x2b0] sm:$0xff]
    %v386 = vld [vmem:[%s5 + $0x2b8] sm:$0xf]
    %v387 = vld [vmem:[%s5 + $0x2bc] sm:$0xff]
    %v388 = vld [vmem:[%s5 + $0x2c4] sm:$0xff]
    %v389 = vld [vmem:[%s5 + $0x2cc] sm:$0xff]
    %v390 = vld [vmem:[%s5 + $0x2d4] sm:$0xf]
    %v391 = vld [vmem:[%s5 + $0x2d8] sm:$0xff]
    %v392 = vld [vmem:[%s5 + $0x2e0] sm:$0xff]
    %v393 = vld [vmem:[%s5 + $0x2e8] sm:$0xff]
    %v394 = vld [vmem:[%s5 + $0x2f0] sm:$0xf]
    %v395 = vld [vmem:[%s5 + $0x2f4] sm:$0xff]
    %v396 = vld [vmem:[%s5 + $0x2fc] sm:$0xff]
    %v397 = vld [vmem:[%s5 + $0x304] sm:$0xff]
    %v398 = vld [vmem:[%s5 + $0x30c] sm:$0xf]
    %v399 = vld [vmem:[%s5 + $0x310] sm:$0xff]
    %v400 = vld [vmem:[%s5 + $0x318] sm:$0xff]
    %v401 = vld [vmem:[%s5 + $0x320] sm:$0xff]
    %v402 = vld [vmem:[%s5 + $0x328] sm:$0xf]
    %v403 = vld [vmem:[%s5 + $0x32c] sm:$0xff]
    %v404 = vld [vmem:[%s5 + $0x334] sm:$0xff]
    %v405 = vld [vmem:[%s5 + $0x33c] sm:$0xff]
    %v406 = vld [vmem:[%s5 + $0x344] sm:$0xf]
    %v407 = vld [vmem:[%s5 + $0x348] sm:$0xff]
    %v408 = vld [vmem:[%s5 + $0x350] sm:$0xff]
    %v409 = vld [vmem:[%s5 + $0x358] sm:$0xff]
    %v410 = vld [vmem:[%s5 + $0x360] sm:$0xf]
    %v411 = vld [vmem:[%s5 + $0x364] sm:$0xff]
    %v412 = vld [vmem:[%s5 + $0x36c] sm:$0xff]
    %v413 = vld [vmem:[%s5 + $0x374] sm:$0xff]
    %v414 = vld [vmem:[%s5 + $0x37c] sm:$0xf]
    %v415 = vld [vmem:[%s5 + $0x380] sm:$0xff]
    %v416 = vld [vmem:[%s5 + $0x388] sm:$0xff]
    %v417 = vld [vmem:[%s5 + $0x390] sm:$0xff]
    %v418 = vld [vmem:[%s5 + $0x398] sm:$0xf]
    %v419 = vld [vmem:[%s5 + $0x39c] sm:$0xff]
    %v420 = vld [vmem:[%s5 + $0x3a4] sm:$0xff]
    %v421 = vld [vmem:[%s5 + $0x3ac] sm:$0xff]
    %v422 = vld [vmem:[%s5 + $0x3b4] sm:$0xf]
    %v423 = vld [vmem:[%s5 + $0x3b8] sm:$0xff]
    %v424 = vld [vmem:[%s5 + $0x3c0] sm:$0xff]
    %v425 = vld [vmem:[%s5 + $0x3c8] sm:$0xff]
    %v426 = vld [vmem:[%s5 + $0x3d0] sm:$0xf]
    %v427 = vld [vmem:[%s5 + $0x3d4] sm:$0xff]
    %v428 = vld [vmem:[%s5 + $0x3dc] sm:$0xff]
    %v429 = vld [vmem:[%s5 + $0x3e4] sm:$0xff]
    %v430 = vld [vmem:[%s5 + $0x3ec] sm:$0xf]
    %v431 = vld [vmem:[%s5 + $0x3f0] sm:$0xff]
    %v432 = vld [vmem:[%s5 + $0x3f8] sm:$0xff]
    %v433 = vld [vmem:[%s5 + $0x400] sm:$0xff]
    %v434 = vld [vmem:[%s5 + $0x408] sm:$0xf]
    %v435 = vld [vmem:[%s5 + $0x40c] sm:$0xff]
    %v436 = vld [vmem:[%s5 + $0x414] sm:$0xff]
    %v437 = vld [vmem:[%s5 + $0x41c] sm:$0xff]
    %v438 = vld [vmem:[%s5 + $0x424] sm:$0xf]
    %v439 = vld [vmem:[%s5 + $0x428] sm:$0xff]
    %v440 = vld [vmem:[%s5 + $0x430] sm:$0xff]
    %v441 = vld [vmem:[%s5 + $0x438] sm:$0xff]
    %v442 = vld [vmem:[%s5 + $0x440] sm:$0xf]
    %v443 = vld [vmem:[%s5 + $0x444] sm:$0xff]
    %v444 = vld [vmem:[%s5 + $0x44c] sm:$0xff]
    %v445 = vld [vmem:[%s5 + $0x454] sm:$0xff]
    %v446 = vld [vmem:[%s5 + $0x45c] sm:$0xf]
    %v447 = vld [vmem:[%s5 + $0x460] sm:$0xff]
    %v448 = vld [vmem:[%s5 + $0x468] sm:$0xff]
    %v449 = vld [vmem:[%s5 + $0x470] sm:$0xff]
    %v450 = vld [vmem:[%s5 + $0x478] sm:$0xf]
    %v451 = vld [vmem:[%s5 + $0x47c] sm:$0xff]
    %v452 = vld [vmem:[%s5 + $0x484] sm:$0xff]
    %v453 = vld [vmem:[%s5 + $0x48c] sm:$0xff]
    %v454 = vld [vmem:[%s5 + $0x494] sm:$0xf]
    %v455 = vld [vmem:[%s5 + $0x498] sm:$0xff]
    %v456 = vld [vmem:[%s5 + $0x4a0] sm:$0xff]
    %v457 = vld [vmem:[%s5 + $0x4a8] sm:$0xff]
    %v458 = vld [vmem:[%s5 + $0x4b0] sm:$0xf]
    %v459 = vld [vmem:[%s5 + $0x4b4] sm:$0xff]
    %v460 = vld [vmem:[%s5 + $0x4bc] sm:$0xff]
    %v461 = vld [vmem:[%s5 + $0x4c4] sm:$0xff]
    %v462 = vld [vmem:[%s5 + $0x4cc] sm:$0xf]
    %v463 = vld [vmem:[%s5 + $0x4d0] sm:$0xff]
    %v464 = vld [vmem:[%s5 + $0x4d8] sm:$0xff]
    %v465 = vld [vmem:[%s5 + $0x4e0] sm:$0xff]
    %v466 = vld [vmem:[%s5 + $0x4e8] sm:$0xf]
    %v467 = vld [vmem:[%s5 + $0x4ec] sm:$0xff]
    %v468 = vld [vmem:[%s5 + $0x4f4] sm:$0xff]
    %v469 = vld [vmem:[%s5 + $0x4fc] sm:$0xff]
    %v470 = vld [vmem:[%s5 + $0x504] sm:$0xf]
    %v471 = vld [vmem:[%s5 + $0x508] sm:$0xff]
    %v472 = vld [vmem:[%s5 + $0x510] sm:$0xff]
    %v473 = vld [vmem:[%s5 + $0x518] sm:$0xff]
    %v474 = vld [vmem:[%s5 + $0x520] sm:$0xf]
    %v475 = vld [vmem:[%s5 + $0x524] sm:$0xff]
    %v476 = vld [vmem:[%s5 + $0x52c] sm:$0xff]
    %v477 = vld [vmem:[%s5 + $0x534] sm:$0xff]
    %v478 = vld [vmem:[%s5 + $0x53c] sm:$0xf]
    %v479 = vld [vmem:[%s5 + $0x540] sm:$0xff]
    %v480 = vld [vmem:[%s5 + $0x548] sm:$0xff]
    %v481 = vld [vmem:[%s5 + $0x550] sm:$0xff]
    %v482 = vld [vmem:[%s5 + $0x558] sm:$0xf]
    %v483 = vld [vmem:[%s5 + $0x55c] sm:$0xff]
    %v484 = vld [vmem:[%s5 + $0x564] sm:$0xff]
    %v485 = vld [vmem:[%s5 + $0x56c] sm:$0xff]
    %v486 = vld [vmem:[%s5 + $0x574] sm:$0xf]
    %v487 = vld [vmem:[%s0] sm:$0xff]
    %v488 = vld [vmem:[%s0 + $0x8] sm:$0xff]
    %v489 = vld [vmem:[%s0 + $0x10] sm:$0xff]
    %v490 = vld [vmem:[%s0 + $0x18] sm:$0xf]
    %v491 = vld [vmem:[%s0 + $0x1c] sm:$0xff]
    %v492 = vld [vmem:[%s0 + $0x24] sm:$0xff]
    %v493 = vld [vmem:[%s0 + $0x2c] sm:$0xff]
    %v494 = vld [vmem:[%s0 + $0x34] sm:$0xf]
    %v495 = vld [vmem:[%s1] sm:$0xff]
    %v496 = vld [vmem:[%s1 + $0x8] sm:$0xff]
    %v498 = vperm.slane %v31, 0
    %v499 = vperm.slane %v31, 1
    %v500 = vperm.slane %v31, 2
    %v501 = vperm.slane %v31, 3
    %v514 = vunpack.c.l.b16 %v487
    %v515 = vunpack.c.h.b16 %v487
    %v516 = vunpack.c.l.b16 %v488
    %v517 = vunpack.c.h.b16 %v488
    %v518 = vunpack.c.l.b16 %v489
    %v519 = vunpack.c.h.b16 %v489
    %v520 = vunpack.c.l.b16 %v490
    %v521 = vunpack.c.l.b16 %v491
    %v522 = vunpack.c.h.b16 %v491
    %v523 = vunpack.c.l.b16 %v492
    %v524 = vunpack.c.h.b16 %v492
    %v525 = vunpack.c.l.b16 %v493
    %v526 = vunpack.c.h.b16 %v493
    %v527 = vunpack.c.l.b16 %v494
    %v528 = vpack.c.b16 %v521, %v514
    %v529 = vpack.c.b16 %v522, %v515
    %v530 = vpack.c.b16 %v523, %v516
    %v531 = vpack.c.b16 %v524, %v517
    %v532 = vpack.c.b16 %v525, %v518
    %v533 = vpack.c.b16 %v526, %v519
    %v534 = vpack.c.b16 %v527, %v520
    %v737 = vunpack.c.l.b16 %v37
    %v738 = vunpack.c.h.b16 %v37
    %v739 = vunpack.c.l.b16 %v38
    %v740 = vunpack.c.h.b16 %v38
    %v741 = vunpack.c.l.b16 %v39
    %v742 = vunpack.c.h.b16 %v39
    %v743 = vunpack.c.l.b16 %v40
    %v744 = vunpack.c.h.b16 %v40
    %v745 = vunpack.c.l.b16 %v41
    %v746 = vunpack.c.h.b16 %v41
    %v747 = vunpack.c.l.b16 %v42
    %v748 = vunpack.c.h.b16 %v42
    %v749 = vunpack.c.l.b16 %v43
    %v750 = vunpack.c.h.b16 %v43
    %v751 = vunpack.c.l.b16 %v44
    %v752 = vunpack.c.h.b16 %v44
    %v753 = vunpack.c.l.b16 %v45
    %v754 = vunpack.c.h.b16 %v45
    %v755 = vunpack.c.l.b16 %v46
    %v756 = vunpack.c.h.b16 %v46
    %v757 = vunpack.c.l.b16 %v47
    %v758 = vunpack.c.h.b16 %v47
    %v759 = vunpack.c.l.b16 %v48
    %v760 = vunpack.c.h.b16 %v48
    %v761 = vunpack.c.l.b16 %v49
    %v762 = vunpack.c.h.b16 %v49
    %v763 = vunpack.c.l.b16 %v50
    %v764 = vunpack.c.h.b16 %v50
    %v765 = vunpack.c.l.b16 %v51
    %v766 = vunpack.c.h.b16 %v51
    %v767 = vunpack.c.l.b16 %v52
    %v768 = vunpack.c.h.b16 %v52
    %v769 = vunpack.c.l.b16 %v53
    %v770 = vunpack.c.h.b16 %v53
    %v771 = vunpack.c.l.b16 %v54
    %v772 = vunpack.c.h.b16 %v54
    %v773 = vunpack.c.l.b16 %v55
    %v774 = vunpack.c.h.b16 %v55
    %v775 = vunpack.c.l.b16 %v56
    %v776 = vunpack.c.h.b16 %v56
    %v777 = vunpack.c.l.b16 %v57
    %v778 = vunpack.c.h.b16 %v57
    %v779 = vunpack.c.l.b16 %v58
    %v780 = vunpack.c.h.b16 %v58
    %v781 = vunpack.c.l.b16 %v59
    %v782 = vunpack.c.h.b16 %v59
    %v783 = vunpack.c.l.b16 %v60
    %v784 = vunpack.c.h.b16 %v60
    %v785 = vunpack.c.l.b16 %v61
    %v786 = vunpack.c.h.b16 %v61
    %v787 = vunpack.c.l.b16 %v62
    %v788 = vunpack.c.h.b16 %v62
    %v789 = vunpack.c.l.b16 %v63
    %v790 = vunpack.c.h.b16 %v63
    %v791 = vunpack.c.l.b16 %v64
    %v792 = vunpack.c.h.b16 %v64
    %v793 = vunpack.c.l.b16 %v65
    %v794 = vunpack.c.h.b16 %v65
    %v795 = vunpack.c.l.b16 %v66
    %v796 = vunpack.c.h.b16 %v66
    %v797 = vunpack.c.l.b16 %v67
    %v798 = vunpack.c.h.b16 %v67
    %v799 = vunpack.c.l.b16 %v68
    %v800 = vunpack.c.h.b16 %v68
    %v801 = vunpack.c.l.b16 %v69
    %v802 = vunpack.c.h.b16 %v69
    %v803 = vunpack.c.l.b16 %v70
    %v804 = vunpack.c.h.b16 %v70
    %v805 = vunpack.c.l.b16 %v71
    %v806 = vunpack.c.h.b16 %v71
    %v807 = vunpack.c.l.b16 %v72
    %v808 = vunpack.c.h.b16 %v72
    %v809 = vunpack.c.l.b16 %v73
    %v810 = vunpack.c.h.b16 %v73
    %v811 = vunpack.c.l.b16 %v74
    %v812 = vunpack.c.h.b16 %v74
    %v813 = vunpack.c.l.b16 %v75
    %v814 = vunpack.c.h.b16 %v75
    %v815 = vunpack.c.l.b16 %v76
    %v816 = vunpack.c.h.b16 %v76
    %v817 = vunpack.c.l.b16 %v77
    %v818 = vunpack.c.h.b16 %v77
    %v819 = vunpack.c.l.b16 %v78
    %v820 = vunpack.c.h.b16 %v78
    %v821 = vunpack.c.l.b16 %v79
    %v822 = vunpack.c.h.b16 %v79
    %v823 = vunpack.c.l.b16 %v80
    %v824 = vunpack.c.h.b16 %v80
    %v825 = vunpack.c.l.b16 %v81
    %v826 = vunpack.c.h.b16 %v81
    %v827 = vunpack.c.l.b16 %v82
    %v828 = vunpack.c.h.b16 %v82
    %v829 = vunpack.c.l.b16 %v83
    %v830 = vunpack.c.h.b16 %v83
    %v831 = vunpack.c.l.b16 %v84
    %v832 = vunpack.c.h.b16 %v84
    %v833 = vunpack.c.l.b16 %v85
    %v834 = vunpack.c.h.b16 %v85
    %v835 = vunpack.c.l.b16 %v86
    %v836 = vunpack.c.h.b16 %v86
    %v837 = vunpack.c.l.b16 %v87
    %v838 = vunpack.c.h.b16 %v87
    %v839 = vunpack.c.l.b16 %v88
    %v840 = vunpack.c.h.b16 %v88
    %v841 = vunpack.c.l.b16 %v89
    %v842 = vunpack.c.h.b16 %v89
    %v843 = vunpack.c.l.b16 %v90
    %v844 = vunpack.c.h.b16 %v90
    %v845 = vunpack.c.l.b16 %v91
    %v846 = vunpack.c.h.b16 %v91
    %v847 = vunpack.c.l.b16 %v92
    %v848 = vunpack.c.h.b16 %v92
    %v849 = vunpack.c.l.b16 %v93
    %v850 = vunpack.c.h.b16 %v93
    %v851 = vunpack.c.l.b16 %v94
    %v852 = vunpack.c.h.b16 %v94
    %v853 = vunpack.c.l.b16 %v95
    %v854 = vunpack.c.h.b16 %v95
    %v855 = vunpack.c.l.b16 %v96
    %v856 = vunpack.c.h.b16 %v96
    %v857 = vunpack.c.l.b16 %v97
    %v858 = vunpack.c.h.b16 %v97
    %v859 = vunpack.c.l.b16 %v98
    %v860 = vunpack.c.h.b16 %v98
    %v861 = vunpack.c.l.b16 %v99
    %v862 = vunpack.c.h.b16 %v99
    %v863 = vunpack.c.l.b16 %v100
    %v864 = vunpack.c.h.b16 %v100
    %v865 = vunpack.c.l.b16 %v101
    %v866 = vunpack.c.h.b16 %v101
    %v867 = vunpack.c.l.b16 %v102
    %v868 = vunpack.c.h.b16 %v102
    %v869 = vunpack.c.l.b16 %v103
    %v870 = vunpack.c.h.b16 %v103
    %v871 = vunpack.c.l.b16 %v104
    %v872 = vunpack.c.h.b16 %v104
    %v873 = vunpack.c.l.b16 %v105
    %v874 = vunpack.c.h.b16 %v105
    %v875 = vunpack.c.l.b16 %v106
    %v876 = vunpack.c.h.b16 %v106
    %v877 = vunpack.c.l.b16 %v107
    %v878 = vunpack.c.h.b16 %v107
    %v879 = vunpack.c.l.b16 %v108
    %v880 = vunpack.c.h.b16 %v108
    %v881 = vunpack.c.l.b16 %v109
    %v882 = vunpack.c.h.b16 %v109
    %v883 = vunpack.c.l.b16 %v110
    %v884 = vunpack.c.h.b16 %v110
    %v885 = vunpack.c.l.b16 %v111
    %v886 = vunpack.c.h.b16 %v111
    %v887 = vunpack.c.l.b16 %v112
    %v888 = vunpack.c.h.b16 %v112
    %v889 = vunpack.c.l.b16 %v113
    %v890 = vunpack.c.h.b16 %v113
    %v891 = vunpack.c.l.b16 %v114
    %v892 = vunpack.c.h.b16 %v114
    %v893 = vunpack.c.l.b16 %v115
    %v894 = vunpack.c.h.b16 %v115
    %v895 = vunpack.c.l.b16 %v116
    %v896 = vunpack.c.h.b16 %v116
    %v897 = vunpack.c.l.b16 %v117
    %v898 = vunpack.c.h.b16 %v117
    %v899 = vunpack.c.l.b16 %v118
    %v900 = vunpack.c.h.b16 %v118
    %v901 = vunpack.c.l.b16 %v119
    %v902 = vunpack.c.h.b16 %v119
    %v903 = vunpack.c.l.b16 %v120
    %v904 = vunpack.c.h.b16 %v120
    %v905 = vunpack.c.l.b16 %v121
    %v906 = vunpack.c.h.b16 %v121
    %v907 = vunpack.c.l.b16 %v122
    %v908 = vunpack.c.h.b16 %v122
    %v909 = vunpack.c.l.b16 %v123
    %v910 = vunpack.c.h.b16 %v123
    %v911 = vunpack.c.l.b16 %v124
    %v912 = vunpack.c.h.b16 %v124
    %v913 = vunpack.c.l.b16 %v125
    %v914 = vunpack.c.h.b16 %v125
    %v915 = vunpack.c.l.b16 %v126
    %v916 = vunpack.c.h.b16 %v126
    %v917 = vunpack.c.l.b16 %v127
    %v918 = vunpack.c.h.b16 %v127
    %v919 = vunpack.c.l.b16 %v128
    %v920 = vunpack.c.h.b16 %v128
    %v921 = vunpack.c.l.b16 %v129
    %v922 = vunpack.c.h.b16 %v129
    %v923 = vunpack.c.l.b16 %v130
    %v924 = vunpack.c.h.b16 %v130
    %v925 = vunpack.c.l.b16 %v131
    %v926 = vunpack.c.h.b16 %v131
    %v927 = vunpack.c.l.b16 %v132
    %v928 = vunpack.c.h.b16 %v132
    %v929 = vunpack.c.l.b16 %v133
    %v930 = vunpack.c.h.b16 %v133
    %v931 = vunpack.c.l.b16 %v134
    %v932 = vunpack.c.h.b16 %v134
    %v933 = vunpack.c.l.b16 %v135
    %v934 = vunpack.c.h.b16 %v135
    %v935 = vunpack.c.l.b16 %v136
    %v936 = vunpack.c.h.b16 %v136
    %v937 = vunpack.c.l.b16 %v137
    %v938 = vunpack.c.h.b16 %v137
    %v939 = vunpack.c.l.b16 %v138
    %v940 = vunpack.c.h.b16 %v138
    %v941 = vunpack.c.l.b16 %v139
    %v942 = vunpack.c.h.b16 %v139
    %v943 = vunpack.c.l.b16 %v140
    %v944 = vunpack.c.h.b16 %v140
    %v945 = vunpack.c.l.b16 %v141
    %v946 = vunpack.c.h.b16 %v141
    %v947 = vunpack.c.l.b16 %v142
    %v948 = vunpack.c.h.b16 %v142
    %v949 = vunpack.c.l.b16 %v143
    %v950 = vunpack.c.h.b16 %v143
    %v951 = vunpack.c.l.b16 %v144
    %v952 = vunpack.c.h.b16 %v144
    %v953 = vunpack.c.l.b16 %v145
    %v954 = vunpack.c.h.b16 %v145
    %v955 = vunpack.c.l.b16 %v146
    %v956 = vunpack.c.h.b16 %v146
    %v957 = vunpack.c.l.b16 %v147
    %v958 = vunpack.c.h.b16 %v147
    %v959 = vunpack.c.l.b16 %v148
    %v960 = vunpack.c.h.b16 %v148
    %v961 = vunpack.c.l.b16 %v149
    %v962 = vunpack.c.h.b16 %v149
    %v963 = vunpack.c.l.b16 %v150
    %v964 = vunpack.c.h.b16 %v150
    %v965 = vunpack.c.l.b16 %v151
    %v966 = vunpack.c.h.b16 %v151
    %v967 = vunpack.c.l.b16 %v152
    %v968 = vunpack.c.h.b16 %v152
    %v969 = vunpack.c.l.b16 %v153
    %v970 = vunpack.c.h.b16 %v153
    %v971 = vunpack.c.l.b16 %v154
    %v972 = vunpack.c.h.b16 %v154
    %v973 = vunpack.c.l.b16 %v155
    %v974 = vunpack.c.h.b16 %v155
    %v975 = vunpack.c.l.b16 %v156
    %v976 = vunpack.c.h.b16 %v156
    %v977 = vunpack.c.l.b16 %v157
    %v978 = vunpack.c.h.b16 %v157
    %v979 = vunpack.c.l.b16 %v158
    %v980 = vunpack.c.h.b16 %v158
    %v981 = vunpack.c.l.b16 %v159
    %v982 = vunpack.c.h.b16 %v159
    %v983 = vunpack.c.l.b16 %v160
    %v984 = vunpack.c.h.b16 %v160
    %v985 = vunpack.c.l.b16 %v161
    %v986 = vunpack.c.h.b16 %v161
    %v987 = vunpack.c.l.b16 %v162
    %v988 = vunpack.c.h.b16 %v162
    %v989 = vunpack.c.l.b16 %v163
    %v990 = vunpack.c.h.b16 %v163
    %v991 = vunpack.c.l.b16 %v164
    %v992 = vunpack.c.h.b16 %v164
    %v993 = vunpack.c.l.b16 %v165
    %v994 = vunpack.c.h.b16 %v165
    %v995 = vunpack.c.l.b16 %v166
    %v996 = vunpack.c.h.b16 %v166
    %v997 = vunpack.c.l.b16 %v167
    %v998 = vunpack.c.h.b16 %v167
    %v999 = vunpack.c.l.b16 %v168
    %v1000 = vunpack.c.h.b16 %v168
    %v1001 = vunpack.c.l.b16 %v169
    %v1002 = vunpack.c.h.b16 %v169
    %v1003 = vunpack.c.l.b16 %v170
    %v1004 = vunpack.c.h.b16 %v170
    %v1005 = vunpack.c.l.b16 %v171
    %v1006 = vunpack.c.h.b16 %v171
    %v1007 = vunpack.c.l.b16 %v172
    %v1008 = vunpack.c.h.b16 %v172
    %v1009 = vunpack.c.l.b16 %v173
    %v1010 = vunpack.c.h.b16 %v173
    %v1011 = vunpack.c.l.b16 %v174
    %v1012 = vunpack.c.h.b16 %v174
    %v1013 = vunpack.c.l.b16 %v175
    %v1014 = vunpack.c.h.b16 %v175
    %v1015 = vunpack.c.l.b16 %v176
    %v1016 = vunpack.c.h.b16 %v176
    %v1017 = vunpack.c.l.b16 %v177
    %v1018 = vunpack.c.h.b16 %v177
    %v1019 = vunpack.c.l.b16 %v178
    %v1020 = vunpack.c.h.b16 %v178
    %v1021 = vunpack.c.l.b16 %v179
    %v1022 = vunpack.c.h.b16 %v179
    %v1023 = vunpack.c.l.b16 %v180
    %v1024 = vunpack.c.h.b16 %v180
    %v1025 = vunpack.c.l.b16 %v181
    %v1026 = vunpack.c.h.b16 %v181
    %v1027 = vunpack.c.l.b16 %v182
    %v1028 = vunpack.c.h.b16 %v182
    %v1029 = vunpack.c.l.b16 %v183
    %v1030 = vunpack.c.h.b16 %v183
    %v1031 = vunpack.c.l.b16 %v184
    %v1032 = vunpack.c.h.b16 %v184
    %v1033 = vunpack.c.l.b16 %v185
    %v1034 = vunpack.c.h.b16 %v185
    %v1035 = vunpack.c.l.b16 %v186
    %v1036 = vunpack.c.h.b16 %v186
    %v1037 = vunpack.c.l.b16 %v187
    %v1038 = vunpack.c.h.b16 %v187
    %v1039 = vunpack.c.l.b16 %v188
    %v1040 = vunpack.c.h.b16 %v188
    %v1041 = vunpack.c.l.b16 %v189
    %v1042 = vunpack.c.h.b16 %v189
    %v1043 = vunpack.c.l.b16 %v190
    %v1044 = vunpack.c.h.b16 %v190
    %v1045 = vunpack.c.l.b16 %v191
    %v1046 = vunpack.c.h.b16 %v191
    %v1047 = vunpack.c.l.b16 %v192
    %v1048 = vunpack.c.h.b16 %v192
    %v1049 = vunpack.c.l.b16 %v193
    %v1050 = vunpack.c.h.b16 %v193
    %v1051 = vunpack.c.l.b16 %v194
    %v1052 = vunpack.c.h.b16 %v194
    %v1053 = vunpack.c.l.b16 %v195
    %v1054 = vunpack.c.h.b16 %v195
    %v1055 = vunpack.c.l.b16 %v196
    %v1056 = vunpack.c.h.b16 %v196
    %v1057 = vunpack.c.l.b16 %v197
    %v1058 = vunpack.c.h.b16 %v197
    %v1059 = vunpack.c.l.b16 %v198
    %v1060 = vunpack.c.h.b16 %v198
    %v1061 = vunpack.c.l.b16 %v199
    %v1062 = vunpack.c.h.b16 %v199
    %v1063 = vunpack.c.l.b16 %v200
    %v1064 = vunpack.c.h.b16 %v200
    %v1065 = vunpack.c.l.b16 %v201
    %v1066 = vunpack.c.h.b16 %v201
    %v1067 = vunpack.c.l.b16 %v202
    %v1068 = vunpack.c.h.b16 %v202
    %v1069 = vunpack.c.l.b16 %v203
    %v1070 = vunpack.c.h.b16 %v203
    %v1071 = vunpack.c.l.b16 %v204
    %v1072 = vunpack.c.h.b16 %v204
    %v1073 = vunpack.c.l.b16 %v205
    %v1074 = vunpack.c.h.b16 %v205
    %v1075 = vunpack.c.l.b16 %v206
    %v1076 = vunpack.c.h.b16 %v206
    %v1077 = vunpack.c.l.b16 %v207
    %v1078 = vunpack.c.h.b16 %v207
    %v1079 = vunpack.c.l.b16 %v208
    %v1080 = vunpack.c.h.b16 %v208
    %v1081 = vunpack.c.l.b16 %v209
    %v1082 = vunpack.c.h.b16 %v209
    %v1083 = vunpack.c.l.b16 %v210
    %v1084 = vunpack.c.h.b16 %v210
    %v1085 = vunpack.c.l.b16 %v211
    %v1086 = vunpack.c.h.b16 %v211
    %v1087 = vunpack.c.l.b16 %v212
    %v1088 = vunpack.c.h.b16 %v212
    %v1089 = vunpack.c.l.b16 %v213
    %v1090 = vunpack.c.h.b16 %v213
    %v1091 = vunpack.c.l.b16 %v214
    %v1092 = vunpack.c.h.b16 %v214
    %v1093 = vunpack.c.l.b16 %v215
    %v1094 = vunpack.c.h.b16 %v215
    %v1095 = vunpack.c.l.b16 %v216
    %v1096 = vunpack.c.h.b16 %v216
    %v1097 = vunpack.c.l.b16 %v217
    %v1098 = vunpack.c.h.b16 %v217
    %v1099 = vunpack.c.l.b16 %v218
    %v1100 = vunpack.c.h.b16 %v218
    %v1101 = vunpack.c.l.b16 %v219
    %v1102 = vunpack.c.h.b16 %v219
    %v1103 = vunpack.c.l.b16 %v220
    %v1104 = vunpack.c.h.b16 %v220
    %v1105 = vunpack.c.l.b16 %v221
    %v1106 = vunpack.c.h.b16 %v221
    %v1107 = vunpack.c.l.b16 %v222
    %v1108 = vunpack.c.h.b16 %v222
    %v1109 = vunpack.c.l.b16 %v223
    %v1110 = vunpack.c.h.b16 %v223
    %v1111 = vunpack.c.l.b16 %v224
    %v1112 = vunpack.c.h.b16 %v224
    %v1113 = vunpack.c.l.b16 %v225
    %v1114 = vunpack.c.h.b16 %v225
    %v1115 = vunpack.c.l.b16 %v226
    %v1116 = vunpack.c.h.b16 %v226
    %v1117 = vunpack.c.l.b16 %v227
    %v1118 = vunpack.c.h.b16 %v227
    %v1119 = vunpack.c.l.b16 %v228
    %v1120 = vunpack.c.h.b16 %v228
    %v1121 = vunpack.c.l.b16 %v229
    %v1122 = vunpack.c.h.b16 %v229
    %v1123 = vunpack.c.l.b16 %v230
    %v1124 = vunpack.c.h.b16 %v230
    %v1125 = vunpack.c.l.b16 %v231
    %v1126 = vunpack.c.h.b16 %v231
    %v1127 = vunpack.c.l.b16 %v232
    %v1128 = vunpack.c.h.b16 %v232
    %v1129 = vpack.c.b16 %v741, %v737
    %v1130 = vpack.c.b16 %v742, %v738
    %v1131 = vpack.c.b16 %v743, %v739
    %v1132 = vpack.c.b16 %v744, %v740
    %v1133 = vpack.c.b16 %v749, %v745
    %v1134 = vpack.c.b16 %v750, %v746
    %v1135 = vpack.c.b16 %v751, %v747
    %v1136 = vpack.c.b16 %v752, %v748
    %v1137 = vpack.c.b16 %v757, %v753
    %v1138 = vpack.c.b16 %v758, %v754
    %v1139 = vpack.c.b16 %v759, %v755
    %v1140 = vpack.c.b16 %v760, %v756
    %v1141 = vpack.c.b16 %v765, %v761
    %v1142 = vpack.c.b16 %v766, %v762
    %v1143 = vpack.c.b16 %v767, %v763
    %v1144 = vpack.c.b16 %v768, %v764
    %v1145 = vpack.c.b16 %v773, %v769
    %v1146 = vpack.c.b16 %v774, %v770
    %v1147 = vpack.c.b16 %v775, %v771
    %v1148 = vpack.c.b16 %v776, %v772
    %v1149 = vpack.c.b16 %v781, %v777
    %v1150 = vpack.c.b16 %v782, %v778
    %v1151 = vpack.c.b16 %v783, %v779
    %v1152 = vpack.c.b16 %v784, %v780
    %v1153 = vpack.c.b16 %v789, %v785
    %v1154 = vpack.c.b16 %v790, %v786
    %v1155 = vpack.c.b16 %v791, %v787
    %v1156 = vpack.c.b16 %v792, %v788
    %v1157 = vpack.c.b16 %v797, %v793
    %v1158 = vpack.c.b16 %v798, %v794
    %v1159 = vpack.c.b16 %v799, %v795
    %v1160 = vpack.c.b16 %v800, %v796
    %v1161 = vpack.c.b16 %v805, %v801
    %v1162 = vpack.c.b16 %v806, %v802
    %v1163 = vpack.c.b16 %v807, %v803
    %v1164 = vpack.c.b16 %v808, %v804
    %v1165 = vpack.c.b16 %v813, %v809
    %v1166 = vpack.c.b16 %v814, %v810
    %v1167 = vpack.c.b16 %v815, %v811
    %v1168 = vpack.c.b16 %v816, %v812
    %v1169 = vpack.c.b16 %v821, %v817
    %v1170 = vpack.c.b16 %v822, %v818
    %v1171 = vpack.c.b16 %v823, %v819
    %v1172 = vpack.c.b16 %v824, %v820
    %v1173 = vpack.c.b16 %v829, %v825
    %v1174 = vpack.c.b16 %v830, %v826
    %v1175 = vpack.c.b16 %v831, %v827
    %v1176 = vpack.c.b16 %v832, %v828
    %v1177 = vpack.c.b16 %v837, %v833
    %v1178 = vpack.c.b16 %v838, %v834
    %v1179 = vpack.c.b16 %v839, %v835
    %v1180 = vpack.c.b16 %v840, %v836
    %v1181 = vpack.c.b16 %v845, %v841
    %v1182 = vpack.c.b16 %v846, %v842
    %v1183 = vpack.c.b16 %v847, %v843
    %v1184 = vpack.c.b16 %v848, %v844
    %v1185 = vpack.c.b16 %v853, %v849
    %v1186 = vpack.c.b16 %v854, %v850
    %v1187 = vpack.c.b16 %v855, %v851
    %v1188 = vpack.c.b16 %v856, %v852
    %v1189 = vpack.c.b16 %v861, %v857
    %v1190 = vpack.c.b16 %v862, %v858
    %v1191 = vpack.c.b16 %v863, %v859
    %v1192 = vpack.c.b16 %v864, %v860
    %v1193 = vpack.c.b16 %v869, %v865
    %v1194 = vpack.c.b16 %v870, %v866
    %v1195 = vpack.c.b16 %v871, %v867
    %v1196 = vpack.c.b16 %v872, %v868
    %v1197 = vpack.c.b16 %v877, %v873
    %v1198 = vpack.c.b16 %v878, %v874
    %v1199 = vpack.c.b16 %v879, %v875
    %v1200 = vpack.c.b16 %v880, %v876
    %v1201 = vpack.c.b16 %v885, %v881
    %v1202 = vpack.c.b16 %v886, %v882
    %v1203 = vpack.c.b16 %v887, %v883
    %v1204 = vpack.c.b16 %v888, %v884
    %v1205 = vpack.c.b16 %v893, %v889
    %v1206 = vpack.c.b16 %v894, %v890
    %v1207 = vpack.c.b16 %v895, %v891
    %v1208 = vpack.c.b16 %v896, %v892
    %v1209 = vpack.c.b16 %v901, %v897
    %v1210 = vpack.c.b16 %v902, %v898
    %v1211 = vpack.c.b16 %v903, %v899
    %v1212 = vpack.c.b16 %v904, %v900
    %v1213 = vpack.c.b16 %v909, %v905
    %v1214 = vpack.c.b16 %v910, %v906
    %v1215 = vpack.c.b16 %v911, %v907
    %v1216 = vpack.c.b16 %v912, %v908
    %v1217 = vpack.c.b16 %v917, %v913
    %v1218 = vpack.c.b16 %v918, %v914
    %v1219 = vpack.c.b16 %v919, %v915
    %v1220 = vpack.c.b16 %v920, %v916
    %v1221 = vpack.c.b16 %v925, %v921
    %v1222 = vpack.c.b16 %v926, %v922
    %v1223 = vpack.c.b16 %v927, %v923
    %v1224 = vpack.c.b16 %v928, %v924
    %v1225 = vpack.c.b16 %v933, %v929
    %v1226 = vpack.c.b16 %v934, %v930
    %v1227 = vpack.c.b16 %v935, %v931
    %v1228 = vpack.c.b16 %v936, %v932
    %v1229 = vpack.c.b16 %v941, %v937
    %v1230 = vpack.c.b16 %v942, %v938
    %v1231 = vpack.c.b16 %v943, %v939
    %v1232 = vpack.c.b16 %v944, %v940
    %v1233 = vpack.c.b16 %v949, %v945
    %v1234 = vpack.c.b16 %v950, %v946
    %v1235 = vpack.c.b16 %v951, %v947
    %v1236 = vpack.c.b16 %v952, %v948
    %v1237 = vpack.c.b16 %v957, %v953
    %v1238 = vpack.c.b16 %v958, %v954
    %v1239 = vpack.c.b16 %v959, %v955
    %v1240 = vpack.c.b16 %v960, %v956
    %v1241 = vpack.c.b16 %v965, %v961
    %v1242 = vpack.c.b16 %v966, %v962
    %v1243 = vpack.c.b16 %v967, %v963
    %v1244 = vpack.c.b16 %v968, %v964
    %v1245 = vpack.c.b16 %v973, %v969
    %v1246 = vpack.c.b16 %v974, %v970
    %v1247 = vpack.c.b16 %v975, %v971
    %v1248 = vpack.c.b16 %v976, %v972
    %v1249 = vpack.c.b16 %v981, %v977
    %v1250 = vpack.c.b16 %v982, %v978
    %v1251 = vpack.c.b16 %v983, %v979
    %v1252 = vpack.c.b16 %v984, %v980
    %v1253 = vpack.c.b16 %v989, %v985
    %v1254 = vpack.c.b16 %v990, %v986
    %v1255 = vpack.c.b16 %v991, %v987
    %v1256 = vpack.c.b16 %v992, %v988
    %v1257 = vpack.c.b16 %v997, %v993
    %v1258 = vpack.c.b16 %v998, %v994
    %v1259 = vpack.c.b16 %v999, %v995
    %v1260 = vpack.c.b16 %v1000, %v996
    %v1261 = vpack.c.b16 %v1005, %v1001
    %v1262 = vpack.c.b16 %v1006, %v1002
    %v1263 = vpack.c.b16 %v1007, %v1003
    %v1264 = vpack.c.b16 %v1008, %v1004
    %v1265 = vpack.c.b16 %v1013, %v1009
    %v1266 = vpack.c.b16 %v1014, %v1010
    %v1267 = vpack.c.b16 %v1015, %v1011
    %v1268 = vpack.c.b16 %v1016, %v1012
    %v1269 = vpack.c.b16 %v1021, %v1017
    %v1270 = vpack.c.b16 %v1022, %v1018
    %v1271 = vpack.c.b16 %v1023, %v1019
    %v1272 = vpack.c.b16 %v1024, %v1020
    %v1273 = vpack.c.b16 %v1029, %v1025
    %v1274 = vpack.c.b16 %v1030, %v1026
    %v1275 = vpack.c.b16 %v1031, %v1027
    %v1276 = vpack.c.b16 %v1032, %v1028
    %v1277 = vpack.c.b16 %v1037, %v1033
    %v1278 = vpack.c.b16 %v1038, %v1034
    %v1279 = vpack.c.b16 %v1039, %v1035
    %v1280 = vpack.c.b16 %v1040, %v1036
    %v1281 = vpack.c.b16 %v1045, %v1041
    %v1282 = vpack.c.b16 %v1046, %v1042
    %v1283 = vpack.c.b16 %v1047, %v1043
    %v1284 = vpack.c.b16 %v1048, %v1044
    %v1285 = vpack.c.b16 %v1053, %v1049
    %v1286 = vpack.c.b16 %v1054, %v1050
    %v1287 = vpack.c.b16 %v1055, %v1051
    %v1288 = vpack.c.b16 %v1056, %v1052
    %v1289 = vpack.c.b16 %v1061, %v1057
    %v1290 = vpack.c.b16 %v1062, %v1058
    %v1291 = vpack.c.b16 %v1063, %v1059
    %v1292 = vpack.c.b16 %v1064, %v1060
    %v1293 = vpack.c.b16 %v1069, %v1065
    %v1294 = vpack.c.b16 %v1070, %v1066
    %v1295 = vpack.c.b16 %v1071, %v1067
    %v1296 = vpack.c.b16 %v1072, %v1068
    %v1297 = vpack.c.b16 %v1077, %v1073
    %v1298 = vpack.c.b16 %v1078, %v1074
    %v1299 = vpack.c.b16 %v1079, %v1075
    %v1300 = vpack.c.b16 %v1080, %v1076
    %v1301 = vpack.c.b16 %v1085, %v1081
    %v1302 = vpack.c.b16 %v1086, %v1082
    %v1303 = vpack.c.b16 %v1087, %v1083
    %v1304 = vpack.c.b16 %v1088, %v1084
    %v1305 = vpack.c.b16 %v1093, %v1089
    %v1306 = vpack.c.b16 %v1094, %v1090
    %v1307 = vpack.c.b16 %v1095, %v1091
    %v1308 = vpack.c.b16 %v1096, %v1092
    %v1309 = vpack.c.b16 %v1101, %v1097
    %v1310 = vpack.c.b16 %v1102, %v1098
    %v1311 = vpack.c.b16 %v1103, %v1099
    %v1312 = vpack.c.b16 %v1104, %v1100
    %v1313 = vpack.c.b16 %v1109, %v1105
    %v1314 = vpack.c.b16 %v1110, %v1106
    %v1315 = vpack.c.b16 %v1111, %v1107
    %v1316 = vpack.c.b16 %v1112, %v1108
    %v1317 = vpack.c.b16 %v1117, %v1113
    %v1318 = vpack.c.b16 %v1118, %v1114
    %v1319 = vpack.c.b16 %v1119, %v1115
    %v1320 = vpack.c.b16 %v1120, %v1116
    %v1321 = vpack.c.b16 %v1125, %v1121
    %v1322 = vpack.c.b16 %v1126, %v1122
    %v1323 = vpack.c.b16 %v1127, %v1123
    %v1324 = vpack.c.b16 %v1128, %v1124
    %vm1521 = vcmask 130048
    %v1523 = vsel %vm1521, %v534, 0
    %1525 = vmatpush.bf16.msra.mxu0 %v1157
    %1526 = vmatpush.bf16.msra.mxu0 %v1153
    %1527 = vmatpush.bf16.msra.mxu0 %v1149
    %1528 = vmatpush.bf16.msra.mxu0 %v1145
    %1529 = vmatpush.bf16.msra.mxu0 %v1141
    %1530 = vmatpush.bf16.msra.mxu0 %v1137
    %1531 = vmatpush.bf16.msra.mxu0 %v1133
    %1532 = vmatpush.bf16.msra.mxu0 %v1129
    %1533 = vmatmul.bf16.gmra.mxu0 %v528
    %v1534 = vpop.f32.mrf.mxu0
    %v1535 = vadd.f32 %v498, %v1534
    %v1536 = vpop.f32.mrf.mxu0
    %v1537 = vadd.f32 %v498, %v1536
    %1538 = vdwg.mxu0
    %1539 = vmatpush.bf16.msra.mxu0 %v1189
    %1540 = vmatpush.bf16.msra.mxu0 %v1185
    %1541 = vmatpush.bf16.msra.mxu0 %v1181
    %1542 = vmatpush.bf16.msra.mxu0 %v1177
    %1543 = vmatpush.bf16.msra.mxu0 %v1173
    %1544 = vmatpush.bf16.msra.mxu0 %v1169
    %1545 = vmatpush.bf16.msra.mxu0 %v1165
    %1546 = vmatpush.bf16.msra.mxu0 %v1161
    %1547 = vmatmul.bf16.gmra.mxu0 %v529
    %v1548 = vpop.f32.mrf.mxu0
    %v1549 = vadd.f32 %v1535, %v1548
    %v1550 = vpop.f32.mrf.mxu0
    %v1551 = vadd.f32 %v1537, %v1550
    %1552 = vdwg.mxu0
    %1553 = vmatpush.bf16.msra.mxu0 %v1221
    %1554 = vmatpush.bf16.msra.mxu0 %v1217
    %1555 = vmatpush.bf16.msra.mxu0 %v1213
    %1556 = vmatpush.bf16.msra.mxu0 %v1209
    %1557 = vmatpush.bf16.msra.mxu0 %v1205
    %1558 = vmatpush.bf16.msra.mxu0 %v1201
    %1559 = vmatpush.bf16.msra.mxu0 %v1197
    %1560 = vmatpush.bf16.msra.mxu0 %v1193
    %1561 = vmatmul.bf16.gmra.mxu0 %v530
    %v1562 = vpop.f32.mrf.mxu0
    %v1563 = vadd.f32 %v1549, %v1562
    %v1564 = vpop.f32.mrf.mxu0
    %v1565 = vadd.f32 %v1551, %v1564
    %1566 = vdwg.mxu0
    %1567 = vmatpush.bf16.msra.mxu0 %v1253
    %1568 = vmatpush.bf16.msra.mxu0 %v1249
    %1569 = vmatpush.bf16.msra.mxu0 %v1245
    %1570 = vmatpush.bf16.msra.mxu0 %v1241
    %1571 = vmatpush.bf16.msra.mxu0 %v1237
    %1572 = vmatpush.bf16.msra.mxu0 %v1233
    %1573 = vmatpush.bf16.msra.mxu0 %v1229
    %1574 = vmatpush.bf16.msra.mxu0 %v1225
    %1575 = vmatmul.bf16.gmra.mxu0 %v531
    %v1576 = vpop.f32.mrf.mxu0
    %v1577 = vadd.f32 %v1563, %v1576
    %v1578 = vpop.f32.mrf.mxu0
    %v1579 = vadd.f32 %v1565, %v1578
    %1580 = vdwg.mxu0
    %1581 = vmatpush.bf16.msra.mxu0 %v1285
    %1582 = vmatpush.bf16.msra.mxu0 %v1281
    %1583 = vmatpush.bf16.msra.mxu0 %v1277
    %1584 = vmatpush.bf16.msra.mxu0 %v1273
    %1585 = vmatpush.bf16.msra.mxu0 %v1269
    %1586 = vmatpush.bf16.msra.mxu0 %v1265
    %1587 = vmatpush.bf16.msra.mxu0 %v1261
    %1588 = vmatpush.bf16.msra.mxu0 %v1257
    %1589 = vmatmul.bf16.gmra.mxu0 %v532
    %v1590 = vpop.f32.mrf.mxu0
    %v1591 = vadd.f32 %v1577, %v1590
    %v1592 = vpop.f32.mrf.mxu0
    %v1593 = vadd.f32 %v1579, %v1592
    %1594 = vdwg.mxu0
    %1595 = vmatpush.bf16.msra.mxu0 %v1317
    %1596 = vmatpush.bf16.msra.mxu0 %v1313
    %1597 = vmatpush.bf16.msra.mxu0 %v1309
    %1598 = vmatpush.bf16.msra.mxu0 %v1305
    %1599 = vmatpush.bf16.msra.mxu0 %v1301
    %1600 = vmatpush.bf16.msra.mxu0 %v1297
    %1601 = vmatpush.bf16.msra.mxu0 %v1293
    %1602 = vmatpush.bf16.msra.mxu0 %v1289
    %1603 = vmatmul.bf16.gmra.mxu0 %v533
    %v1604 = vpop.f32.mrf.mxu0
    %v1605 = vadd.f32 %v1591, %v1604
    %v1606 = vpop.f32.mrf.mxu0
    %v1607 = vadd.f32 %v1593, %v1606
    %1608 = vdwg.mxu0
    %1609 = vmatpush.bf16.msra.mxu0 0
    %1610 = vmatpush.bf16.msra.mxu0 0
    %1611 = vmatpush.bf16.msra.mxu0 0
    %1612 = vmatpush.bf16.msra.mxu0 0
    %1613 = vmatpush.bf16.msra.mxu0 0
    %1614 = vmatpush.bf16.msra.mxu0 0
    %1615 = vmatpush.bf16.msra.mxu0 0
    %1616 = vmatpush.bf16.msra.mxu0 %v1321
    %1617 = vmatmul.bf16.gmra.mxu0 %v1523
    %v1618 = vpop.f32.mrf.mxu0
    %v1619 = vadd.f32 %v1605, %v1618
    %v1620 = vpop.f32.mrf.mxu0
    %v1621 = vadd.f32 %v1607, %v1620
    %1622 = vdwg.mxu0
    %1623 = vmatpush.bf16.msra.mxu0 %v1158
    %1624 = vmatpush.bf16.msra.mxu0 %v1154
    %1625 = vmatpush.bf16.msra.mxu0 %v1150
    %1626 = vmatpush.bf16.msra.mxu0 %v1146
    %1627 = vmatpush.bf16.msra.mxu0 %v1142
    %1628 = vmatpush.bf16.msra.mxu0 %v1138
    %1629 = vmatpush.bf16.msra.mxu0 %v1134
    %1630 = vmatpush.bf16.msra.mxu0 %v1130
    %1631 = vmatmul.bf16.gmra.mxu0 %v528
    %v1632 = vpop.f32.mrf.mxu0
    %v1633 = vadd.f32 %v499, %v1632
    %v1634 = vpop.f32.mrf.mxu0
    %v1635 = vadd.f32 %v499, %v1634
    %1636 = vdwg.mxu0
    %1637 = vmatpush.bf16.msra.mxu0 %v1190
    %1638 = vmatpush.bf16.msra.mxu0 %v1186
    %1639 = vmatpush.bf16.msra.mxu0 %v1182
    %1640 = vmatpush.bf16.msra.mxu0 %v1178
    %1641 = vmatpush.bf16.msra.mxu0 %v1174
    %1642 = vmatpush.bf16.msra.mxu0 %v1170
    %1643 = vmatpush.bf16.msra.mxu0 %v1166
    %1644 = vmatpush.bf16.msra.mxu0 %v1162
    %1645 = vmatmul.bf16.gmra.mxu0 %v529
    %v1646 = vpop.f32.mrf.mxu0
    %v1647 = vadd.f32 %v1633, %v1646
    %v1648 = vpop.f32.mrf.mxu0
    %v1649 = vadd.f32 %v1635, %v1648
    %1650 = vdwg.mxu0
    %1651 = vmatpush.bf16.msra.mxu0 %v1222
    %1652 = vmatpush.bf16.msra.mxu0 %v1218
    %1653 = vmatpush.bf16.msra.mxu0 %v1214
    %1654 = vmatpush.bf16.msra.mxu0 %v1210
    %1655 = vmatpush.bf16.msra.mxu0 %v1206
    %1656 = vmatpush.bf16.msra.mxu0 %v1202
    %1657 = vmatpush.bf16.msra.mxu0 %v1198
    %1658 = vmatpush.bf16.msra.mxu0 %v1194
    %1659 = vmatmul.bf16.gmra.mxu0 %v530
    %v1660 = vpop.f32.mrf.mxu0
    %v1661 = vadd.f32 %v1647, %v1660
    %v1662 = vpop.f32.mrf.mxu0
    %v1663 = vadd.f32 %v1649, %v1662
    %1664 = vdwg.mxu0
    %1665 = vmatpush.bf16.msra.mxu0 %v1254
    %1666 = vmatpush.bf16.msra.mxu0 %v1250
    %1667 = vmatpush.bf16.msra.mxu0 %v1246
    %1668 = vmatpush.bf16.msra.mxu0 %v1242
    %1669 = vmatpush.bf16.msra.mxu0 %v1238
    %1670 = vmatpush.bf16.msra.mxu0 %v1234
    %1671 = vmatpush.bf16.msra.mxu0 %v1230
    %1672 = vmatpush.bf16.msra.mxu0 %v1226
    %1673 = vmatmul.bf16.gmra.mxu0 %v531
    %v1674 = vpop.f32.mrf.mxu0
    %v1675 = vadd.f32 %v1661, %v1674
    %v1676 = vpop.f32.mrf.mxu0
    %v1677 = vadd.f32 %v1663, %v1676
    %1678 = vdwg.mxu0
    %1679 = vmatpush.bf16.msra.mxu0 %v1286
    %1680 = vmatpush.bf16.msra.mxu0 %v1282
    %1681 = vmatpush.bf16.msra.mxu0 %v1278
    %1682 = vmatpush.bf16.msra.mxu0 %v1274
    %1683 = vmatpush.bf16.msra.mxu0 %v1270
    %1684 = vmatpush.bf16.msra.mxu0 %v1266
    %1685 = vmatpush.bf16.msra.mxu0 %v1262
    %1686 = vmatpush.bf16.msra.mxu0 %v1258
    %1687 = vmatmul.bf16.gmra.mxu0 %v532
    %v1688 = vpop.f32.mrf.mxu0
    %v1689 = vadd.f32 %v1675, %v1688
    %v1690 = vpop.f32.mrf.mxu0
    %v1691 = vadd.f32 %v1677, %v1690
    %1692 = vdwg.mxu0
    %1693 = vmatpush.bf16.msra.mxu0 %v1318
    %1694 = vmatpush.bf16.msra.mxu0 %v1314
    %1695 = vmatpush.bf16.msra.mxu0 %v1310
    %1696 = vmatpush.bf16.msra.mxu0 %v1306
    %1697 = vmatpush.bf16.msra.mxu0 %v1302
    %1698 = vmatpush.bf16.msra.mxu0 %v1298
    %1699 = vmatpush.bf16.msra.mxu0 %v1294
    %1700 = vmatpush.bf16.msra.mxu0 %v1290
    %1701 = vmatmul.bf16.gmra.mxu0 %v533
    %v1702 = vpop.f32.mrf.mxu0
    %v1703 = vadd.f32 %v1689, %v1702
    %v1704 = vpop.f32.mrf.mxu0
    %v1705 = vadd.f32 %v1691, %v1704
    %1706 = vdwg.mxu0
    %1707 = vmatpush.bf16.msra.mxu0 0
    %1708 = vmatpush.bf16.msra.mxu0 0
    %1709 = vmatpush.bf16.msra.mxu0 0
    %1710 = vmatpush.bf16.msra.mxu0 0
    %1711 = vmatpush.bf16.msra.mxu0 0
    %1712 = vmatpush.bf16.msra.mxu0 0
    %1713 = vmatpush.bf16.msra.mxu0 0
    %1714 = vmatpush.bf16.msra.mxu0 %v1322
    %1715 = vmatmul.bf16.gmra.mxu0 %v1523
    %v1716 = vpop.f32.mrf.mxu0
    %v1717 = vadd.f32 %v1703, %v1716
    %v1718 = vpop.f32.mrf.mxu0
    %v1719 = vadd.f32 %v1705, %v1718
    %1720 = vdwg.mxu0
    %1721 = vmatpush.bf16.msra.mxu0 %v1159
    %1722 = vmatpush.bf16.msra.mxu0 %v1155
    %1723 = vmatpush.bf16.msra.mxu0 %v1151
    %1724 = vmatpush.bf16.msra.mxu0 %v1147
    %1725 = vmatpush.bf16.msra.mxu0 %v1143
    %1726 = vmatpush.bf16.msra.mxu0 %v1139
    %1727 = vmatpush.bf16.msra.mxu0 %v1135
    %1728 = vmatpush.bf16.msra.mxu0 %v1131
    %1729 = vmatmul.bf16.gmra.mxu0 %v528
    %v1730 = vpop.f32.mrf.mxu0
    %v1731 = vadd.f32 %v500, %v1730
    %v1732 = vpop.f32.mrf.mxu0
    %v1733 = vadd.f32 %v500, %v1732
    %1734 = vdwg.mxu0
    %1735 = vmatpush.bf16.msra.mxu0 %v1191
    %1736 = vmatpush.bf16.msra.mxu0 %v1187
    %1737 = vmatpush.bf16.msra.mxu0 %v1183
    %1738 = vmatpush.bf16.msra.mxu0 %v1179
    %1739 = vmatpush.bf16.msra.mxu0 %v1175
    %1740 = vmatpush.bf16.msra.mxu0 %v1171
    %1741 = vmatpush.bf16.msra.mxu0 %v1167
    %1742 = vmatpush.bf16.msra.mxu0 %v1163
    %1743 = vmatmul.bf16.gmra.mxu0 %v529
    %v1744 = vpop.f32.mrf.mxu0
    %v1745 = vadd.f32 %v1731, %v1744
    %v1746 = vpop.f32.mrf.mxu0
    %v1747 = vadd.f32 %v1733, %v1746
    %1748 = vdwg.mxu0
    %1749 = vmatpush.bf16.msra.mxu0 %v1223
    %1750 = vmatpush.bf16.msra.mxu0 %v1219
    %1751 = vmatpush.bf16.msra.mxu0 %v1215
    %1752 = vmatpush.bf16.msra.mxu0 %v1211
    %1753 = vmatpush.bf16.msra.mxu0 %v1207
    %1754 = vmatpush.bf16.msra.mxu0 %v1203
    %1755 = vmatpush.bf16.msra.mxu0 %v1199
    %1756 = vmatpush.bf16.msra.mxu0 %v1195
    %1757 = vmatmul.bf16.gmra.mxu0 %v530
    %v1758 = vpop.f32.mrf.mxu0
    %v1759 = vadd.f32 %v1745, %v1758
    %v1760 = vpop.f32.mrf.mxu0
    %v1761 = vadd.f32 %v1747, %v1760
    %1762 = vdwg.mxu0
    %1763 = vmatpush.bf16.msra.mxu0 %v1255
    %1764 = vmatpush.bf16.msra.mxu0 %v1251
    %1765 = vmatpush.bf16.msra.mxu0 %v1247
    %1766 = vmatpush.bf16.msra.mxu0 %v1243
    %1767 = vmatpush.bf16.msra.mxu0 %v1239
    %1768 = vmatpush.bf16.msra.mxu0 %v1235
    %1769 = vmatpush.bf16.msra.mxu0 %v1231
    %1770 = vmatpush.bf16.msra.mxu0 %v1227
    %1771 = vmatmul.bf16.gmra.mxu0 %v531
    %v1772 = vpop.f32.mrf.mxu0
    %v1773 = vadd.f32 %v1759, %v1772
    %v1774 = vpop.f32.mrf.mxu0
    %v1775 = vadd.f32 %v1761, %v1774
    %1776 = vdwg.mxu0
    %1777 = vmatpush.bf16.msra.mxu0 %v1287
    %1778 = vmatpush.bf16.msra.mxu0 %v1283
    %1779 = vmatpush.bf16.msra.mxu0 %v1279
    %1780 = vmatpush.bf16.msra.mxu0 %v1275
    %1781 = vmatpush.bf16.msra.mxu0 %v1271
    %1782 = vmatpush.bf16.msra.mxu0 %v1267
    %1783 = vmatpush.bf16.msra.mxu0 %v1263
    %1784 = vmatpush.bf16.msra.mxu0 %v1259
    %1785 = vmatmul.bf16.gmra.mxu0 %v532
    %v1786 = vpop.f32.mrf.mxu0
    %v1787 = vadd.f32 %v1773, %v1786
    %v1788 = vpop.f32.mrf.mxu0
    %v1789 = vadd.f32 %v1775, %v1788
    %1790 = vdwg.mxu0
    %1791 = vmatpush.bf16.msra.mxu0 %v1319
    %1792 = vmatpush.bf16.msra.mxu0 %v1315
    %1793 = vmatpush.bf16.msra.mxu0 %v1311
    %1794 = vmatpush.bf16.msra.mxu0 %v1307
    %1795 = vmatpush.bf16.msra.mxu0 %v1303
    %1796 = vmatpush.bf16.msra.mxu0 %v1299
    %1797 = vmatpush.bf16.msra.mxu0 %v1295
    %1798 = vmatpush.bf16.msra.mxu0 %v1291
    %1799 = vmatmul.bf16.gmra.mxu0 %v533
    %v1800 = vpop.f32.mrf.mxu0
    %v1801 = vadd.f32 %v1787, %v1800
    %v1802 = vpop.f32.mrf.mxu0
    %v1803 = vadd.f32 %v1789, %v1802
    %1804 = vdwg.mxu0
    %1805 = vmatpush.bf16.msra.mxu0 0
    %1806 = vmatpush.bf16.msra.mxu0 0
    %1807 = vmatpush.bf16.msra.mxu0 0
    %1808 = vmatpush.bf16.msra.mxu0 0
    %1809 = vmatpush.bf16.msra.mxu0 0
    %1810 = vmatpush.bf16.msra.mxu0 0
    %1811 = vmatpush.bf16.msra.mxu0 0
    %1812 = vmatpush.bf16.msra.mxu0 %v1323
    %1813 = vmatmul.bf16.gmra.mxu0 %v1523
    %v1814 = vpop.f32.mrf.mxu0
    %v1815 = vadd.f32 %v1801, %v1814
    %v1816 = vpop.f32.mrf.mxu0
    %v1817 = vadd.f32 %v1803, %v1816
    %1818 = vdwg.mxu0
    %1819 = vmatpush.bf16.msra.mxu0 %v1160
    %1820 = vmatpush.bf16.msra.mxu0 %v1156
    %1821 = vmatpush.bf16.msra.mxu0 %v1152
    %1822 = vmatpush.bf16.msra.mxu0 %v1148
    %1823 = vmatpush.bf16.msra.mxu0 %v1144
    %1824 = vmatpush.bf16.msra.mxu0 %v1140
    %1825 = vmatpush.bf16.msra.mxu0 %v1136
    %1826 = vmatpush.bf16.msra.mxu0 %v1132
    %1827 = vmatmul.bf16.gmra.mxu0 %v528
    %v1828 = vpop.f32.mrf.mxu0
    %v1829 = vadd.f32 %v501, %v1828
    %v1830 = vpop.f32.mrf.mxu0
    %v1831 = vadd.f32 %v501, %v1830
    %1832 = vdwg.mxu0
    %1833 = vmatpush.bf16.msra.mxu0 %v1192
    %1834 = vmatpush.bf16.msra.mxu0 %v1188
    %1835 = vmatpush.bf16.msra.mxu0 %v1184
    %1836 = vmatpush.bf16.msra.mxu0 %v1180
    %1837 = vmatpush.bf16.msra.mxu0 %v1176
    %1838 = vmatpush.bf16.msra.mxu0 %v1172
    %1839 = vmatpush.bf16.msra.mxu0 %v1168
    %1840 = vmatpush.bf16.msra.mxu0 %v1164
    %1841 = vmatmul.bf16.gmra.mxu0 %v529
    %v1842 = vpop.f32.mrf.mxu0
    %v1843 = vadd.f32 %v1829, %v1842
    %v1844 = vpop.f32.mrf.mxu0
    %v1845 = vadd.f32 %v1831, %v1844
    %1846 = vdwg.mxu0
    %1847 = vmatpush.bf16.msra.mxu0 %v1224
    %1848 = vmatpush.bf16.msra.mxu0 %v1220
    %1849 = vmatpush.bf16.msra.mxu0 %v1216
    %1850 = vmatpush.bf16.msra.mxu0 %v1212
    %1851 = vmatpush.bf16.msra.mxu0 %v1208
    %1852 = vmatpush.bf16.msra.mxu0 %v1204
    %1853 = vmatpush.bf16.msra.mxu0 %v1200
    %1854 = vmatpush.bf16.msra.mxu0 %v1196
    %1855 = vmatmul.bf16.gmra.mxu0 %v530
    %v1856 = vpop.f32.mrf.mxu0
    %v1857 = vadd.f32 %v1843, %v1856
    %v1858 = vpop.f32.mrf.mxu0
    %v1859 = vadd.f32 %v1845, %v1858
    %1860 = vdwg.mxu0
    %1861 = vmatpush.bf16.msra.mxu0 %v1256
    %1862 = vmatpush.bf16.msra.mxu0 %v1252
    %1863 = vmatpush.bf16.msra.mxu0 %v1248
    %1864 = vmatpush.bf16.msra.mxu0 %v1244
    %1865 = vmatpush.bf16.msra.mxu0 %v1240
    %1866 = vmatpush.bf16.msra.mxu0 %v1236
    %1867 = vmatpush.bf16.msra.mxu0 %v1232
    %1868 = vmatpush.bf16.msra.mxu0 %v1228
    %1869 = vmatmul.bf16.gmra.mxu0 %v531
    %v1870 = vpop.f32.mrf.mxu0
    %v1871 = vadd.f32 %v1857, %v1870
    %v1872 = vpop.f32.mrf.mxu0
    %v1873 = vadd.f32 %v1859, %v1872
    %1874 = vdwg.mxu0
    %1875 = vmatpush.bf16.msra.mxu0 %v1288
    %1876 = vmatpush.bf16.msra.mxu0 %v1284
    %1877 = vmatpush.bf16.msra.mxu0 %v1280
    %1878 = vmatpush.bf16.msra.mxu0 %v1276
    %1879 = vmatpush.bf16.msra.mxu0 %v1272
    %1880 = vmatpush.bf16.msra.mxu0 %v1268
    %1881 = vmatpush.bf16.msra.mxu0 %v1264
    %1882 = vmatpush.bf16.msra.mxu0 %v1260
    %1883 = vmatmul.bf16.gmra.mxu0 %v532
    %v1884 = vpop.f32.mrf.mxu0
    %v1885 = vadd.f32 %v1871, %v1884
    %v1886 = vpop.f32.mrf.mxu0
    %v1887 = vadd.f32 %v1873, %v1886
    %1888 = vdwg.mxu0
    %1889 = vmatpush.bf16.msra.mxu0 %v1320
    %1890 = vmatpush.bf16.msra.mxu0 %v1316
    %1891 = vmatpush.bf16.msra.mxu0 %v1312
    %1892 = vmatpush.bf16.msra.mxu0 %v1308
    %1893 = vmatpush.bf16.msra.mxu0 %v1304
    %1894 = vmatpush.bf16.msra.mxu0 %v1300
    %1895 = vmatpush.bf16.msra.mxu0 %v1296
    %1896 = vmatpush.bf16.msra.mxu0 %v1292
    %1897 = vmatmul.bf16.gmra.mxu0 %v533
    %v1898 = vpop.f32.mrf.mxu0
    %v1899 = vadd.f32 %v1885, %v1898
    %v1900 = vpop.f32.mrf.mxu0
    %v1901 = vadd.f32 %v1887, %v1900
    %1902 = vdwg.mxu0
    %1903 = vmatpush.bf16.msra.mxu0 0
    %1904 = vmatpush.bf16.msra.mxu0 0
    %1905 = vmatpush.bf16.msra.mxu0 0
    %1906 = vmatpush.bf16.msra.mxu0 0
    %1907 = vmatpush.bf16.msra.mxu0 0
    %1908 = vmatpush.bf16.msra.mxu0 0
    %1909 = vmatpush.bf16.msra.mxu0 0
    %1910 = vmatpush.bf16.msra.mxu0 %v1324
    %1911 = vmatmul.bf16.gmra.mxu0 %v1523
    %v1912 = vpop.f32.mrf.mxu0
    %v1913 = vadd.f32 %v1899, %v1912
    %v1914 = vpop.f32.mrf.mxu0
    %v1915 = vadd.f32 %v1901, %v1914
    %1916 = vdwg.mxu0
    %v1917 = vmax.f32 %v1619, 0.0
    %v1918 = vmax.f32 %v1717, 0.0
    %v1919 = vmax.f32 %v1815, 0.0
    %v1920 = vmax.f32 %v1913, 0.0
    %v1921 = vmax.f32 %v1621, 0.0
    %v1922 = vmax.f32 %v1719, 0.0
    %v1923 = vmax.f32 %v1817, 0.0
    %v1924 = vmax.f32 %v1915, 0.0
    %v1925 = vpack.c.bf16 %v1921, %v1917
    %v1926 = vpack.c.bf16 %v1922, %v1918
    %v1927 = vpack.c.bf16 %v1923, %v1919
    %v1928 = vpack.c.bf16 %v1924, %v1920
    %v1929 = vperm.slane %v32, 0
    %v1980 = vunpack.c.l.b16 %v233
    %v1981 = vunpack.c.l.b16 %v234
    %v1982 = vunpack.c.l.b16 %v235
    %v1983 = vunpack.c.l.b16 %v236
    %v1984 = vunpack.c.l.b16 %v237
    %v1985 = vunpack.c.l.b16 %v238
    %v1986 = vunpack.c.l.b16 %v239
    %v1987 = vunpack.c.l.b16 %v240
    %v1988 = vunpack.c.l.b16 %v241
    %v1989 = vunpack.c.l.b16 %v242
    %v1990 = vunpack.c.l.b16 %v243
    %v1991 = vunpack.c.l.b16 %v244
    %v1992 = vunpack.c.l.b16 %v245
    %v1993 = vunpack.c.l.b16 %v246
    %v1994 = vunpack.c.l.b16 %v247
    %v1995 = vunpack.c.l.b16 %v248
    %v1996 = vunpack.c.l.b16 %v249
    %v1997 = vunpack.c.l.b16 %v250
    %v1998 = vunpack.c.l.b16 %v251
    %v1999 = vunpack.c.l.b16 %v252
    %v2000 = vunpack.c.l.b16 %v253
    %v2001 = vunpack.c.l.b16 %v254
    %v2002 = vunpack.c.l.b16 %v255
    %v2003 = vunpack.c.l.b16 %v256
    %v2004 = vunpack.c.l.b16 %v257
    %v2005 = vunpack.c.l.b16 %v258
    %v2006 = vunpack.c.l.b16 %v259
    %v2007 = vunpack.c.l.b16 %v260
    %v2008 = vunpack.c.l.b16 %v261
    %v2009 = vunpack.c.l.b16 %v262
    %v2010 = vunpack.c.l.b16 %v263
    %v2011 = vunpack.c.l.b16 %v264
    %v2012 = vunpack.c.l.b16 %v265
    %v2013 = vunpack.c.l.b16 %v266
    %v2014 = vunpack.c.l.b16 %v267
    %v2015 = vunpack.c.l.b16 %v268
    %v2016 = vunpack.c.l.b16 %v269
    %v2017 = vunpack.c.l.b16 %v270
    %v2018 = vunpack.c.l.b16 %v271
    %v2019 = vunpack.c.l.b16 %v272
    %v2020 = vunpack.c.l.b16 %v273
    %v2021 = vunpack.c.l.b16 %v274
    %v2022 = vunpack.c.l.b16 %v275
    %v2023 = vunpack.c.l.b16 %v276
    %v2024 = vunpack.c.l.b16 %v277
    %v2025 = vunpack.c.l.b16 %v278
    %v2026 = vunpack.c.l.b16 %v279
    %v2027 = vunpack.c.l.b16 %v280
    %v2028 = vunpack.c.l.b16 %v281
    %v2029 = vunpack.c.l.b16 %v282
    %v2030 = vpack.c.b16 %v1981, %v1980
    %v2031 = vpack.c.b16 %v1983, %v1982
    %v2032 = vpack.c.b16 %v1985, %v1984
    %v2033 = vpack.c.b16 %v1987, %v1986
    %v2034 = vpack.c.b16 %v1989, %v1988
    %v2035 = vpack.c.b16 %v1991, %v1990
    %v2036 = vpack.c.b16 %v1993, %v1992
    %v2037 = vpack.c.b16 %v1995, %v1994
    %v2038 = vpack.c.b16 %v1997, %v1996
    %v2039 = vpack.c.b16 %v1999, %v1998
    %v2040 = vpack.c.b16 %v2001, %v2000
    %v2041 = vpack.c.b16 %v2003, %v2002
    %v2042 = vpack.c.b16 %v2005, %v2004
    %v2043 = vpack.c.b16 %v2007, %v2006
    %v2044 = vpack.c.b16 %v2009, %v2008
    %v2045 = vpack.c.b16 %v2011, %v2010
    %v2046 = vpack.c.b16 %v2013, %v2012
    %v2047 = vpack.c.b16 %v2015, %v2014
    %v2048 = vpack.c.b16 %v2017, %v2016
    %v2049 = vpack.c.b16 %v2019, %v2018
    %v2050 = vpack.c.b16 %v2021, %v2020
    %v2051 = vpack.c.b16 %v2023, %v2022
    %v2052 = vpack.c.b16 %v2025, %v2024
    %v2053 = vpack.c.b16 %v2027, %v2026
    %v2054 = vpack.c.b16 %v2029, %v2028
    %v2081 = vsel %vm1521, %v1928, 0
    %2083 = vmatpush.bf16.msra.mxu0 %v2037
    %2084 = vmatpush.bf16.msra.mxu0 %v2036
    %2085 = vmatpush.bf16.msra.mxu0 %v2035
    %2086 = vmatpush.bf16.msra.mxu0 %v2034
    %2087 = vmatpush.bf16.msra.mxu0 %v2033
    %2088 = vmatpush.bf16.msra.mxu0 %v2032
    %2089 = vmatpush.bf16.msra.mxu0 %v2031
    %2090 = vmatpush.bf16.msra.mxu0 %v2030
    %2091 = vmatmul.bf16.gmra.mxu0 %v1925
    %v2092 = vpop.f32.mrf.mxu0
    %v2093 = vadd.f32 %v1929, %v2092
    %v2094 = vpop.f32.mrf.mxu0
    %v2095 = vadd.f32 %v1929, %v2094
    %2096 = vdwg.mxu0
    %2097 = vmatpush.bf16.msra.mxu0 %v2045
    %2098 = vmatpush.bf16.msra.mxu0 %v2044
    %2099 = vmatpush.bf16.msra.mxu0 %v2043
    %2100 = vmatpush.bf16.msra.mxu0 %v2042
    %2101 = vmatpush.bf16.msra.mxu0 %v2041
    %2102 = vmatpush.bf16.msra.mxu0 %v2040
    %2103 = vmatpush.bf16.msra.mxu0 %v2039
    %2104 = vmatpush.bf16.msra.mxu0 %v2038
    %2105 = vmatmul.bf16.gmra.mxu0 %v1926
    %v2106 = vpop.f32.mrf.mxu0
    %v2107 = vadd.f32 %v2093, %v2106
    %v2108 = vpop.f32.mrf.mxu0
    %v2109 = vadd.f32 %v2095, %v2108
    %2110 = vdwg.mxu0
    %2111 = vmatpush.bf16.msra.mxu0 %v2053
    %2112 = vmatpush.bf16.msra.mxu0 %v2052
    %2113 = vmatpush.bf16.msra.mxu0 %v2051
    %2114 = vmatpush.bf16.msra.mxu0 %v2050
    %2115 = vmatpush.bf16.msra.mxu0 %v2049
    %2116 = vmatpush.bf16.msra.mxu0 %v2048
    %2117 = vmatpush.bf16.msra.mxu0 %v2047
    %2118 = vmatpush.bf16.msra.mxu0 %v2046
    %2119 = vmatmul.bf16.gmra.mxu0 %v1927
    %v2120 = vpop.f32.mrf.mxu0
    %v2121 = vadd.f32 %v2107, %v2120
    %v2122 = vpop.f32.mrf.mxu0
    %v2123 = vadd.f32 %v2109, %v2122
    %2124 = vdwg.mxu0
    %2125 = vmatpush.bf16.msra.mxu0 0
    %2126 = vmatpush.bf16.msra.mxu0 0
    %2127 = vmatpush.bf16.msra.mxu0 0
    %2128 = vmatpush.bf16.msra.mxu0 0
    %2129 = vmatpush.bf16.msra.mxu0 0
    %2130 = vmatpush.bf16.msra.mxu0 0
    %2131 = vmatpush.bf16.msra.mxu0 0
    %2132 = vmatpush.bf16.msra.mxu0 %v2054
    %2133 = vmatmul.bf16.gmra.mxu0 %v2081
    %v2134 = vpop.f32.mrf.mxu0
    %v2135 = vadd.f32 %v2121, %v2134
    %v2136 = vpop.f32.mrf.mxu0
    %v2137 = vadd.f32 %v2123, %v2136
    %2138 = vdwg.mxu0
    %v2139 = vmul.f32 %v2135, 0.5
    %v2140 = vmul.f32 %v2137, 0.5
    %v2141 = vmul.f32 %v2139, 1.442695
    %v2142 = vpow.pop %v2141
    %v2143 = vmul.f32 %v2140, 1.442695
    %v2144 = vpow.pop %v2143
    %2147 = vrot.lane.b32.xlu0 %v2142, 112
    %v2148 = vpop.permute.xlu0 %2147
    %2149 = vrot.lane.b32.xlu0 %v2144, 112
    %v2150 = vpop.permute.xlu0 %2149
    %v2153 = vmul.f32 %v495, %v2148
    %v2154 = vmul.f32 %v496, %v2150
    %v2155 = vadd.f32 %v2135, %v2153
    %v2156 = vadd.f32 %v2137, %v2154
    %v2157 = vsel %vm1521, %v2155, -inf
    %2158 = vmax.xlane.f32.xlu0 %v2157
    %v2159 = vpop.xlane.xlu0 %2158
    %v2160 = vsel %vm1521, %v2156, -inf
    %2161 = vmax.xlane.f32.xlu0 %v2160
    %v2162 = vpop.xlane.xlu0 %2161
    %v2163 = vsub.f32 %v2155, %v2159
    %v2164 = vsub.f32 %v2156, %v2162
    %v2165 = vmul.f32 %v2163, 1.442695
    %v2166 = vpow.pop %v2165
    %v2167 = vmul.f32 %v2164, 1.442695
    %v2168 = vpow.pop %v2167
    %v2169 = vsel %vm1521, %v2166, 0.0
    %2170 = vadd.xlane.f32.xlu0 %v2169
    %v2171 = vpop.xlane.xlu0 %2170
    %v2172 = vsel %vm1521, %v2168, 0.0
    %2173 = vadd.xlane.f32.xlu0 %v2172
    %v2174 = vpop.xlane.xlu0 %2173
    %v2175 = vrcp.pop %v2171
    %v2176 = vrcp.pop %v2174
    %v2177 = vmul.f32 %v2166, %v2175
    %v2178 = vmul.f32 %v2168, %v2176
    %v2179 = vpack.c.bf16 %v2178, %v2177
    %v2181 = vperm.slane %v34, 0
    %v2182 = vperm.slane %v34, 1
    %v2183 = vperm.slane %v34, 2
    %v2184 = vperm.slane %v34, 3
    %v2193 = vunpack.c.l.b16 %v283
    %v2194 = vunpack.c.h.b16 %v283
    %v2195 = vunpack.c.l.b16 %v284
    %v2196 = vunpack.c.h.b16 %v284
    %v2197 = vunpack.c.l.b16 %v285
    %v2198 = vunpack.c.h.b16 %v285
    %v2199 = vunpack.c.l.b16 %v286
    %v2200 = vunpack.c.h.b16 %v286
    %v2201 = vpack.c.b16 %v2197, %v2193
    %v2202 = vpack.c.b16 %v2198, %v2194
    %v2203 = vpack.c.b16 %v2199, %v2195
    %v2204 = vpack.c.b16 %v2200, %v2196
    %v2210 = vsel %vm1521, %v2179, 0
    %2212 = vmatpush.bf16.msra.mxu0 0
    %2213 = vmatpush.bf16.msra.mxu0 0
    %2214 = vmatpush.bf16.msra.mxu0 0
    %2215 = vmatpush.bf16.msra.mxu0 0
    %2216 = vmatpush.bf16.msra.mxu0 0
    %2217 = vmatpush.bf16.msra.mxu0 0
    %2218 = vmatpush.bf16.msra.mxu0 0
    %2219 = vmatpush.bf16.msra.mxu0 %v2201
    %2220 = vmatmul.bf16.gmra.mxu0 %v2210
    %v2221 = vpop.f32.mrf.mxu0
    %v2222 = vadd.f32 %v2181, %v2221
    %v2223 = vpop.f32.mrf.mxu0
    %v2224 = vadd.f32 %v2181, %v2223
    %2225 = vdwg.mxu0
    %2226 = vmatpush.bf16.msra.mxu0 0
    %2227 = vmatpush.bf16.msra.mxu0 0
    %2228 = vmatpush.bf16.msra.mxu0 0
    %2229 = vmatpush.bf16.msra.mxu0 0
    %2230 = vmatpush.bf16.msra.mxu0 0
    %2231 = vmatpush.bf16.msra.mxu0 0
    %2232 = vmatpush.bf16.msra.mxu0 0
    %2233 = vmatpush.bf16.msra.mxu0 %v2202
    %2234 = vmatmul.bf16.gmra.mxu0 %v2210
    %v2235 = vpop.f32.mrf.mxu0
    %v2236 = vadd.f32 %v2182, %v2235
    %v2237 = vpop.f32.mrf.mxu0
    %v2238 = vadd.f32 %v2182, %v2237
    %2239 = vdwg.mxu0
    %2240 = vmatpush.bf16.msra.mxu0 0
    %2241 = vmatpush.bf16.msra.mxu0 0
    %2242 = vmatpush.bf16.msra.mxu0 0
    %2243 = vmatpush.bf16.msra.mxu0 0
    %2244 = vmatpush.bf16.msra.mxu0 0
    %2245 = vmatpush.bf16.msra.mxu0 0
    %2246 = vmatpush.bf16.msra.mxu0 0
    %2247 = vmatpush.bf16.msra.mxu0 %v2203
    %2248 = vmatmul.bf16.gmra.mxu0 %v2210
    %v2249 = vpop.f32.mrf.mxu0
    %v2250 = vadd.f32 %v2183, %v2249
    %v2251 = vpop.f32.mrf.mxu0
    %v2252 = vadd.f32 %v2183, %v2251
    %2253 = vdwg.mxu0
    %2254 = vmatpush.bf16.msra.mxu0 0
    %2255 = vmatpush.bf16.msra.mxu0 0
    %2256 = vmatpush.bf16.msra.mxu0 0
    %2257 = vmatpush.bf16.msra.mxu0 0
    %2258 = vmatpush.bf16.msra.mxu0 0
    %2259 = vmatpush.bf16.msra.mxu0 0
    %2260 = vmatpush.bf16.msra.mxu0 0
    %2261 = vmatpush.bf16.msra.mxu0 %v2204
    %2262 = vmatmul.bf16.gmra.mxu0 %v2210
    %v2263 = vpop.f32.mrf.mxu0
    %v2264 = vadd.f32 %v2184, %v2263
    %v2265 = vpop.f32.mrf.mxu0
    %v2266 = vadd.f32 %v2184, %v2265
    %2267 = vdwg.mxu0
    %v2268 = vmax.f32 %v2222, 0.0
    %v2269 = vmax.f32 %v2236, 0.0
    %v2270 = vmax.f32 %v2250, 0.0
    %v2271 = vmax.f32 %v2264, 0.0
    %v2272 = vmax.f32 %v2224, 0.0
    %v2273 = vmax.f32 %v2238, 0.0
    %v2274 = vmax.f32 %v2252, 0.0
    %v2275 = vmax.f32 %v2266, 0.0
    %v2276 = vpack.c.bf16 %v2272, %v2268
    %v2277 = vpack.c.bf16 %v2273, %v2269
    %v2278 = vpack.c.bf16 %v2274, %v2270
    %v2279 = vpack.c.bf16 %v2275, %v2271
    %v2281 = vperm.slane %v36, 0
    %v2282 = vperm.slane %v36, 1
    %v2283 = vperm.slane %v36, 2
    %v2284 = vperm.slane %v36, 3
    %v2285 = vperm.slane %v36, 4
    %v2286 = vperm.slane %v36, 5
    %v2287 = vperm.slane %v36, 6
    %v2495 = vunpack.c.l.b16 %v287
    %v2496 = vunpack.c.h.b16 %v287
    %v2497 = vunpack.c.l.b16 %v288
    %v2498 = vunpack.c.h.b16 %v288
    %v2499 = vunpack.c.l.b16 %v289
    %v2500 = vunpack.c.h.b16 %v289
    %v2501 = vunpack.c.l.b16 %v290
    %v2502 = vunpack.c.l.b16 %v291
    %v2503 = vunpack.c.h.b16 %v291
    %v2504 = vunpack.c.l.b16 %v292
    %v2505 = vunpack.c.h.b16 %v292
    %v2506 = vunpack.c.l.b16 %v293
    %v2507 = vunpack.c.h.b16 %v293
    %v2508 = vunpack.c.l.b16 %v294
    %v2509 = vunpack.c.l.b16 %v295
    %v2510 = vunpack.c.h.b16 %v295
    %v2511 = vunpack.c.l.b16 %v296
    %v2512 = vunpack.c.h.b16 %v296
    %v2513 = vunpack.c.l.b16 %v297
    %v2514 = vunpack.c.h.b16 %v297
    %v2515 = vunpack.c.l.b16 %v298
    %v2516 = vunpack.c.l.b16 %v299
    %v2517 = vunpack.c.h.b16 %v299
    %v2518 = vunpack.c.l.b16 %v300
    %v2519 = vunpack.c.h.b16 %v300
    %v2520 = vunpack.c.l.b16 %v301
    %v2521 = vunpack.c.h.b16 %v301
    %v2522 = vunpack.c.l.b16 %v302
    %v2523 = vunpack.c.l.b16 %v303
    %v2524 = vunpack.c.h.b16 %v303
    %v2525 = vunpack.c.l.b16 %v304
    %v2526 = vunpack.c.h.b16 %v304
    %v2527 = vunpack.c.l.b16 %v305
    %v2528 = vunpack.c.h.b16 %v305
    %v2529 = vunpack.c.l.b16 %v306
    %v2530 = vunpack.c.l.b16 %v307
    %v2531 = vunpack.c.h.b16 %v307
    %v2532 = vunpack.c.l.b16 %v308
    %v2533 = vunpack.c.h.b16 %v308
    %v2534 = vunpack.c.l.b16 %v309
    %v2535 = vunpack.c.h.b16 %v309
    %v2536 = vunpack.c.l.b16 %v310
    %v2537 = vunpack.c.l.b16 %v311
    %v2538 = vunpack.c.h.b16 %v311
    %v2539 = vunpack.c.l.b16 %v312
    %v2540 = vunpack.c.h.b16 %v312
    %v2541 = vunpack.c.l.b16 %v313
    %v2542 = vunpack.c.h.b16 %v313
    %v2543 = vunpack.c.l.b16 %v314
    %v2544 = vunpack.c.l.b16 %v315
    %v2545 = vunpack.c.h.b16 %v315
    %v2546 = vunpack.c.l.b16 %v316
    %v2547 = vunpack.c.h.b16 %v316
    %v2548 = vunpack.c.l.b16 %v317
    %v2549 = vunpack.c.h.b16 %v317
    %v2550 = vunpack.c.l.b16 %v318
    %v2551 = vunpack.c.l.b16 %v319
    %v2552 = vunpack.c.h.b16 %v319
    %v2553 = vunpack.c.l.b16 %v320
    %v2554 = vunpack.c.h.b16 %v320
    %v2555 = vunpack.c.l.b16 %v321
    %v2556 = vunpack.c.h.b16 %v321
    %v2557 = vunpack.c.l.b16 %v322
    %v2558 = vunpack.c.l.b16 %v323
    %v2559 = vunpack.c.h.b16 %v323
    %v2560 = vunpack.c.l.b16 %v324
    %v2561 = vunpack.c.h.b16 %v324
    %v2562 = vunpack.c.l.b16 %v325
    %v2563 = vunpack.c.h.b16 %v325
    %v2564 = vunpack.c.l.b16 %v326
    %v2565 = vunpack.c.l.b16 %v327
    %v2566 = vunpack.c.h.b16 %v327
    %v2567 = vunpack.c.l.b16 %v328
    %v2568 = vunpack.c.h.b16 %v328
    %v2569 = vunpack.c.l.b16 %v329
    %v2570 = vunpack.c.h.b16 %v329
    %v2571 = vunpack.c.l.b16 %v330
    %v2572 = vunpack.c.l.b16 %v331
    %v2573 = vunpack.c.h.b16 %v331
    %v2574 = vunpack.c.l.b16 %v332
    %v2575 = vunpack.c.h.b16 %v332
    %v2576 = vunpack.c.l.b16 %v333
    %v2577 = vunpack.c.h.b16 %v333
    %v2578 = vunpack.c.l.b16 %v334
    %v2579 = vunpack.c.l.b16 %v335
    %v2580 = vunpack.c.h.b16 %v335
    %v2581 = vunpack.c.l.b16 %v336
    %v2582 = vunpack.c.h.b16 %v336
    %v2583 = vunpack.c.l.b16 %v337
    %v2584 = vunpack.c.h.b16 %v337
    %v2585 = vunpack.c.l.b16 %v338
    %v2586 = vunpack.c.l.b16 %v339
    %v2587 = vunpack.c.h.b16 %v339
    %v2588 = vunpack.c.l.b16 %v340
    %v2589 = vunpack.c.h.b16 %v340
    %v2590 = vunpack.c.l.b16 %v341
    %v2591 = vunpack.c.h.b16 %v341
    %v2592 = vunpack.c.l.b16 %v342
    %v2593 = vunpack.c.l.b16 %v343
    %v2594 = vunpack.c.h.b16 %v343
    %v2595 = vunpack.c.l.b16 %v344
    %v2596 = vunpack.c.h.b16 %v344
    %v2597 = vunpack.c.l.b16 %v345
    %v2598 = vunpack.c.h.b16 %v345
    %v2599 = vunpack.c.l.b16 %v346
    %v2600 = vunpack.c.l.b16 %v347
    %v2601 = vunpack.c.h.b16 %v347
    %v2602 = vunpack.c.l.b16 %v348
    %v2603 = vunpack.c.h.b16 %v348
    %v2604 = vunpack.c.l.b16 %v349
    %v2605 = vunpack.c.h.b16 %v349
    %v2606 = vunpack.c.l.b16 %v350
    %v2607 = vunpack.c.l.b16 %v351
    %v2608 = vunpack.c.h.b16 %v351
    %v2609 = vunpack.c.l.b16 %v352
    %v2610 = vunpack.c.h.b16 %v352
    %v2611 = vunpack.c.l.b16 %v353
    %v2612 = vunpack.c.h.b16 %v353
    %v2613 = vunpack.c.l.b16 %v354
    %v2614 = vunpack.c.l.b16 %v355
    %v2615 = vunpack.c.h.b16 %v355
    %v2616 = vunpack.c.l.b16 %v356
    %v2617 = vunpack.c.h.b16 %v356
    %v2618 = vunpack.c.l.b16 %v357
    %v2619 = vunpack.c.h.b16 %v357
    %v2620 = vunpack.c.l.b16 %v358
    %v2621 = vunpack.c.l.b16 %v359
    %v2622 = vunpack.c.h.b16 %v359
    %v2623 = vunpack.c.l.b16 %v360
    %v2624 = vunpack.c.h.b16 %v360
    %v2625 = vunpack.c.l.b16 %v361
    %v2626 = vunpack.c.h.b16 %v361
    %v2627 = vunpack.c.l.b16 %v362
    %v2628 = vunpack.c.l.b16 %v363
    %v2629 = vunpack.c.h.b16 %v363
    %v2630 = vunpack.c.l.b16 %v364
    %v2631 = vunpack.c.h.b16 %v364
    %v2632 = vunpack.c.l.b16 %v365
    %v2633 = vunpack.c.h.b16 %v365
    %v2634 = vunpack.c.l.b16 %v366
    %v2635 = vunpack.c.l.b16 %v367
    %v2636 = vunpack.c.h.b16 %v367
    %v2637 = vunpack.c.l.b16 %v368
    %v2638 = vunpack.c.h.b16 %v368
    %v2639 = vunpack.c.l.b16 %v369
    %v2640 = vunpack.c.h.b16 %v369
    %v2641 = vunpack.c.l.b16 %v370
    %v2642 = vunpack.c.l.b16 %v371
    %v2643 = vunpack.c.h.b16 %v371
    %v2644 = vunpack.c.l.b16 %v372
    %v2645 = vunpack.c.h.b16 %v372
    %v2646 = vunpack.c.l.b16 %v373
    %v2647 = vunpack.c.h.b16 %v373
    %v2648 = vunpack.c.l.b16 %v374
    %v2649 = vunpack.c.l.b16 %v375
    %v2650 = vunpack.c.h.b16 %v375
    %v2651 = vunpack.c.l.b16 %v376
    %v2652 = vunpack.c.h.b16 %v376
    %v2653 = vunpack.c.l.b16 %v377
    %v2654 = vunpack.c.h.b16 %v377
    %v2655 = vunpack.c.l.b16 %v378
    %v2656 = vunpack.c.l.b16 %v379
    %v2657 = vunpack.c.h.b16 %v379
    %v2658 = vunpack.c.l.b16 %v380
    %v2659 = vunpack.c.h.b16 %v380
    %v2660 = vunpack.c.l.b16 %v381
    %v2661 = vunpack.c.h.b16 %v381
    %v2662 = vunpack.c.l.b16 %v382
    %v2663 = vunpack.c.l.b16 %v383
    %v2664 = vunpack.c.h.b16 %v383
    %v2665 = vunpack.c.l.b16 %v384
    %v2666 = vunpack.c.h.b16 %v384
    %v2667 = vunpack.c.l.b16 %v385
    %v2668 = vunpack.c.h.b16 %v385
    %v2669 = vunpack.c.l.b16 %v386
    %v2670 = vunpack.c.l.b16 %v387
    %v2671 = vunpack.c.h.b16 %v387
    %v2672 = vunpack.c.l.b16 %v388
    %v2673 = vunpack.c.h.b16 %v388
    %v2674 = vunpack.c.l.b16 %v389
    %v2675 = vunpack.c.h.b16 %v389
    %v2676 = vunpack.c.l.b16 %v390
    %v2677 = vunpack.c.l.b16 %v391
    %v2678 = vunpack.c.h.b16 %v391
    %v2679 = vunpack.c.l.b16 %v392
    %v2680 = vunpack.c.h.b16 %v392
    %v2681 = vunpack.c.l.b16 %v393
    %v2682 = vunpack.c.h.b16 %v393
    %v2683 = vunpack.c.l.b16 %v394
    %v2684 = vunpack.c.l.b16 %v395
    %v2685 = vunpack.c.h.b16 %v395
    %v2686 = vunpack.c.l.b16 %v396
    %v2687 = vunpack.c.h.b16 %v396
    %v2688 = vunpack.c.l.b16 %v397
    %v2689 = vunpack.c.h.b16 %v397
    %v2690 = vunpack.c.l.b16 %v398
    %v2691 = vunpack.c.l.b16 %v399
    %v2692 = vunpack.c.h.b16 %v399
    %v2693 = vunpack.c.l.b16 %v400
    %v2694 = vunpack.c.h.b16 %v400
    %v2695 = vunpack.c.l.b16 %v401
    %v2696 = vunpack.c.h.b16 %v401
    %v2697 = vunpack.c.l.b16 %v402
    %v2698 = vunpack.c.l.b16 %v403
    %v2699 = vunpack.c.h.b16 %v403
    %v2700 = vunpack.c.l.b16 %v404
    %v2701 = vunpack.c.h.b16 %v404
    %v2702 = vunpack.c.l.b16 %v405
    %v2703 = vunpack.c.h.b16 %v405
    %v2704 = vunpack.c.l.b16 %v406
    %v2705 = vunpack.c.l.b16 %v407
    %v2706 = vunpack.c.h.b16 %v407
    %v2707 = vunpack.c.l.b16 %v408
    %v2708 = vunpack.c.h.b16 %v408
    %v2709 = vunpack.c.l.b16 %v409
    %v2710 = vunpack.c.h.b16 %v409
    %v2711 = vunpack.c.l.b16 %v410
    %v2712 = vunpack.c.l.b16 %v411
    %v2713 = vunpack.c.h.b16 %v411
    %v2714 = vunpack.c.l.b16 %v412
    %v2715 = vunpack.c.h.b16 %v412
    %v2716 = vunpack.c.l.b16 %v413
    %v2717 = vunpack.c.h.b16 %v413
    %v2718 = vunpack.c.l.b16 %v414
    %v2719 = vunpack.c.l.b16 %v415
    %v2720 = vunpack.c.h.b16 %v415
    %v2721 = vunpack.c.l.b16 %v416
    %v2722 = vunpack.c.h.b16 %v416
    %v2723 = vunpack.c.l.b16 %v417
    %v2724 = vunpack.c.h.b16 %v417
    %v2725 = vunpack.c.l.b16 %v418
    %v2726 = vunpack.c.l.b16 %v419
    %v2727 = vunpack.c.h.b16 %v419
    %v2728 = vunpack.c.l.b16 %v420
    %v2729 = vunpack.c.h.b16 %v420
    %v2730 = vunpack.c.l.b16 %v421
    %v2731 = vunpack.c.h.b16 %v421
    %v2732 = vunpack.c.l.b16 %v422
    %v2733 = vunpack.c.l.b16 %v423
    %v2734 = vunpack.c.h.b16 %v423
    %v2735 = vunpack.c.l.b16 %v424
    %v2736 = vunpack.c.h.b16 %v424
    %v2737 = vunpack.c.l.b16 %v425
    %v2738 = vunpack.c.h.b16 %v425
    %v2739 = vunpack.c.l.b16 %v426
    %v2740 = vunpack.c.l.b16 %v427
    %v2741 = vunpack.c.h.b16 %v427
    %v2742 = vunpack.c.l.b16 %v428
    %v2743 = vunpack.c.h.b16 %v428
    %v2744 = vunpack.c.l.b16 %v429
    %v2745 = vunpack.c.h.b16 %v429
    %v2746 = vunpack.c.l.b16 %v430
    %v2747 = vunpack.c.l.b16 %v431
    %v2748 = vunpack.c.h.b16 %v431
    %v2749 = vunpack.c.l.b16 %v432
    %v2750 = vunpack.c.h.b16 %v432
    %v2751 = vunpack.c.l.b16 %v433
    %v2752 = vunpack.c.h.b16 %v433
    %v2753 = vunpack.c.l.b16 %v434
    %v2754 = vunpack.c.l.b16 %v435
    %v2755 = vunpack.c.h.b16 %v435
    %v2756 = vunpack.c.l.b16 %v436
    %v2757 = vunpack.c.h.b16 %v436
    %v2758 = vunpack.c.l.b16 %v437
    %v2759 = vunpack.c.h.b16 %v437
    %v2760 = vunpack.c.l.b16 %v438
    %v2761 = vunpack.c.l.b16 %v439
    %v2762 = vunpack.c.h.b16 %v439
    %v2763 = vunpack.c.l.b16 %v440
    %v2764 = vunpack.c.h.b16 %v440
    %v2765 = vunpack.c.l.b16 %v441
    %v2766 = vunpack.c.h.b16 %v441
    %v2767 = vunpack.c.l.b16 %v442
    %v2768 = vunpack.c.l.b16 %v443
    %v2769 = vunpack.c.h.b16 %v443
    %v2770 = vunpack.c.l.b16 %v444
    %v2771 = vunpack.c.h.b16 %v444
    %v2772 = vunpack.c.l.b16 %v445
    %v2773 = vunpack.c.h.b16 %v445
    %v2774 = vunpack.c.l.b16 %v446
    %v2775 = vunpack.c.l.b16 %v447
    %v2776 = vunpack.c.h.b16 %v447
    %v2777 = vunpack.c.l.b16 %v448
    %v2778 = vunpack.c.h.b16 %v448
    %v2779 = vunpack.c.l.b16 %v449
    %v2780 = vunpack.c.h.b16 %v449
    %v2781 = vunpack.c.l.b16 %v450
    %v2782 = vunpack.c.l.b16 %v451
    %v2783 = vunpack.c.h.b16 %v451
    %v2784 = vunpack.c.l.b16 %v452
    %v2785 = vunpack.c.h.b16 %v452
    %v2786 = vunpack.c.l.b16 %v453
    %v2787 = vunpack.c.h.b16 %v453
    %v2788 = vunpack.c.l.b16 %v454
    %v2789 = vunpack.c.l.b16 %v455
    %v2790 = vunpack.c.h.b16 %v455
    %v2791 = vunpack.c.l.b16 %v456
    %v2792 = vunpack.c.h.b16 %v456
    %v2793 = vunpack.c.l.b16 %v457
    %v2794 = vunpack.c.h.b16 %v457
    %v2795 = vunpack.c.l.b16 %v458
    %v2796 = vunpack.c.l.b16 %v459
    %v2797 = vunpack.c.h.b16 %v459
    %v2798 = vunpack.c.l.b16 %v460
    %v2799 = vunpack.c.h.b16 %v460
    %v2800 = vunpack.c.l.b16 %v461
    %v2801 = vunpack.c.h.b16 %v461
    %v2802 = vunpack.c.l.b16 %v462
    %v2803 = vunpack.c.l.b16 %v463
    %v2804 = vunpack.c.h.b16 %v463
    %v2805 = vunpack.c.l.b16 %v464
    %v2806 = vunpack.c.h.b16 %v464
    %v2807 = vunpack.c.l.b16 %v465
    %v2808 = vunpack.c.h.b16 %v465
    %v2809 = vunpack.c.l.b16 %v466
    %v2810 = vunpack.c.l.b16 %v467
    %v2811 = vunpack.c.h.b16 %v467
    %v2812 = vunpack.c.l.b16 %v468
    %v2813 = vunpack.c.h.b16 %v468
    %v2814 = vunpack.c.l.b16 %v469
    %v2815 = vunpack.c.h.b16 %v469
    %v2816 = vunpack.c.l.b16 %v470
    %v2817 = vunpack.c.l.b16 %v471
    %v2818 = vunpack.c.h.b16 %v471
    %v2819 = vunpack.c.l.b16 %v472
    %v2820 = vunpack.c.h.b16 %v472
    %v2821 = vunpack.c.l.b16 %v473
    %v2822 = vunpack.c.h.b16 %v473
    %v2823 = vunpack.c.l.b16 %v474
    %v2824 = vunpack.c.l.b16 %v475
    %v2825 = vunpack.c.h.b16 %v475
    %v2826 = vunpack.c.l.b16 %v476
    %v2827 = vunpack.c.h.b16 %v476
    %v2828 = vunpack.c.l.b16 %v477
    %v2829 = vunpack.c.h.b16 %v477
    %v2830 = vunpack.c.l.b16 %v478
    %v2831 = vunpack.c.l.b16 %v479
    %v2832 = vunpack.c.h.b16 %v479
    %v2833 = vunpack.c.l.b16 %v480
    %v2834 = vunpack.c.h.b16 %v480
    %v2835 = vunpack.c.l.b16 %v481
    %v2836 = vunpack.c.h.b16 %v481
    %v2837 = vunpack.c.l.b16 %v482
    %v2838 = vunpack.c.l.b16 %v483
    %v2839 = vunpack.c.h.b16 %v483
    %v2840 = vunpack.c.l.b16 %v484
    %v2841 = vunpack.c.h.b16 %v484
    %v2842 = vunpack.c.l.b16 %v485
    %v2843 = vunpack.c.h.b16 %v485
    %v2844 = vunpack.c.l.b16 %v486
    %v2845 = vpack.c.b16 %v2502, %v2495
    %v2846 = vpack.c.b16 %v2503, %v2496
    %v2847 = vpack.c.b16 %v2504, %v2497
    %v2848 = vpack.c.b16 %v2505, %v2498
    %v2849 = vpack.c.b16 %v2506, %v2499
    %v2850 = vpack.c.b16 %v2507, %v2500
    %v2851 = vpack.c.b16 %v2508, %v2501
    %v2852 = vpack.c.b16 %v2516, %v2509
    %v2853 = vpack.c.b16 %v2517, %v2510
    %v2854 = vpack.c.b16 %v2518, %v2511
    %v2855 = vpack.c.b16 %v2519, %v2512
    %v2856 = vpack.c.b16 %v2520, %v2513
    %v2857 = vpack.c.b16 %v2521, %v2514
    %v2858 = vpack.c.b16 %v2522, %v2515
    %v2859 = vpack.c.b16 %v2530, %v2523
    %v2860 = vpack.c.b16 %v2531, %v2524
    %v2861 = vpack.c.b16 %v2532, %v2525
    %v2862 = vpack.c.b16 %v2533, %v2526
    %v2863 = vpack.c.b16 %v2534, %v2527
    %v2864 = vpack.c.b16 %v2535, %v2528
    %v2865 = vpack.c.b16 %v2536, %v2529
    %v2866 = vpack.c.b16 %v2544, %v2537
    %v2867 = vpack.c.b16 %v2545, %v2538
    %v2868 = vpack.c.b16 %v2546, %v2539
    %v2869 = vpack.c.b16 %v2547, %v2540
    %v2870 = vpack.c.b16 %v2548, %v2541
    %v2871 = vpack.c.b16 %v2549, %v2542
    %v2872 = vpack.c.b16 %v2550, %v2543
    %v2873 = vpack.c.b16 %v2558, %v2551
    %v2874 = vpack.c.b16 %v2559, %v2552
    %v2875 = vpack.c.b16 %v2560, %v2553
    %v2876 = vpack.c.b16 %v2561, %v2554
    %v2877 = vpack.c.b16 %v2562, %v2555
    %v2878 = vpack.c.b16 %v2563, %v2556
    %v2879 = vpack.c.b16 %v2564, %v2557
    %v2880 = vpack.c.b16 %v2572, %v2565
    %v2881 = vpack.c.b16 %v2573, %v2566
    %v2882 = vpack.c.b16 %v2574, %v2567
    %v2883 = vpack.c.b16 %v2575, %v2568
    %v2884 = vpack.c.b16 %v2576, %v2569
    %v2885 = vpack.c.b16 %v2577, %v2570
    %v2886 = vpack.c.b16 %v2578, %v2571
    %v2887 = vpack.c.b16 %v2586, %v2579
    %v2888 = vpack.c.b16 %v2587, %v2580
    %v2889 = vpack.c.b16 %v2588, %v2581
    %v2890 = vpack.c.b16 %v2589, %v2582
    %v2891 = vpack.c.b16 %v2590, %v2583
    %v2892 = vpack.c.b16 %v2591, %v2584
    %v2893 = vpack.c.b16 %v2592, %v2585
    %v2894 = vpack.c.b16 %v2600, %v2593
    %v2895 = vpack.c.b16 %v2601, %v2594
    %v2896 = vpack.c.b16 %v2602, %v2595
    %v2897 = vpack.c.b16 %v2603, %v2596
    %v2898 = vpack.c.b16 %v2604, %v2597
    %v2899 = vpack.c.b16 %v2605, %v2598
    %v2900 = vpack.c.b16 %v2606, %v2599
    %v2901 = vpack.c.b16 %v2614, %v2607
    %v2902 = vpack.c.b16 %v2615, %v2608
    %v2903 = vpack.c.b16 %v2616, %v2609
    %v2904 = vpack.c.b16 %v2617, %v2610
    %v2905 = vpack.c.b16 %v2618, %v2611
    %v2906 = vpack.c.b16 %v2619, %v2612
    %v2907 = vpack.c.b16 %v2620, %v2613
    %v2908 = vpack.c.b16 %v2628, %v2621
    %v2909 = vpack.c.b16 %v2629, %v2622
    %v2910 = vpack.c.b16 %v2630, %v2623
    %v2911 = vpack.c.b16 %v2631, %v2624
    %v2912 = vpack.c.b16 %v2632, %v2625
    %v2913 = vpack.c.b16 %v2633, %v2626
    %v2914 = vpack.c.b16 %v2634, %v2627
    %v2915 = vpack.c.b16 %v2642, %v2635
    %v2916 = vpack.c.b16 %v2643, %v2636
    %v2917 = vpack.c.b16 %v2644, %v2637
    %v2918 = vpack.c.b16 %v2645, %v2638
    %v2919 = vpack.c.b16 %v2646, %v2639
    %v2920 = vpack.c.b16 %v2647, %v2640
    %v2921 = vpack.c.b16 %v2648, %v2641
    %v2922 = vpack.c.b16 %v2656, %v2649
    %v2923 = vpack.c.b16 %v2657, %v2650
    %v2924 = vpack.c.b16 %v2658, %v2651
    %v2925 = vpack.c.b16 %v2659, %v2652
    %v2926 = vpack.c.b16 %v2660, %v2653
    %v2927 = vpack.c.b16 %v2661, %v2654
    %v2928 = vpack.c.b16 %v2662, %v2655
    %v2929 = vpack.c.b16 %v2670, %v2663
    %v2930 = vpack.c.b16 %v2671, %v2664
    %v2931 = vpack.c.b16 %v2672, %v2665
    %v2932 = vpack.c.b16 %v2673, %v2666
    %v2933 = vpack.c.b16 %v2674, %v2667
    %v2934 = vpack.c.b16 %v2675, %v2668
    %v2935 = vpack.c.b16 %v2676, %v2669
    %v2936 = vpack.c.b16 %v2684, %v2677
    %v2937 = vpack.c.b16 %v2685, %v2678
    %v2938 = vpack.c.b16 %v2686, %v2679
    %v2939 = vpack.c.b16 %v2687, %v2680
    %v2940 = vpack.c.b16 %v2688, %v2681
    %v2941 = vpack.c.b16 %v2689, %v2682
    %v2942 = vpack.c.b16 %v2690, %v2683
    %v2943 = vpack.c.b16 %v2698, %v2691
    %v2944 = vpack.c.b16 %v2699, %v2692
    %v2945 = vpack.c.b16 %v2700, %v2693
    %v2946 = vpack.c.b16 %v2701, %v2694
    %v2947 = vpack.c.b16 %v2702, %v2695
    %v2948 = vpack.c.b16 %v2703, %v2696
    %v2949 = vpack.c.b16 %v2704, %v2697
    %v2950 = vpack.c.b16 %v2712, %v2705
    %v2951 = vpack.c.b16 %v2713, %v2706
    %v2952 = vpack.c.b16 %v2714, %v2707
    %v2953 = vpack.c.b16 %v2715, %v2708
    %v2954 = vpack.c.b16 %v2716, %v2709
    %v2955 = vpack.c.b16 %v2717, %v2710
    %v2956 = vpack.c.b16 %v2718, %v2711
    %v2957 = vpack.c.b16 %v2726, %v2719
    %v2958 = vpack.c.b16 %v2727, %v2720
    %v2959 = vpack.c.b16 %v2728, %v2721
    %v2960 = vpack.c.b16 %v2729, %v2722
    %v2961 = vpack.c.b16 %v2730, %v2723
    %v2962 = vpack.c.b16 %v2731, %v2724
    %v2963 = vpack.c.b16 %v2732, %v2725
    %v2964 = vpack.c.b16 %v2740, %v2733
    %v2965 = vpack.c.b16 %v2741, %v2734
    %v2966 = vpack.c.b16 %v2742, %v2735
    %v2967 = vpack.c.b16 %v2743, %v2736
    %v2968 = vpack.c.b16 %v2744, %v2737
    %v2969 = vpack.c.b16 %v2745, %v2738
    %v2970 = vpack.c.b16 %v2746, %v2739
    %v2971 = vpack.c.b16 %v2754, %v2747
    %v2972 = vpack.c.b16 %v2755, %v2748
    %v2973 = vpack.c.b16 %v2756, %v2749
    %v2974 = vpack.c.b16 %v2757, %v2750
    %v2975 = vpack.c.b16 %v2758, %v2751
    %v2976 = vpack.c.b16 %v2759, %v2752
    %v2977 = vpack.c.b16 %v2760, %v2753
    %v2978 = vpack.c.b16 %v2768, %v2761
    %v2979 = vpack.c.b16 %v2769, %v2762
    %v2980 = vpack.c.b16 %v2770, %v2763
    %v2981 = vpack.c.b16 %v2771, %v2764
    %v2982 = vpack.c.b16 %v2772, %v2765
    %v2983 = vpack.c.b16 %v2773, %v2766
    %v2984 = vpack.c.b16 %v2774, %v2767
    %v2985 = vpack.c.b16 %v2782, %v2775
    %v2986 = vpack.c.b16 %v2783, %v2776
    %v2987 = vpack.c.b16 %v2784, %v2777
    %v2988 = vpack.c.b16 %v2785, %v2778
    %v2989 = vpack.c.b16 %v2786, %v2779
    %v2990 = vpack.c.b16 %v2787, %v2780
    %v2991 = vpack.c.b16 %v2788, %v2781
    %v2992 = vpack.c.b16 %v2796, %v2789
    %v2993 = vpack.c.b16 %v2797, %v2790
    %v2994 = vpack.c.b16 %v2798, %v2791
    %v2995 = vpack.c.b16 %v2799, %v2792
    %v2996 = vpack.c.b16 %v2800, %v2793
    %v2997 = vpack.c.b16 %v2801, %v2794
    %v2998 = vpack.c.b16 %v2802, %v2795
    %v2999 = vpack.c.b16 %v2810, %v2803
    %v3000 = vpack.c.b16 %v2811, %v2804
    %v3001 = vpack.c.b16 %v2812, %v2805
    %v3002 = vpack.c.b16 %v2813, %v2806
    %v3003 = vpack.c.b16 %v2814, %v2807
    %v3004 = vpack.c.b16 %v2815, %v2808
    %v3005 = vpack.c.b16 %v2816, %v2809
    %v3006 = vpack.c.b16 %v2824, %v2817
    %v3007 = vpack.c.b16 %v2825, %v2818
    %v3008 = vpack.c.b16 %v2826, %v2819
    %v3009 = vpack.c.b16 %v2827, %v2820
    %v3010 = vpack.c.b16 %v2828, %v2821
    %v3011 = vpack.c.b16 %v2829, %v2822
    %v3012 = vpack.c.b16 %v2830, %v2823
    %v3013 = vpack.c.b16 %v2838, %v2831
    %v3014 = vpack.c.b16 %v2839, %v2832
    %v3015 = vpack.c.b16 %v2840, %v2833
    %v3016 = vpack.c.b16 %v2841, %v2834
    %v3017 = vpack.c.b16 %v2842, %v2835
    %v3018 = vpack.c.b16 %v2843, %v2836
    %v3019 = vpack.c.b16 %v2844, %v2837
    %v3196 = vsel %vm1521, %v2279, 0
    %3198 = vmatpush.bf16.msra.mxu0 %v2894
    %3199 = vmatpush.bf16.msra.mxu0 %v2887
    %3200 = vmatpush.bf16.msra.mxu0 %v2880
    %3201 = vmatpush.bf16.msra.mxu0 %v2873
    %3202 = vmatpush.bf16.msra.mxu0 %v2866
    %3203 = vmatpush.bf16.msra.mxu0 %v2859
    %3204 = vmatpush.bf16.msra.mxu0 %v2852
    %3205 = vmatpush.bf16.msra.mxu0 %v2845
    %3206 = vmatmul.bf16.gmra.mxu0 %v2276
    %v3207 = vpop.f32.mrf.mxu0
    %v3208 = vadd.f32 %v2281, %v3207
    %v3209 = vpop.f32.mrf.mxu0
    %v3210 = vadd.f32 %v2281, %v3209
    %3211 = vdwg.mxu0
    %3212 = vmatpush.bf16.msra.mxu0 %v2950
    %3213 = vmatpush.bf16.msra.mxu0 %v2943
    %3214 = vmatpush.bf16.msra.mxu0 %v2936
    %3215 = vmatpush.bf16.msra.mxu0 %v2929
    %3216 = vmatpush.bf16.msra.mxu0 %v2922
    %3217 = vmatpush.bf16.msra.mxu0 %v2915
    %3218 = vmatpush.bf16.msra.mxu0 %v2908
    %3219 = vmatpush.bf16.msra.mxu0 %v2901
    %3220 = vmatmul.bf16.gmra.mxu0 %v2277
    %v3221 = vpop.f32.mrf.mxu0
    %v3222 = vadd.f32 %v3208, %v3221
    %v3223 = vpop.f32.mrf.mxu0
    %v3224 = vadd.f32 %v3210, %v3223
    %3225 = vdwg.mxu0
    %3226 = vmatpush.bf16.msra.mxu0 %v3006
    %3227 = vmatpush.bf16.msra.mxu0 %v2999
    %3228 = vmatpush.bf16.msra.mxu0 %v2992
    %3229 = vmatpush.bf16.msra.mxu0 %v2985
    %3230 = vmatpush.bf16.msra.mxu0 %v2978
    %3231 = vmatpush.bf16.msra.mxu0 %v2971
    %3232 = vmatpush.bf16.msra.mxu0 %v2964
    %3233 = vmatpush.bf16.msra.mxu0 %v2957
    %3234 = vmatmul.bf16.gmra.mxu0 %v2278
    %v3235 = vpop.f32.mrf.mxu0
    %v3236 = vadd.f32 %v3222, %v3235
    %v3237 = vpop.f32.mrf.mxu0
    %v3238 = vadd.f32 %v3224, %v3237
    %3239 = vdwg.mxu0
    %3240 = vmatpush.bf16.msra.mxu0 0
    %3241 = vmatpush.bf16.msra.mxu0 0
    %3242 = vmatpush.bf16.msra.mxu0 0
    %3243 = vmatpush.bf16.msra.mxu0 0
    %3244 = vmatpush.bf16.msra.mxu0 0
    %3245 = vmatpush.bf16.msra.mxu0 0
    %3246 = vmatpush.bf16.msra.mxu0 0
    %3247 = vmatpush.bf16.msra.mxu0 %v3013
    %3248 = vmatmul.bf16.gmra.mxu0 %v3196
    %v3249 = vpop.f32.mrf.mxu0
    %v3250 = vadd.f32 %v3236, %v3249
    %v3251 = vpop.f32.mrf.mxu0
    %v3252 = vadd.f32 %v3238, %v3251
    %3253 = vdwg.mxu0
    %3254 = vmatpush.bf16.msra.mxu0 %v2895
    %3255 = vmatpush.bf16.msra.mxu0 %v2888
    %3256 = vmatpush.bf16.msra.mxu0 %v2881
    %3257 = vmatpush.bf16.msra.mxu0 %v2874
    %3258 = vmatpush.bf16.msra.mxu0 %v2867
    %3259 = vmatpush.bf16.msra.mxu0 %v2860
    %3260 = vmatpush.bf16.msra.mxu0 %v2853
    %3261 = vmatpush.bf16.msra.mxu0 %v2846
    %3262 = vmatmul.bf16.gmra.mxu0 %v2276
    %v3263 = vpop.f32.mrf.mxu0
    %v3264 = vadd.f32 %v2282, %v3263
    %v3265 = vpop.f32.mrf.mxu0
    %v3266 = vadd.f32 %v2282, %v3265
    %3267 = vdwg.mxu0
    %3268 = vmatpush.bf16.msra.mxu0 %v2951
    %3269 = vmatpush.bf16.msra.mxu0 %v2944
    %3270 = vmatpush.bf16.msra.mxu0 %v2937
    %3271 = vmatpush.bf16.msra.mxu0 %v2930
    %3272 = vmatpush.bf16.msra.mxu0 %v2923
    %3273 = vmatpush.bf16.msra.mxu0 %v2916
    %3274 = vmatpush.bf16.msra.mxu0 %v2909
    %3275 = vmatpush.bf16.msra.mxu0 %v2902
    %3276 = vmatmul.bf16.gmra.mxu0 %v2277
    %v3277 = vpop.f32.mrf.mxu0
    %v3278 = vadd.f32 %v3264, %v3277
    %v3279 = vpop.f32.mrf.mxu0
    %v3280 = vadd.f32 %v3266, %v3279
    %3281 = vdwg.mxu0
    %3282 = vmatpush.bf16.msra.mxu0 %v3007
    %3283 = vmatpush.bf16.msra.mxu0 %v3000
    %3284 = vmatpush.bf16.msra.mxu0 %v2993
    %3285 = vmatpush.bf16.msra.mxu0 %v2986
    %3286 = vmatpush.bf16.msra.mxu0 %v2979
    %3287 = vmatpush.bf16.msra.mxu0 %v2972
    %3288 = vmatpush.bf16.msra.mxu0 %v2965
    %3289 = vmatpush.bf16.msra.mxu0 %v2958
    %3290 = vmatmul.bf16.gmra.mxu0 %v2278
    %v3291 = vpop.f32.mrf.mxu0
    %v3292 = vadd.f32 %v3278, %v3291
    %v3293 = vpop.f32.mrf.mxu0
    %v3294 = vadd.f32 %v3280, %v3293
    %3295 = vdwg.mxu0
    %3296 = vmatpush.bf16.msra.mxu0 0
    %3297 = vmatpush.bf16.msra.mxu0 0
    %3298 = vmatpush.bf16.msra.mxu0 0
    %3299 = vmatpush.bf16.msra.mxu0 0
    %3300 = vmatpush.bf16.msra.mxu0 0
    %3301 = vmatpush.bf16.msra.mxu0 0
    %3302 = vmatpush.bf16.msra.mxu0 0
    %3303 = vmatpush.bf16.msra.mxu0 %v3014
    %3304 = vmatmul.bf16.gmra.mxu0 %v3196
    %v3305 = vpop.f32.mrf.mxu0
    %v3306 = vadd.f32 %v3292, %v3305
    %v3307 = vpop.f32.mrf.mxu0
    %v3308 = vadd.f32 %v3294, %v3307
    %3309 = vdwg.mxu0
    %3310 = vmatpush.bf16.msra.mxu0 %v2896
    %3311 = vmatpush.bf16.msra.mxu0 %v2889
    %3312 = vmatpush.bf16.msra.mxu0 %v2882
    %3313 = vmatpush.bf16.msra.mxu0 %v2875
    %3314 = vmatpush.bf16.msra.mxu0 %v2868
    %3315 = vmatpush.bf16.msra.mxu0 %v2861
    %3316 = vmatpush.bf16.msra.mxu0 %v2854
    %3317 = vmatpush.bf16.msra.mxu0 %v2847
    %3318 = vmatmul.bf16.gmra.mxu0 %v2276
    %v3319 = vpop.f32.mrf.mxu0
    %v3320 = vadd.f32 %v2283, %v3319
    %v3321 = vpop.f32.mrf.mxu0
    %v3322 = vadd.f32 %v2283, %v3321
    %3323 = vdwg.mxu0
    %3324 = vmatpush.bf16.msra.mxu0 %v2952
    %3325 = vmatpush.bf16.msra.mxu0 %v2945
    %3326 = vmatpush.bf16.msra.mxu0 %v2938
    %3327 = vmatpush.bf16.msra.mxu0 %v2931
    %3328 = vmatpush.bf16.msra.mxu0 %v2924
    %3329 = vmatpush.bf16.msra.mxu0 %v2917
    %3330 = vmatpush.bf16.msra.mxu0 %v2910
    %3331 = vmatpush.bf16.msra.mxu0 %v2903
    %3332 = vmatmul.bf16.gmra.mxu0 %v2277
    %v3333 = vpop.f32.mrf.mxu0
    %v3334 = vadd.f32 %v3320, %v3333
    %v3335 = vpop.f32.mrf.mxu0
    %v3336 = vadd.f32 %v3322, %v3335
    %3337 = vdwg.mxu0
    %3338 = vmatpush.bf16.msra.mxu0 %v3008
    %3339 = vmatpush.bf16.msra.mxu0 %v3001
    %3340 = vmatpush.bf16.msra.mxu0 %v2994
    %3341 = vmatpush.bf16.msra.mxu0 %v2987
    %3342 = vmatpush.bf16.msra.mxu0 %v2980
    %3343 = vmatpush.bf16.msra.mxu0 %v2973
    %3344 = vmatpush.bf16.msra.mxu0 %v2966
    %3345 = vmatpush.bf16.msra.mxu0 %v2959
    %3346 = vmatmul.bf16.gmra.mxu0 %v2278
    %v3347 = vpop.f32.mrf.mxu0
    %v3348 = vadd.f32 %v3334, %v3347
    %v3349 = vpop.f32.mrf.mxu0
    %v3350 = vadd.f32 %v3336, %v3349
    %3351 = vdwg.mxu0
    %3352 = vmatpush.bf16.msra.mxu0 0
    %3353 = vmatpush.bf16.msra.mxu0 0
    %3354 = vmatpush.bf16.msra.mxu0 0
    %3355 = vmatpush.bf16.msra.mxu0 0
    %3356 = vmatpush.bf16.msra.mxu0 0
    %3357 = vmatpush.bf16.msra.mxu0 0
    %3358 = vmatpush.bf16.msra.mxu0 0
    %3359 = vmatpush.bf16.msra.mxu0 %v3015
    %3360 = vmatmul.bf16.gmra.mxu0 %v3196
    %v3361 = vpop.f32.mrf.mxu0
    %v3362 = vadd.f32 %v3348, %v3361
    %v3363 = vpop.f32.mrf.mxu0
    %v3364 = vadd.f32 %v3350, %v3363
    %3365 = vdwg.mxu0
    %3366 = vmatpush.bf16.msra.mxu0 %v2897
    %3367 = vmatpush.bf16.msra.mxu0 %v2890
    %3368 = vmatpush.bf16.msra.mxu0 %v2883
    %3369 = vmatpush.bf16.msra.mxu0 %v2876
    %3370 = vmatpush.bf16.msra.mxu0 %v2869
    %3371 = vmatpush.bf16.msra.mxu0 %v2862
    %3372 = vmatpush.bf16.msra.mxu0 %v2855
    %3373 = vmatpush.bf16.msra.mxu0 %v2848
    %3374 = vmatmul.bf16.gmra.mxu0 %v2276
    %v3375 = vpop.f32.mrf.mxu0
    %v3376 = vadd.f32 %v2284, %v3375
    %v3377 = vpop.f32.mrf.mxu0
    %v3378 = vadd.f32 %v2284, %v3377
    %3379 = vdwg.mxu0
    %3380 = vmatpush.bf16.msra.mxu0 %v2953
    %3381 = vmatpush.bf16.msra.mxu0 %v2946
    %3382 = vmatpush.bf16.msra.mxu0 %v2939
    %3383 = vmatpush.bf16.msra.mxu0 %v2932
    %3384 = vmatpush.bf16.msra.mxu0 %v2925
    %3385 = vmatpush.bf16.msra.mxu0 %v2918
    %3386 = vmatpush.bf16.msra.mxu0 %v2911
    %3387 = vmatpush.bf16.msra.mxu0 %v2904
    %3388 = vmatmul.bf16.gmra.mxu0 %v2277
    %v3389 = vpop.f32.mrf.mxu0
    %v3390 = vadd.f32 %v3376, %v3389
    %v3391 = vpop.f32.mrf.mxu0
    %v3392 = vadd.f32 %v3378, %v3391
    %3393 = vdwg.mxu0
    %3394 = vmatpush.bf16.msra.mxu0 %v3009
    %3395 = vmatpush.bf16.msra.mxu0 %v3002
    %3396 = vmatpush.bf16.msra.mxu0 %v2995
    %3397 = vmatpush.bf16.msra.mxu0 %v2988
    %3398 = vmatpush.bf16.msra.mxu0 %v2981
    %3399 = vmatpush.bf16.msra.mxu0 %v2974
    %3400 = vmatpush.bf16.msra.mxu0 %v2967
    %3401 = vmatpush.bf16.msra.mxu0 %v2960
    %3402 = vmatmul.bf16.gmra.mxu0 %v2278
    %v3403 = vpop.f32.mrf.mxu0
    %v3404 = vadd.f32 %v3390, %v3403
    %v3405 = vpop.f32.mrf.mxu0
    %v3406 = vadd.f32 %v3392, %v3405
    %3407 = vdwg.mxu0
    %3408 = vmatpush.bf16.msra.mxu0 0
    %3409 = vmatpush.bf16.msra.mxu0 0
    %3410 = vmatpush.bf16.msra.mxu0 0
    %3411 = vmatpush.bf16.msra.mxu0 0
    %3412 = vmatpush.bf16.msra.mxu0 0
    %3413 = vmatpush.bf16.msra.mxu0 0
    %3414 = vmatpush.bf16.msra.mxu0 0
    %3415 = vmatpush.bf16.msra.mxu0 %v3016
    %3416 = vmatmul.bf16.gmra.mxu0 %v3196
    %v3417 = vpop.f32.mrf.mxu0
    %v3418 = vadd.f32 %v3404, %v3417
    %v3419 = vpop.f32.mrf.mxu0
    %v3420 = vadd.f32 %v3406, %v3419
    %3421 = vdwg.mxu0
    %3422 = vmatpush.bf16.msra.mxu0 %v2898
    %3423 = vmatpush.bf16.msra.mxu0 %v2891
    %3424 = vmatpush.bf16.msra.mxu0 %v2884
    %3425 = vmatpush.bf16.msra.mxu0 %v2877
    %3426 = vmatpush.bf16.msra.mxu0 %v2870
    %3427 = vmatpush.bf16.msra.mxu0 %v2863
    %3428 = vmatpush.bf16.msra.mxu0 %v2856
    %3429 = vmatpush.bf16.msra.mxu0 %v2849
    %3430 = vmatmul.bf16.gmra.mxu0 %v2276
    %v3431 = vpop.f32.mrf.mxu0
    %v3432 = vadd.f32 %v2285, %v3431
    %v3433 = vpop.f32.mrf.mxu0
    %v3434 = vadd.f32 %v2285, %v3433
    %3435 = vdwg.mxu0
    %3436 = vmatpush.bf16.msra.mxu0 %v2954
    %3437 = vmatpush.bf16.msra.mxu0 %v2947
    %3438 = vmatpush.bf16.msra.mxu0 %v2940
    %3439 = vmatpush.bf16.msra.mxu0 %v2933
    %3440 = vmatpush.bf16.msra.mxu0 %v2926
    %3441 = vmatpush.bf16.msra.mxu0 %v2919
    %3442 = vmatpush.bf16.msra.mxu0 %v2912
    %3443 = vmatpush.bf16.msra.mxu0 %v2905
    %3444 = vmatmul.bf16.gmra.mxu0 %v2277
    %v3445 = vpop.f32.mrf.mxu0
    %v3446 = vadd.f32 %v3432, %v3445
    %v3447 = vpop.f32.mrf.mxu0
    %v3448 = vadd.f32 %v3434, %v3447
    %3449 = vdwg.mxu0
    %3450 = vmatpush.bf16.msra.mxu0 %v3010
    %3451 = vmatpush.bf16.msra.mxu0 %v3003
    %3452 = vmatpush.bf16.msra.mxu0 %v2996
    %3453 = vmatpush.bf16.msra.mxu0 %v2989
    %3454 = vmatpush.bf16.msra.mxu0 %v2982
    %3455 = vmatpush.bf16.msra.mxu0 %v2975
    %3456 = vmatpush.bf16.msra.mxu0 %v2968
    %3457 = vmatpush.bf16.msra.mxu0 %v2961
    %3458 = vmatmul.bf16.gmra.mxu0 %v2278
    %v3459 = vpop.f32.mrf.mxu0
    %v3460 = vadd.f32 %v3446, %v3459
    %v3461 = vpop.f32.mrf.mxu0
    %v3462 = vadd.f32 %v3448, %v3461
    %3463 = vdwg.mxu0
    %3464 = vmatpush.bf16.msra.mxu0 0
    %3465 = vmatpush.bf16.msra.mxu0 0
    %3466 = vmatpush.bf16.msra.mxu0 0
    %3467 = vmatpush.bf16.msra.mxu0 0
    %3468 = vmatpush.bf16.msra.mxu0 0
    %3469 = vmatpush.bf16.msra.mxu0 0
    %3470 = vmatpush.bf16.msra.mxu0 0
    %3471 = vmatpush.bf16.msra.mxu0 %v3017
    %3472 = vmatmul.bf16.gmra.mxu0 %v3196
    %v3473 = vpop.f32.mrf.mxu0
    %v3474 = vadd.f32 %v3460, %v3473
    %v3475 = vpop.f32.mrf.mxu0
    %v3476 = vadd.f32 %v3462, %v3475
    %3477 = vdwg.mxu0
    %3478 = vmatpush.bf16.msra.mxu0 %v2899
    %3479 = vmatpush.bf16.msra.mxu0 %v2892
    %3480 = vmatpush.bf16.msra.mxu0 %v2885
    %3481 = vmatpush.bf16.msra.mxu0 %v2878
    %3482 = vmatpush.bf16.msra.mxu0 %v2871
    %3483 = vmatpush.bf16.msra.mxu0 %v2864
    %3484 = vmatpush.bf16.msra.mxu0 %v2857
    %3485 = vmatpush.bf16.msra.mxu0 %v2850
    %3486 = vmatmul.bf16.gmra.mxu0 %v2276
    %v3487 = vpop.f32.mrf.mxu0
    %v3488 = vadd.f32 %v2286, %v3487
    %v3489 = vpop.f32.mrf.mxu0
    %v3490 = vadd.f32 %v2286, %v3489
    %3491 = vdwg.mxu0
    %3492 = vmatpush.bf16.msra.mxu0 %v2955
    %3493 = vmatpush.bf16.msra.mxu0 %v2948
    %3494 = vmatpush.bf16.msra.mxu0 %v2941
    %3495 = vmatpush.bf16.msra.mxu0 %v2934
    %3496 = vmatpush.bf16.msra.mxu0 %v2927
    %3497 = vmatpush.bf16.msra.mxu0 %v2920
    %3498 = vmatpush.bf16.msra.mxu0 %v2913
    %3499 = vmatpush.bf16.msra.mxu0 %v2906
    %3500 = vmatmul.bf16.gmra.mxu0 %v2277
    %v3501 = vpop.f32.mrf.mxu0
    %v3502 = vadd.f32 %v3488, %v3501
    %v3503 = vpop.f32.mrf.mxu0
    %v3504 = vadd.f32 %v3490, %v3503
    %3505 = vdwg.mxu0
    %3506 = vmatpush.bf16.msra.mxu0 %v3011
    %3507 = vmatpush.bf16.msra.mxu0 %v3004
    %3508 = vmatpush.bf16.msra.mxu0 %v2997
    %3509 = vmatpush.bf16.msra.mxu0 %v2990
    %3510 = vmatpush.bf16.msra.mxu0 %v2983
    %3511 = vmatpush.bf16.msra.mxu0 %v2976
    %3512 = vmatpush.bf16.msra.mxu0 %v2969
    %3513 = vmatpush.bf16.msra.mxu0 %v2962
    %3514 = vmatmul.bf16.gmra.mxu0 %v2278
    %v3515 = vpop.f32.mrf.mxu0
    %v3516 = vadd.f32 %v3502, %v3515
    %v3517 = vpop.f32.mrf.mxu0
    %v3518 = vadd.f32 %v3504, %v3517
    %3519 = vdwg.mxu0
    %3520 = vmatpush.bf16.msra.mxu0 0
    %3521 = vmatpush.bf16.msra.mxu0 0
    %3522 = vmatpush.bf16.msra.mxu0 0
    %3523 = vmatpush.bf16.msra.mxu0 0
    %3524 = vmatpush.bf16.msra.mxu0 0
    %3525 = vmatpush.bf16.msra.mxu0 0
    %3526 = vmatpush.bf16.msra.mxu0 0
    %3527 = vmatpush.bf16.msra.mxu0 %v3018
    %3528 = vmatmul.bf16.gmra.mxu0 %v3196
    %v3529 = vpop.f32.mrf.mxu0
    %v3530 = vadd.f32 %v3516, %v3529
    %v3531 = vpop.f32.mrf.mxu0
    %v3532 = vadd.f32 %v3518, %v3531
    %3533 = vdwg.mxu0
    %3534 = vmatpush.bf16.msra.mxu0 %v2900
    %3535 = vmatpush.bf16.msra.mxu0 %v2893
    %3536 = vmatpush.bf16.msra.mxu0 %v2886
    %3537 = vmatpush.bf16.msra.mxu0 %v2879
    %3538 = vmatpush.bf16.msra.mxu0 %v2872
    %3539 = vmatpush.bf16.msra.mxu0 %v2865
    %3540 = vmatpush.bf16.msra.mxu0 %v2858
    %3541 = vmatpush.bf16.msra.mxu0 %v2851
    %3542 = vmatmul.bf16.gmra.mxu0 %v2276
    %v3543 = vpop.f32.mrf.mxu0
    %v3544 = vadd.f32 %v2287, %v3543
    %v3545 = vpop.f32.mrf.mxu0
    %v3546 = vadd.f32 %v2287, %v3545
    %3547 = vdwg.mxu0
    %3548 = vmatpush.bf16.msra.mxu0 %v2956
    %3549 = vmatpush.bf16.msra.mxu0 %v2949
    %3550 = vmatpush.bf16.msra.mxu0 %v2942
    %3551 = vmatpush.bf16.msra.mxu0 %v2935
    %3552 = vmatpush.bf16.msra.mxu0 %v2928
    %3553 = vmatpush.bf16.msra.mxu0 %v2921
    %3554 = vmatpush.bf16.msra.mxu0 %v2914
    %3555 = vmatpush.bf16.msra.mxu0 %v2907
    %3556 = vmatmul.bf16.gmra.mxu0 %v2277
    %v3557 = vpop.f32.mrf.mxu0
    %v3558 = vadd.f32 %v3544, %v3557
    %v3559 = vpop.f32.mrf.mxu0
    %v3560 = vadd.f32 %v3546, %v3559
    %3561 = vdwg.mxu0
    %3562 = vmatpush.bf16.msra.mxu0 %v3012
    %3563 = vmatpush.bf16.msra.mxu0 %v3005
    %3564 = vmatpush.bf16.msra.mxu0 %v2998
    %3565 = vmatpush.bf16.msra.mxu0 %v2991
    %3566 = vmatpush.bf16.msra.mxu0 %v2984
    %3567 = vmatpush.bf16.msra.mxu0 %v2977
    %3568 = vmatpush.bf16.msra.mxu0 %v2970
    %3569 = vmatpush.bf16.msra.mxu0 %v2963
    %3570 = vmatmul.bf16.gmra.mxu0 %v2278
    %v3571 = vpop.f32.mrf.mxu0
    %v3572 = vadd.f32 %v3558, %v3571
    %v3573 = vpop.f32.mrf.mxu0
    %v3574 = vadd.f32 %v3560, %v3573
    %3575 = vdwg.mxu0
    %3576 = vmatpush.bf16.msra.mxu0 0
    %3577 = vmatpush.bf16.msra.mxu0 0
    %3578 = vmatpush.bf16.msra.mxu0 0
    %3579 = vmatpush.bf16.msra.mxu0 0
    %3580 = vmatpush.bf16.msra.mxu0 0
    %3581 = vmatpush.bf16.msra.mxu0 0
    %3582 = vmatpush.bf16.msra.mxu0 0
    %3583 = vmatpush.bf16.msra.mxu0 %v3019
    %3584 = vmatmul.bf16.gmra.mxu0 %v3196
    %v3585 = vpop.f32.mrf.mxu0
    %v3586 = vadd.f32 %v3572, %v3585
    %v3587 = vpop.f32.mrf.mxu0
    %v3588 = vadd.f32 %v3574, %v3587
    %3589 = vdwg.mxu0
    %v3590 = vxor.u32 %v3250, 2147483648
    %v3591 = vxor.u32 %v3306, 2147483648
    %v3592 = vxor.u32 %v3362, 2147483648
    %v3593 = vxor.u32 %v3418, 2147483648
    %v3594 = vxor.u32 %v3474, 2147483648
    %v3595 = vxor.u32 %v3530, 2147483648
    %v3596 = vxor.u32 %v3586, 2147483648
    %v3597 = vxor.u32 %v3252, 2147483648
    %v3598 = vxor.u32 %v3308, 2147483648
    %v3599 = vxor.u32 %v3364, 2147483648
    %v3600 = vxor.u32 %v3420, 2147483648
    %v3601 = vxor.u32 %v3476, 2147483648
    %v3602 = vxor.u32 %v3532, 2147483648
    %v3603 = vxor.u32 %v3588, 2147483648
    %v3604 = vmul.f32 %v3590, 1.442695
    %v3605 = vpow.pop %v3604
    %v3606 = vmul.f32 %v3591, 1.442695
    %v3607 = vpow.pop %v3606
    %v3608 = vmul.f32 %v3592, 1.442695
    %v3609 = vpow.pop %v3608
    %v3610 = vmul.f32 %v3593, 1.442695
    %v3611 = vpow.pop %v3610
    %v3612 = vmul.f32 %v3594, 1.442695
    %v3613 = vpow.pop %v3612
    %v3614 = vmul.f32 %v3595, 1.442695
    %v3615 = vpow.pop %v3614
    %v3616 = vmul.f32 %v3596, 1.442695
    %v3617 = vpow.pop %v3616
    %v3618 = vmul.f32 %v3597, 1.442695
    %v3619 = vpow.pop %v3618
    %v3620 = vmul.f32 %v3598, 1.442695
    %v3621 = vpow.pop %v3620
    %v3622 = vmul.f32 %v3599, 1.442695
    %v3623 = vpow.pop %v3622
    %v3624 = vmul.f32 %v3600, 1.442695
    %v3625 = vpow.pop %v3624
    %v3626 = vmul.f32 %v3601, 1.442695
    %v3627 = vpow.pop %v3626
    %v3628 = vmul.f32 %v3602, 1.442695
    %v3629 = vpow.pop %v3628
    %v3630 = vmul.f32 %v3603, 1.442695
    %v3631 = vpow.pop %v3630
    %v3632 = vadd.f32 %v3605, 1.0
    %v3633 = vadd.f32 %v3607, 1.0
    %v3634 = vadd.f32 %v3609, 1.0
    %v3635 = vadd.f32 %v3611, 1.0
    %v3636 = vadd.f32 %v3613, 1.0
    %v3637 = vadd.f32 %v3615, 1.0
    %v3638 = vadd.f32 %v3617, 1.0
    %v3639 = vadd.f32 %v3619, 1.0
    %v3640 = vadd.f32 %v3621, 1.0
    %v3641 = vadd.f32 %v3623, 1.0
    %v3642 = vadd.f32 %v3625, 1.0
    %v3643 = vadd.f32 %v3627, 1.0
    %v3644 = vadd.f32 %v3629, 1.0
    %v3645 = vadd.f32 %v3631, 1.0
    %v3646 = vrcp.pop %v3632
    %v3647 = vmul.f32 %v3632, %v3646
    %v3648 = vsub.f32 1.0, %v3647
    %v3649 = vmul.f32 %v3646, %v3648
    %v3650 = vadd.f32 %v3646, %v3649
    %vm3651 = vweird.f32 %v3632
    %vm3652 = vweird.f32 %v3646
    %vm3653 = vmor %vm3651, %vm3652
    %v3654 = vsel %vm3653, %v3646, %v3650
    %v3655 = vand.u32 2147483647, %v3632
    %vm3656 = vcmp.eq.f32.partialorder %v3655, 8.507059e+37
    %v3657 = vand.u32 %v3632, 2147483648
    %v3658 = vor.u32 1.1754944e-38, %v3657
    %v3659 = vsel %vm3656, %v3658, %v3654
    %v3660 = vmul.f32 1.0, %v3659
    %v3661 = vrcp.pop %v3633
    %v3662 = vmul.f32 %v3633, %v3661
    %v3663 = vsub.f32 1.0, %v3662
    %v3664 = vmul.f32 %v3661, %v3663
    %v3665 = vadd.f32 %v3661, %v3664
    %vm3666 = vweird.f32 %v3633
    %vm3667 = vweird.f32 %v3661
    %vm3668 = vmor %vm3666, %vm3667
    %v3669 = vsel %vm3668, %v3661, %v3665
    %v3670 = vand.u32 2147483647, %v3633
    %vm3671 = vcmp.eq.f32.partialorder %v3670, 8.507059e+37
    %v3672 = vand.u32 %v3633, 2147483648
    %v3673 = vor.u32 1.1754944e-38, %v3672
    %v3674 = vsel %vm3671, %v3673, %v3669
    %v3675 = vmul.f32 1.0, %v3674
    %v3676 = vrcp.pop %v3634
    %v3677 = vmul.f32 %v3634, %v3676
    %v3678 = vsub.f32 1.0, %v3677
    %v3679 = vmul.f32 %v3676, %v3678
    %v3680 = vadd.f32 %v3676, %v3679
    %vm3681 = vweird.f32 %v3634
    %vm3682 = vweird.f32 %v3676
    %vm3683 = vmor %vm3681, %vm3682
    %v3684 = vsel %vm3683, %v3676, %v3680
    %v3685 = vand.u32 2147483647, %v3634
    %vm3686 = vcmp.eq.f32.partialorder %v3685, 8.507059e+37
    %v3687 = vand.u32 %v3634, 2147483648
    %v3688 = vor.u32 1.1754944e-38, %v3687
    %v3689 = vsel %vm3686, %v3688, %v3684
    %v3690 = vmul.f32 1.0, %v3689
    %v3691 = vrcp.pop %v3635
    %v3692 = vmul.f32 %v3635, %v3691
    %v3693 = vsub.f32 1.0, %v3692
    %v3694 = vmul.f32 %v3691, %v3693
    %v3695 = vadd.f32 %v3691, %v3694
    %vm3696 = vweird.f32 %v3635
    %vm3697 = vweird.f32 %v3691
    %vm3698 = vmor %vm3696, %vm3697
    %v3699 = vsel %vm3698, %v3691, %v3695
    %v3700 = vand.u32 2147483647, %v3635
    %vm3701 = vcmp.eq.f32.partialorder %v3700, 8.507059e+37
    %v3702 = vand.u32 %v3635, 2147483648
    %v3703 = vor.u32 1.1754944e-38, %v3702
    %v3704 = vsel %vm3701, %v3703, %v3699
    %v3705 = vmul.f32 1.0, %v3704
    %v3706 = vrcp.pop %v3636
    %v3707 = vmul.f32 %v3636, %v3706
    %v3708 = vsub.f32 1.0, %v3707
    %v3709 = vmul.f32 %v3706, %v3708
    %v3710 = vadd.f32 %v3706, %v3709
    %vm3711 = vweird.f32 %v3636
    %vm3712 = vweird.f32 %v3706
    %vm3713 = vmor %vm3711, %vm3712
    %v3714 = vsel %vm3713, %v3706, %v3710
    %v3715 = vand.u32 2147483647, %v3636
    %vm3716 = vcmp.eq.f32.partialorder %v3715, 8.507059e+37
    %v3717 = vand.u32 %v3636, 2147483648
    %v3718 = vor.u32 1.1754944e-38, %v3717
    %v3719 = vsel %vm3716, %v3718, %v3714
    %v3720 = vmul.f32 1.0, %v3719
    %v3721 = vrcp.pop %v3637
    %v3722 = vmul.f32 %v3637, %v3721
    %v3723 = vsub.f32 1.0, %v3722
    %v3724 = vmul.f32 %v3721, %v3723
    %v3725 = vadd.f32 %v3721, %v3724
    %vm3726 = vweird.f32 %v3637
    %vm3727 = vweird.f32 %v3721
    %vm3728 = vmor %vm3726, %vm3727
    %v3729 = vsel %vm3728, %v3721, %v3725
    %v3730 = vand.u32 2147483647, %v3637
    %vm3731 = vcmp.eq.f32.partialorder %v3730, 8.507059e+37
    %v3732 = vand.u32 %v3637, 2147483648
    %v3733 = vor.u32 1.1754944e-38, %v3732
    %v3734 = vsel %vm3731, %v3733, %v3729
    %v3735 = vmul.f32 1.0, %v3734
    %v3736 = vrcp.pop %v3638
    %v3737 = vmul.f32 %v3638, %v3736
    %v3738 = vsub.f32 1.0, %v3737
    %v3739 = vmul.f32 %v3736, %v3738
    %v3740 = vadd.f32 %v3736, %v3739
    %vm3741 = vweird.f32 %v3638
    %vm3742 = vweird.f32 %v3736
    %vm3743 = vmor %vm3741, %vm3742
    %v3744 = vsel %vm3743, %v3736, %v3740
    %v3745 = vand.u32 2147483647, %v3638
    %vm3746 = vcmp.eq.f32.partialorder %v3745, 8.507059e+37
    %v3747 = vand.u32 %v3638, 2147483648
    %v3748 = vor.u32 1.1754944e-38, %v3747
    %v3749 = vsel %vm3746, %v3748, %v3744
    %v3750 = vmul.f32 1.0, %v3749
    %v3751 = vrcp.pop %v3639
    %v3752 = vmul.f32 %v3639, %v3751
    %v3753 = vsub.f32 1.0, %v3752
    %v3754 = vmul.f32 %v3751, %v3753
    %v3755 = vadd.f32 %v3751, %v3754
    %vm3756 = vweird.f32 %v3639
    %vm3757 = vweird.f32 %v3751
    %vm3758 = vmor %vm3756, %vm3757
    %v3759 = vsel %vm3758, %v3751, %v3755
    %v3760 = vand.u32 2147483647, %v3639
    %vm3761 = vcmp.eq.f32.partialorder %v3760, 8.507059e+37
    %v3762 = vand.u32 %v3639, 2147483648
    %v3763 = vor.u32 1.1754944e-38, %v3762
    %v3764 = vsel %vm3761, %v3763, %v3759
    %v3765 = vmul.f32 1.0, %v3764
    %v3766 = vrcp.pop %v3640
    %v3767 = vmul.f32 %v3640, %v3766
    %v3768 = vsub.f32 1.0, %v3767
    %v3769 = vmul.f32 %v3766, %v3768
    %v3770 = vadd.f32 %v3766, %v3769
    %vm3771 = vweird.f32 %v3640
    %vm3772 = vweird.f32 %v3766
    %vm3773 = vmor %vm3771, %vm3772
    %v3774 = vsel %vm3773, %v3766, %v3770
    %v3775 = vand.u32 2147483647, %v3640
    %vm3776 = vcmp.eq.f32.partialorder %v3775, 8.507059e+37
    %v3777 = vand.u32 %v3640, 2147483648
    %v3778 = vor.u32 1.1754944e-38, %v3777
    %v3779 = vsel %vm3776, %v3778, %v3774
    %v3780 = vmul.f32 1.0, %v3779
    %v3781 = vrcp.pop %v3641
    %v3782 = vmul.f32 %v3641, %v3781
    %v3783 = vsub.f32 1.0, %v3782
    %v3784 = vmul.f32 %v3781, %v3783
    %v3785 = vadd.f32 %v3781, %v3784
    %vm3786 = vweird.f32 %v3641
    %vm3787 = vweird.f32 %v3781
    %vm3788 = vmor %vm3786, %vm3787
    %v3789 = vsel %vm3788, %v3781, %v3785
    %v3790 = vand.u32 2147483647, %v3641
    %vm3791 = vcmp.eq.f32.partialorder %v3790, 8.507059e+37
    %v3792 = vand.u32 %v3641, 2147483648
    %v3793 = vor.u32 1.1754944e-38, %v3792
    %v3794 = vsel %vm3791, %v3793, %v3789
    %v3795 = vmul.f32 1.0, %v3794
    %v3796 = vrcp.pop %v3642
    %v3797 = vmul.f32 %v3642, %v3796
    %v3798 = vsub.f32 1.0, %v3797
    %v3799 = vmul.f32 %v3796, %v3798
    %v3800 = vadd.f32 %v3796, %v3799
    %vm3801 = vweird.f32 %v3642
    %vm3802 = vweird.f32 %v3796
    %vm3803 = vmor %vm3801, %vm3802
    %v3804 = vsel %vm3803, %v3796, %v3800
    %v3805 = vand.u32 2147483647, %v3642
    %vm3806 = vcmp.eq.f32.partialorder %v3805, 8.507059e+37
    %v3807 = vand.u32 %v3642, 2147483648
    %v3808 = vor.u32 1.1754944e-38, %v3807
    %v3809 = vsel %vm3806, %v3808, %v3804
    %v3810 = vmul.f32 1.0, %v3809
    %v3811 = vrcp.pop %v3643
    %v3812 = vmul.f32 %v3643, %v3811
    %v3813 = vsub.f32 1.0, %v3812
    %v3814 = vmul.f32 %v3811, %v3813
    %v3815 = vadd.f32 %v3811, %v3814
    %vm3816 = vweird.f32 %v3643
    %vm3817 = vweird.f32 %v3811
    %vm3818 = vmor %vm3816, %vm3817
    %v3819 = vsel %vm3818, %v3811, %v3815
    %v3820 = vand.u32 2147483647, %v3643
    %vm3821 = vcmp.eq.f32.partialorder %v3820, 8.507059e+37
    %v3822 = vand.u32 %v3643, 2147483648
    %v3823 = vor.u32 1.1754944e-38, %v3822
    %v3824 = vsel %vm3821, %v3823, %v3819
    %v3825 = vmul.f32 1.0, %v3824
    %v3826 = vrcp.pop %v3644
    %v3827 = vmul.f32 %v3644, %v3826
    %v3828 = vsub.f32 1.0, %v3827
    %v3829 = vmul.f32 %v3826, %v3828
    %v3830 = vadd.f32 %v3826, %v3829
    %vm3831 = vweird.f32 %v3644
    %vm3832 = vweird.f32 %v3826
    %vm3833 = vmor %vm3831, %vm3832
    %v3834 = vsel %vm3833, %v3826, %v3830
    %v3835 = vand.u32 2147483647, %v3644
    %vm3836 = vcmp.eq.f32.partialorder %v3835, 8.507059e+37
    %v3837 = vand.u32 %v3644, 2147483648
    %v3838 = vor.u32 1.1754944e-38, %v3837
    %v3839 = vsel %vm3836, %v3838, %v3834
    %v3840 = vmul.f32 1.0, %v3839
    %v3841 = vrcp.pop %v3645
    %v3842 = vmul.f32 %v3645, %v3841
    %v3843 = vsub.f32 1.0, %v3842
    %v3844 = vmul.f32 %v3841, %v3843
    %v3845 = vadd.f32 %v3841, %v3844
    %vm3846 = vweird.f32 %v3645
    %vm3847 = vweird.f32 %v3841
    %vm3848 = vmor %vm3846, %vm3847
    %v3849 = vsel %vm3848, %v3841, %v3845
    %v3850 = vand.u32 2147483647, %v3645
    %vm3851 = vcmp.eq.f32.partialorder %v3850, 8.507059e+37
    %v3852 = vand.u32 %v3645, 2147483648
    %v3853 = vor.u32 1.1754944e-38, %v3852
    %v3854 = vsel %vm3851, %v3853, %v3849
    %v3855 = vmul.f32 1.0, %v3854
    %v3856 = vpack.c.bf16 %v3675, %v3660
    %v3857 = vpack.c.bf16 %v3705, %v3690
    %v3858 = vpack.c.bf16 %v3735, %v3720
    %v3859 = vpack.c.bf16 %v3750, %v3750
    %v3860 = vpack.c.bf16 %v3780, %v3765
    %v3861 = vpack.c.bf16 %v3810, %v3795
    %v3862 = vpack.c.bf16 %v3840, %v3825
    %v3863 = vpack.c.bf16 %v3855, %v3855
    %3864 = vst [vmem:[#allocation2] sm:$0xff] %v3856
    %3865 = vst [vmem:[#allocation2 + $0x8] sm:$0xff] %v3857
    %3866 = vst [vmem:[#allocation2 + $0x10] sm:$0xff] %v3858
    %3867 = vst [vmem:[#allocation2 + $0x18] sm:$0xf] %v3859
    %3868 = vst [vmem:[#allocation2 + $0x1c] sm:$0xff] %v3860
    %3869 = vst [vmem:[#allocation2 + $0x24] sm:$0xff] %v3861
    %3870 = vst [vmem:[#allocation2 + $0x2c] sm:$0xff] %v3862
    %3871 = vst [vmem:[#allocation2 + $0x34] sm:$0xf] %v3863
    %3872 = vst [vmem:[#allocation4] sm:$0xff] %v2135
    %3873 = vst [vmem:[#allocation4 + $0x8] sm:$0xff] %v2137
    // Predicated region
    $region30: #{tpu_custom_call.1} parent=1 // pred_check
      _
    $region31: #{tpu_custom_call.1} parent=1 // pred_check_branch
      %3875 = sbr.rel (0) target = $region33
    $region32: #{tpu_custom_call.1} parent=1 // pred_region
      %3877 = vsyncadd [#allocation3], 0
      %s3878 = sshll.u32 [#allocation2], 4
      %s3879 = int_to_ptr.vmem [resolvable:$true] %s3878
      %s3880 = sshll.u32 %s7, 4
      %s3881 = int_to_ptr.hbm [resolvable:$true] %s3880
      %3886 = dma.vmem_to_hbm [thread:$0]  %s3879, 896, %s3881, [#allocation3], 448, 448, 28
    $region33: #{tpu_custom_call.1} parent=1 // pred_fallthru
      _
    // Predicated region
    $region34: #{tpu_custom_call.1} parent=1 // pred_check
      _
    $region35: #{tpu_custom_call.1} parent=1 // pred_check_branch
      %3888 = sbr.rel (0) target = $region37
    $region36: #{tpu_custom_call.1} parent=1 // pred_region
      %3890 = vsyncadd [#allocation5], 0
      %s3891 = sshll.u32 [#allocation4], 4
      %s3892 = int_to_ptr.vmem [resolvable:$true] %s3891
      %s3893 = sshll.u32 %s8, 4
      %s3894 = int_to_ptr.hbm [resolvable:$true] %s3893
      %3899 = dma.vmem_to_hbm [thread:$0]  %s3892, 256, %s3894, [#allocation5], 128, 128, 8
    $region37: #{tpu_custom_call.1} parent=1 // pred_fallthru
      _
    // Predicated region
    $region38: #{tpu_custom_call.1} parent=1 // pred_check
      _
    $region39: #{tpu_custom_call.1} parent=1 // pred_check_branch
      %3901 = sbr.rel (0) target = $region41
    $region40: #{tpu_custom_call.1} parent=1 // pred_region
      %3903 = dma.done [#allocation3], 896
    $region41: #{tpu_custom_call.1} parent=1 // pred_fallthru
      _
    // Predicated region
    $region42: #{tpu_custom_call.1} parent=1 // pred_check
      _
    $region43: #{tpu_custom_call.1} parent=1 // pred_check_branch
      %3905 = sbr.rel (0) target = $region45
    $region44: #{tpu_custom_call.1} parent=1 // pred_region
      %3907 = dma.done [#allocation5], 256
    $region45: #{tpu_custom_call.1} parent=1 // pred_fallthru
      _
    %3908 = vsyncpa [#allocation3], 1
    %3909 = vsyncpa [#allocation5], 1

</llo_original>
